<compile_context>
chip_gen: v7x
topology: tpu7x:2x2x1
jax: 0.10.0
libtpu: 0.0.40
codegen_flags: <defaults>
</compile_context>

<pallas_src>
import numpy as np
import jax
import jax.numpy as jnp
from jax.experimental import pallas as pl
from jax.experimental.pallas import tpu as pltpu

HIGHEST = jax.lax.Precision.HIGHEST
BF16 = jnp.bfloat16
F32 = jnp.float32


# -----------------------------------------------------------------------------
# Host-side constants: PyTorch-exact bilinear (align_corners=False) matrices and
# the 3x3-conv border masks.
# -----------------------------------------------------------------------------
def _bilinear_axis_matrix(in_size, out_size):
    scale = in_size / out_size
    dst = np.arange(out_size)
    src = np.maximum((dst + 0.5) * scale - 0.5, 0.0)
    i0 = np.minimum(np.floor(src).astype(np.int64), in_size - 1)
    lam = (src - i0).astype(np.float32)
    i1 = np.minimum(i0 + 1, in_size - 1)
    a = np.zeros((out_size, in_size), dtype=np.float32)
    a[dst, i0] += (1.0 - lam)
    a[dst, i1] += lam
    return a


def bilinear_matrix_2d(in_hw, out_hw):
    ah = _bilinear_axis_matrix(in_hw[0], out_hw[0])
    aw = _bilinear_axis_matrix(in_hw[1], out_hw[1])
    # out[(Y,X)] = sum_{(y,x)} Ah[Y,y] * Aw[X,x] * in[(y,x)]   (row-major flattening)
    return np.kron(ah, aw)


def _conv3x3_border_masks(h, w):
    """(9, 1, h*w) 0/1 masks; tap t=(dy+1)*3+(dx+1) is valid where (r+dy, c+dx) is in range."""
    r = np.arange(h)[:, None]
    c = np.arange(w)[None, :]
    m = np.zeros((9, 1, h * w), dtype=np.float32)
    t = 0
    for dy in (-1, 0, 1):
        for dx in (-1, 0, 1):
            valid = (r + dy >= 0) & (r + dy < h) & (c + dx >= 0) & (c + dx < w)
            m[t, 0, :] = valid.astype(np.float32).reshape(-1)
            t += 1
    return m


# -----------------------------------------------------------------------------
# In-kernel exact GELU.
# TODO(synk): nn.GELU() default is the exact erf form; lax.erf has no guaranteed Mosaic
# lowering, so erf uses the Abramowitz-Stegun 7.1.26 polynomial (max abs err ~1.5e-7)
# with an EUP approx reciprocal (error well below the bf16 rounding applied downstream).
def _erf_f32(x):
    a1, a2, a3 = 0.254829592, -0.284496736, 1.421413741
    a4, a5, p = -1.453152027, 1.061405429, 0.3275911
    ax = jnp.abs(x)
    t = pl.reciprocal(1.0 + p * ax, approx=True)
    poly = ((((a5 * t + a4) * t + a3) * t + a2) * t + a1) * t
    y = 1.0 - poly * jnp.exp(-ax * ax)
    return jnp.where(x < 0, -y, y)


def _gelu_exact(x):
    return 0.5 * x * (1.0 + _erf_f32(x * 0.7071067811865476))


# -----------------------------------------------------------------------------
# pltpu.roll direction probe (runs one tiny kernel, cached; call outside jax.jit).
# -----------------------------------------------------------------------------
def _probe_roll_convention():
    try:
        def k(x_ref, o_ref):
            o_ref[...] = pltpu.roll(x_ref[...], shift=1, axis=1)

        x = jnp.tile(jnp.arange(128, dtype=jnp.float32)[None, :], (8, 1))
        y = np.asarray(jax.device_get(
            pl.pallas_call(k, out_shape=jax.ShapeDtypeStruct((8, 128), jnp.float32))(x)))
        if y[0, 0] == 127.0 and y[0, 1] == 0.0:
            return "jnp"      # roll(x, k)[p] == x[(p - k) mod n]  (jnp.roll semantics)
        if y[0, 0] == 1.0 and y[0, 127] == 0.0:
            return "inv"      # roll(x, k)[p] == x[(p + k) mod n]
    except Exception:
        pass
    return "none"             # fall back to slice+concat lane shifts


_ROLL_MODE = []


def _roll_mode():
    if not _ROLL_MODE:
        _ROLL_MODE.append(_probe_roll_convention())
    return _ROLL_MODE[0]


# -----------------------------------------------------------------------------
# Fused Pallas kernel: upsample -> 1x1 fuse -> 3x3 conv -> GELU -> classifier -> resize.
# All tensors are (channels, flattened-spatial): channels on sublanes, spatial on lanes.
# -----------------------------------------------------------------------------
def _make_fused_kernel(h0, w0, roll_mode):
    hw0 = h0 * w0

    def dot(a, b):
        return jnp.dot(a, b, preferred_element_type=F32)

    def shift_lanes(y, s):
        # z[:, p] = y[:, (p + s) mod hw0]; the border masks zero every wrapped lane.
        if s % hw0 == 0:
            return y
        if roll_mode == "jnp":
            return pltpu.roll(y, shift=(-s) % hw0, axis=1)
        if roll_mode == "inv":
            return pltpu.roll(y, shift=s % hw0, axis=1)
        k = s % hw0
        return jnp.concatenate([y[:, k:], y[:, :k]], axis=1)

    def kernel(f0_ref, f1_ref, f2_ref, f3_ref,
               kt1_ref, kt2_ref, kt3_ref, mask_ref, kfin_ref,
               wf0_ref, wf1_ref, wf2_ref, wf3_ref, bf_ref,
               wsf_ref, bs_ref, wc_ref, bc_ref,
               o_ref):
        # ---- bilinear upsample + fusion='concat' 1x1 conv, with the 1x1 weights folded
        #      into the per-stage bilinear operators: y = bf + sum_g (wf_g @ f_g) @ K_g ----
        y = bf_ref[...] + dot(wf0_ref[...], f0_ref[0])
        y = y + dot(dot(wf1_ref[...], f1_ref[0]).astype(BF16), kt1_ref[...])
        y = y + dot(dot(wf2_ref[...], f2_ref[0]).astype(BF16), kt2_ref[...])
        y = y + dot(dot(wf3_ref[...], f3_ref[0]).astype(BF16), kt3_ref[...])     # (d0, hw0)

        # ---- 3x3 conv, padding=1: 9 lane shifts (XLU) + border masks (VPU), all taps
        #      fused into one (d0, 9*d0) x (9*d0, hw0) channel-mix matmul. ----
        pieces = []
        t = 0
        for dy in (-1, 0, 1):
            for dx in (-1, 0, 1):
                pieces.append(shift_lanes(y, dy * w0 + dx) * mask_ref[t])
                t += 1
        taps = jnp.concatenate(pieces, axis=0).astype(BF16)                      # (9*d0, hw0)
        z = bs_ref[...] + dot(wsf_ref[...], taps)                                # (d0, hw0)

        # ---- exact GELU (EUP exp / approx reciprocal + VPU) ----
        a = _gelu_exact(z)

        # ---- classifier 1x1 conv ----
        logits = bc_ref[...] + dot(wc_ref[...], a.astype(BF16))                  # (nc, hw0)

        # ---- final bilinear resize: ONE lane-dense kron matmul, flattened output ----
        o_ref[0] = dot(logits.astype(BF16), kfin_ref[...])                       # (nc, H*W)

    return kernel


# -----------------------------------------------------------------------------
# Parameters (deterministic) and synthetic encoder.
# -----------------------------------------------------------------------------
def init_params(key, in_chans=3, embedding_dims=(8, 16, 24, 32), num_classes=3):
    keys = jax.random.split(key, 10)
    d0 = embedding_dims[0]
    csum = sum(embedding_dims)
    enc_proj = [0.5 * jax.random.normal(keys[i], (d, in_chans), F32)
                for i, d in enumerate(embedding_dims)]
    wf = 0.1 * jax.random.normal(keys[4], (d0, csum), F32)         # Conv2d(csum, d0, 1)
    bf = 0.1 * jax.random.normal(keys[5], (d0, 1), F32)
    ws = 0.1 * jax.random.normal(keys[6], (d0, d0, 3, 3), F32)     # Conv2d(d0, d0, 3, pad=1)
    bs = 0.1 * jax.random.normal(keys[7], (d0, 1), F32)
    wc = 0.1 * jax.random.normal(keys[8], (num_classes, d0), F32)  # Conv2d(d0, nc, 1)
    bc = 0.1 * jax.random.normal(keys[9], (num_classes, 1), F32)
    return {
        "enc_proj": enc_proj,
        "wf": wf, "bf": bf,
        "ws9": jnp.transpose(ws, (2, 3, 0, 1)).reshape(9, d0, d0),  # tap-major: t = ky*3+kx
        "bs": bs, "wc": wc, "bc": bc,
    }


# TODO(synk): the real encoder is a pretrained SegFormer transformer (external); replaced
# by a deterministic synthetic multi-scale extractor (strided avg-pool + fixed channel
# projection) producing hidden_states at strides 4/8/16/32.
def synthetic_encoder(image, enc_proj):
    b, c, h, w = image.shape
    hidden = []
    for i, proj in enumerate(enc_proj):
        s = 4 * (2 ** i)
        pooled = image.reshape(b, c, h // s, s, w // s, s).mean(axis=(3, 5))
        hidden.append(jnp.einsum('bchw,dc->bdhw', pooled, proj, precision=HIGHEST))
    return hidden


# -----------------------------------------------------------------------------
# Forward pass (== RoWeederFlat.forward, logits output, NCHW).
# -----------------------------------------------------------------------------
def roweeder_flat_forward(image, params, num_classes=3, scale_factors=(2, 4, 8)):
    b, _, H, W = image.shape
    hidden = synthetic_encoder(image, params["enc_proj"])             # NCHW f32 pyramid
    assert len(hidden) == 4
    dims = tuple(int(x.shape[1]) for x in hidden)
    d0 = dims[0]
    h0, w0 = int(hidden[0].shape[2]), int(hidden[0].shape[3])

    # channels on sublanes / flattened spatial on lanes == NCHW + reshape (no transpose).
    feats = [x.reshape(b, x.shape[1], x.shape[2] * x.shape[3]).astype(BF16) for x in hidden]

    # compile-time constants
    kts = []
    for x, s in zip(hidden[1:], scale_factors):
        hi, wi = int(x.shape[2]), int(x.shape[3])
        kts.append(jnp.asarray(
            bilinear_matrix_2d((hi, wi), (hi * s, wi * s)).T).astype(BF16))   # (hi*wi, hw0)
    masks = jnp.asarray(_conv3x3_border_masks(h0, w0))                        # (9, 1, hw0)
    kfin = jnp.asarray(bilinear_matrix_2d((h0, w0), (H, W)).T).astype(BF16)   # (hw0, H*W)

    offs = np.cumsum((0,) + dims)
    wf_g = [params["wf"][:, offs[g]:offs[g + 1]].astype(BF16) for g in range(4)]
    ws_flat = jnp.transpose(params["ws9"], (1, 0, 2)).reshape(d0, 9 * d0).astype(BF16)
    wc = params["wc"].astype(BF16)
    bf_, bs_, bc_ = params["bf"], params["bs"], params["bc"]

    kernel = _make_fused_kernel(h0, w0, _roll_mode())

    def full(a):
        shape = tuple(a.shape)
        return pl.BlockSpec(shape, lambda i, n=len(shape): (0,) * n)

    def per_batch(a):
        return pl.BlockSpec((1,) + tuple(a.shape[1:]), lambda i: (i, 0, 0))

    out_flat = pl.pallas_call(
        kernel,
        out_shape=jax.ShapeDtypeStruct((b, num_classes, H * W), F32),
        grid=(b,),
        in_specs=[per_batch(feats[0]), per_batch(feats[1]),
                  per_batch(feats[2]), per_batch(feats[3]),
                  full(kts[0]), full(kts[1]), full(kts[2]),
                  full(masks), full(kfin),
                  full(wf_g[0]), full(wf_g[1]), full(wf_g[2]), full(wf_g[3]), full(bf_),
                  full(ws_flat), full(bs_), full(wc), full(bc_)],
        out_specs=pl.BlockSpec((1, num_classes, H * W), lambda i: (i, 0, 0)),
        compiler_params=pltpu.CompilerParams(dimension_semantics=("parallel",)),
    )(feats[0], feats[1], feats[2], feats[3],
      kts[0], kts[1], kts[2], masks, kfin,
      wf_g[0], wf_g[1], wf_g[2], wf_g[3], bf_,
      ws_flat, bs_, wc, bc_)

    # lane-dense flattened output -> NCHW  (== RowWeederModelOutput(logits=..., scores=None))
    return out_flat.reshape(b, num_classes, H, W)


# -----------------------------------------------------------------------------
# Pure-JAX reference (same math, same bf16/f32 rounding points) for a sanity check.
# -----------------------------------------------------------------------------
def reference_forward(image, params, num_classes=3, scale_factors=(2, 4, 8)):
    b, _, H, W = image.shape
    hidden = synthetic_encoder(image, params["enc_proj"])
    dims = tuple(int(x.shape[1]) for x in hidden)
    d0 = dims[0]
    h0, w0 = int(hidden[0].shape[2]), int(hidden[0].shape[3])
    feats = [x.reshape(b, x.shape[1], x.shape[2] * x.shape[3]).astype(BF16) for x in hidden]

    offs = np.cumsum((0,) + dims)
    wf_g = [params["wf"][:, offs[g]:offs[g + 1]].astype(BF16) for g in range(4)]

    # upsample + 'concat' 1x1 fuse, same algebraic order / rounding points as the kernel.
    y = params["bf"][None] + jnp.einsum('oc,bcp->bop', wf_g[0], feats[0],
                                        preferred_element_type=F32)
    for g, (x, s) in enumerate(zip(hidden[1:], scale_factors), start=1):
        hi, wi = int(x.shape[2]), int(x.shape[3])
        kt = jnp.asarray(bilinear_matrix_2d((hi, wi), (hi * s, wi * s)).T).astype(BF16)
        tg = jnp.einsum('oc,bcp->bop', wf_g[g], feats[g],
                        preferred_element_type=F32).astype(BF16)
        y = y + jnp.einsum('bcq,qp->bcp', tg, kt, preferred_element_type=F32)

    # 3x3 conv, padding=1 (pad-based formulation, independent of the kernel's roll+mask).
    y4 = y.reshape(b, d0, h0, w0)
    ypad = jnp.pad(y4.astype(BF16), ((0, 0), (0, 0), (1, 1), (1, 1)))
    ws9 = params["ws9"].astype(BF16)
    z = params["bs"].reshape(1, d0, 1, 1)
    for ky in range(3):
        for kx in range(3):
            z = z + jnp.einsum('oi,bihw->bohw', ws9[ky * 3 + kx],
                               ypad[:, :, ky:ky + h0, kx:kx + w0],
                               preferred_element_type=F32)
    a = jax.nn.gelu(z, approximate=False)

    logits = params["bc"].reshape(1, num_classes, 1, 1) + jnp.einsum(
        'oc,bchw->bohw', params["wc"].astype(BF16), a.astype(BF16),
        preferred_element_type=F32)

    # final bilinear resize with the same dense kron operator as the kernel.
    kfin = jnp.asarray(bilinear_matrix_2d((h0, w0), (H, W)).T).astype(BF16)   # (hw0, H*W)
    lf = logits.reshape(b, num_classes, h0 * w0).astype(BF16)
    out = jnp.einsum('bcp,pP->bcP', lf, kfin, preferred_element_type=F32)
    return out.reshape(b, num_classes, H, W)


if __name__ == "__main__":
    key = jax.random.PRNGKey(0)
    pkey, ikey = jax.random.split(key)
    embedding_dims = (8, 16, 24, 32)
    num_classes = 3
    params = init_params(pkey, embedding_dims=embedding_dims, num_classes=num_classes)
    image = jax.random.normal(ikey, (2, 3, 64, 64), F32)               # NCHW, like PyTorch

    _roll_mode()   # probe pltpu.roll's direction once, outside jit

    logits = jax.block_until_ready(jax.jit(roweeder_flat_forward)(image, params))
    assert logits.shape == (2, num_classes, 64, 64), logits.shape

    ref = jax.block_until_ready(jax.jit(reference_forward)(image, params))
    err = float(jnp.max(jnp.abs(logits - ref)))
    if not np.isfinite(err) or err > 5e-3:
        raise AssertionError(f"mismatch vs reference: max abs err = {err}")
    print("KERNEL_OK")
</pallas_src>

<mosaic_0001>
module attributes {stable_mosaic.version = 11 : i64} {
  func.func @k(%arg0: memref<8x128xf32, #tpu.memory_space<vmem>>, %arg1: memref<8x128xf32, #tpu.memory_space<vmem>>) attributes {dimension_semantics = [], scalar_prefetch = 0 : i64, scratch_operands = 0 : i64, tpu.core_type = #tpu.core_type<tc>} {
    %c0 = arith.constant 0 : index
    %c0_0 = arith.constant 0 : index
    %0 = vector.load %arg0[%c0, %c0_0] : memref<8x128xf32, #tpu.memory_space<vmem>>, vector<8x128xf32>
    %c1_i32 = arith.constant 1 : i32
    %1 = tpu.dynamic_rotate %0 by %c1_i32 dim 1 : vector<8x128xf32>, i32 -> vector<8x128xf32>
    %c0_1 = arith.constant 0 : index
    %c0_2 = arith.constant 0 : index
    %2 = vector.load %arg1[%c0_1, %c0_2] : memref<8x128xf32, #tpu.memory_space<vmem>>, vector<8x128xf32>
    tpu.vector_store %arg1[%c0_1, %c0_2], %1 {strides = array<i32>} : memref<8x128xf32, #tpu.memory_space<vmem>>, vector<8x128xf32>,
    return
  }
}

module attributes {stable_mosaic.version = 11 : i64} {
  func.func @kernel(%arg0: i32, %arg1: memref<1x8x256xbf16, #tpu.memory_space<vmem>>, %arg2: memref<1x16x64xbf16, #tpu.memory_space<vmem>>, %arg3: memref<1x24x16xbf16, #tpu.memory_space<vmem>>, %arg4: memref<1x32x4xbf16, #tpu.memory_space<vmem>>, %arg5: memref<64x256xbf16, #tpu.memory_space<vmem>>, %arg6: memref<16x256xbf16, #tpu.memory_space<vmem>>, %arg7: memref<4x256xbf16, #tpu.memory_space<vmem>>, %arg8: memref<9x1x256xf32, #tpu.memory_space<vmem>>, %arg9: memref<256x4096xbf16, #tpu.memory_space<vmem>>, %arg10: memref<8x8xbf16, #tpu.memory_space<vmem>>, %arg11: memref<8x16xbf16, #tpu.memory_space<vmem>>, %arg12: memref<8x24xbf16, #tpu.memory_space<vmem>>, %arg13: memref<8x32xbf16, #tpu.memory_space<vmem>>, %arg14: memref<8x1xf32, #tpu.memory_space<vmem>>, %arg15: memref<8x72xbf16, #tpu.memory_space<vmem>>, %arg16: memref<8x1xf32, #tpu.memory_space<vmem>>, %arg17: memref<3x8xbf16, #tpu.memory_space<vmem>>, %arg18: memref<3x1xf32, #tpu.memory_space<vmem>>, %arg19: memref<1x3x4096xf32, #tpu.memory_space<vmem>>) attributes {dimension_semantics = [#tpu.dimension_semantics<parallel>], iteration_bounds = array<i64: 2>, scalar_prefetch = 0 : i64, scratch_operands = 0 : i64, tpu.core_type = #tpu.core_type<tc>, window_params = [{transform_indices = @transform_0, window_bounds = array<i64: 1, 8, 256>}, {transform_indices = @transform_1, window_bounds = array<i64: 1, 16, 64>}, {transform_indices = @transform_2, window_bounds = array<i64: 1, 24, 16>}, {transform_indices = @transform_3, window_bounds = array<i64: 1, 32, 4>}, {pipeline_mode = #tpu.pipeline_mode<synchronous>, transform_indices = @transform_4, window_bounds = array<i64: 64, 256>}, {pipeline_mode = #tpu.pipeline_mode<synchronous>, transform_indices = @transform_5, window_bounds = array<i64: 16, 256>}, {pipeline_mode = #tpu.pipeline_mode<synchronous>, transform_indices = @transform_6, window_bounds = array<i64: 4, 256>}, {pipeline_mode = #tpu.pipeline_mode<synchronous>, transform_indices = @transform_7, window_bounds = array<i64: 9, 1, 256>}, {pipeline_mode = #tpu.pipeline_mode<synchronous>, transform_indices = @transform_8, window_bounds = array<i64: 256, 4096>}, {pipeline_mode = #tpu.pipeline_mode<synchronous>, transform_indices = @transform_9, window_bounds = array<i64: 8, 8>}, {pipeline_mode = #tpu.pipeline_mode<synchronous>, transform_indices = @transform_10, window_bounds = array<i64: 8, 16>}, {pipeline_mode = #tpu.pipeline_mode<synchronous>, transform_indices = @transform_11, window_bounds = array<i64: 8, 24>}, {pipeline_mode = #tpu.pipeline_mode<synchronous>, transform_indices = @transform_12, window_bounds = array<i64: 8, 32>}, {pipeline_mode = #tpu.pipeline_mode<synchronous>, transform_indices = @transform_13, window_bounds = array<i64: 8, 1>}, {pipeline_mode = #tpu.pipeline_mode<synchronous>, transform_indices = @transform_14, window_bounds = array<i64: 8, 72>}, {pipeline_mode = #tpu.pipeline_mode<synchronous>, transform_indices = @transform_15, window_bounds = array<i64: 8, 1>}, {pipeline_mode = #tpu.pipeline_mode<synchronous>, transform_indices = @transform_16, window_bounds = array<i64: 3, 8>}, {pipeline_mode = #tpu.pipeline_mode<synchronous>, transform_indices = @transform_17, window_bounds = array<i64: 3, 1>}, {transform_indices = @transform_18, window_bounds = array<i64: 1, 3, 4096>}]} {
    %c0 = arith.constant 0 : index
    %c0_0 = arith.constant 0 : index
    %0 = vector.load %arg14[%c0, %c0_0] : memref<8x1xf32, #tpu.memory_space<vmem>>, vector<8x1xf32>
    %c0_1 = arith.constant 0 : index
    %c0_2 = arith.constant 0 : index
    %1 = vector.load %arg10[%c0_1, %c0_2] : memref<8x8xbf16, #tpu.memory_space<vmem>>, vector<8x8xbf16>
    %c0_3 = arith.constant 0 : index
    %c0_4 = arith.constant 0 : index
    %c0_5 = arith.constant 0 : index
    %2 = vector.load %arg1[%c0_3, %c0_4, %c0_5] : memref<1x8x256xbf16, #tpu.memory_space<vmem>>, vector<1x8x256xbf16>
    %3 = vector.shape_cast %2 : vector<1x8x256xbf16> to vector<8x256xbf16>
    %cst = arith.constant dense<0.000000e+00> : vector<8x256xf32>
    %4 = tpu.matmul %1, %3, %cst {dimension_numbers = #tpu.dot_dimension_numbers<[1], [0], [0], [1], [0, 0, 1, 1], [], []>} : vector<8x8xbf16>, vector<8x256xbf16>, vector<8x256xf32> -> vector<8x256xf32>
    %5 = vector.broadcast %0 : vector<8x1xf32> to vector<8x256xf32>
    %6 = arith.addf %5, %4 : vector<8x256xf32>
    %c0_6 = arith.constant 0 : index
    %c0_7 = arith.constant 0 : index
    %7 = vector.load %arg11[%c0_6, %c0_7] : memref<8x16xbf16, #tpu.memory_space<vmem>>, vector<8x16xbf16>
    %c0_8 = arith.constant 0 : index
    %c0_9 = arith.constant 0 : index
    %c0_10 = arith.constant 0 : index
    %8 = vector.load %arg2[%c0_8, %c0_9, %c0_10] : memref<1x16x64xbf16, #tpu.memory_space<vmem>>, vector<1x16x64xbf16>
    %9 = vector.shape_cast %8 : vector<1x16x64xbf16> to vector<16x64xbf16>
    %cst_11 = arith.constant dense<0.000000e+00> : vector<8x64xf32>
    %10 = tpu.matmul %7, %9, %cst_11 {dimension_numbers = #tpu.dot_dimension_numbers<[1], [0], [0], [1], [0, 0, 1, 1], [], []>} : vector<8x16xbf16>, vector<16x64xbf16>, vector<8x64xf32> -> vector<8x64xf32>
    %11 = arith.truncf %10 : vector<8x64xf32> to vector<8x64xbf16>
    %c0_12 = arith.constant 0 : index
    %c0_13 = arith.constant 0 : index
    %12 = vector.load %arg5[%c0_12, %c0_13] : memref<64x256xbf16, #tpu.memory_space<vmem>>, vector<64x256xbf16>
    %cst_14 = arith.constant dense<0.000000e+00> : vector<8x256xf32>
    %13 = tpu.matmul %11, %12, %cst_14 {dimension_numbers = #tpu.dot_dimension_numbers<[1], [0], [0], [1], [0, 0, 1, 1], [], []>} : vector<8x64xbf16>, vector<64x256xbf16>, vector<8x256xf32> -> vector<8x256xf32>
    %14 = arith.addf %6, %13 : vector<8x256xf32>
    %c0_15 = arith.constant 0 : index
    %c0_16 = arith.constant 0 : index
    %15 = vector.load %arg12[%c0_15, %c0_16] : memref<8x24xbf16, #tpu.memory_space<vmem>>, vector<8x24xbf16>
    %c0_17 = arith.constant 0 : index
    %c0_18 = arith.constant 0 : index
    %c0_19 = arith.constant 0 : index
    %16 = vector.load %arg3[%c0_17, %c0_18, %c0_19] : memref<1x24x16xbf16, #tpu.memory_space<vmem>>, vector<1x24x16xbf16>
    %17 = vector.shape_cast %16 : vector<1x24x16xbf16> to vector<24x16xbf16>
    %cst_20 = arith.constant dense<0.000000e+00> : vector<8x16xf32>
    %18 = tpu.matmul %15, %17, %cst_20 {dimension_numbers = #tpu.dot_dimension_numbers<[1], [0], [0], [1], [0, 0, 1, 1], [], []>} : vector<8x24xbf16>, vector<24x16xbf16>, vector<8x16xf32> -> vector<8x16xf32>
    %19 = arith.truncf %18 : vector<8x16xf32> to vector<8x16xbf16>
    %c0_21 = arith.constant 0 : index
    %c0_22 = arith.constant 0 : index
    %20 = vector.load %arg6[%c0_21, %c0_22] : memref<16x256xbf16, #tpu.memory_space<vmem>>, vector<16x256xbf16>
    %cst_23 = arith.constant dense<0.000000e+00> : vector<8x256xf32>
    %21 = tpu.matmul %19, %20, %cst_23 {dimension_numbers = #tpu.dot_dimension_numbers<[1], [0], [0], [1], [0, 0, 1, 1], [], []>} : vector<8x16xbf16>, vector<16x256xbf16>, vector<8x256xf32> -> vector<8x256xf32>
    %22 = arith.addf %14, %21 : vector<8x256xf32>
    %c0_24 = arith.constant 0 : index
    %c0_25 = arith.constant 0 : index
    %23 = vector.load %arg13[%c0_24, %c0_25] : memref<8x32xbf16, #tpu.memory_space<vmem>>, vector<8x32xbf16>
    %c0_26 = arith.constant 0 : index
    %c0_27 = arith.constant 0 : index
    %c0_28 = arith.constant 0 : index
    %24 = vector.load %arg4[%c0_26, %c0_27, %c0_28] : memref<1x32x4xbf16, #tpu.memory_space<vmem>>, vector<1x32x4xbf16>
    %25 = vector.shape_cast %24 : vector<1x32x4xbf16> to vector<32x4xbf16>
    %cst_29 = arith.constant dense<0.000000e+00> : vector<8x4xf32>
    %26 = tpu.matmul %23, %25, %cst_29 {dimension_numbers = #tpu.dot_dimension_numbers<[1], [0], [0], [1], [0, 0, 1, 1], [], []>} : vector<8x32xbf16>, vector<32x4xbf16>, vector<8x4xf32> -> vector<8x4xf32>
    %27 = arith.truncf %26 : vector<8x4xf32> to vector<8x4xbf16>
    %c0_30 = arith.constant 0 : index
    %c0_31 = arith.constant 0 : index
    %28 = vector.load %arg7[%c0_30, %c0_31] : memref<4x256xbf16, #tpu.memory_space<vmem>>, vector<4x256xbf16>
    %cst_32 = arith.constant dense<0.000000e+00> : vector<8x256xf32>
    %29 = tpu.matmul %27, %28, %cst_32 {dimension_numbers = #tpu.dot_dimension_numbers<[1], [0], [0], [1], [0, 0, 1, 1], [], []>} : vector<8x4xbf16>, vector<4x256xbf16>, vector<8x256xf32> -> vector<8x256xf32>
    %30 = arith.addf %22, %29 : vector<8x256xf32>
    %31 = vector.extract_strided_slice %30 {offsets = [0, 239], sizes = [8, 17], strides = [1, 1]} : vector<8x256xf32> to vector<8x17xf32>
    %32 = vector.extract_strided_slice %30 {offsets = [0, 0], sizes = [8, 239], strides = [1, 1]} : vector<8x256xf32> to vector<8x239xf32>
    %33 = tpu.concatenate %31, %32 in 1 : vector<8x17xf32>, vector<8x239xf32> -> vector<8x256xf32>
    %c0_33 = arith.constant 0 : index
    %c0_34 = arith.constant 0 : index
    %c0_35 = arith.constant 0 : index
    %34 = vector.load %arg8[%c0_33, %c0_34, %c0_35] : memref<9x1x256xf32, #tpu.memory_space<vmem>>, vector<1x1x256xf32>
    %35 = vector.shape_cast %34 : vector<1x1x256xf32> to vector<1x256xf32>
    %36 = vector.broadcast %35 : vector<1x256xf32> to vector<8x256xf32>
    %37 = arith.mulf %33, %36 : vector<8x256xf32>
    %38 = vector.extract_strided_slice %30 {offsets = [0, 240], sizes = [8, 16], strides = [1, 1]} : vector<8x256xf32> to vector<8x16xf32>
    %39 = vector.extract_strided_slice %30 {offsets = [0, 0], sizes = [8, 240], strides = [1, 1]} : vector<8x256xf32> to vector<8x240xf32>
    %40 = tpu.concatenate %38, %39 in 1 : vector<8x16xf32>, vector<8x240xf32> -> vector<8x256xf32>
    %c1 = arith.constant 1 : index
    %c0_36 = arith.constant 0 : index
    %c0_37 = arith.constant 0 : index
    %41 = vector.load %arg8[%c1, %c0_36, %c0_37] : memref<9x1x256xf32, #tpu.memory_space<vmem>>, vector<1x1x256xf32>
    %42 = vector.shape_cast %41 : vector<1x1x256xf32> to vector<1x256xf32>
    %43 = vector.broadcast %42 : vector<1x256xf32> to vector<8x256xf32>
    %44 = arith.mulf %40, %43 : vector<8x256xf32>
    %45 = vector.extract_strided_slice %30 {offsets = [0, 241], sizes = [8, 15], strides = [1, 1]} : vector<8x256xf32> to vector<8x15xf32>
    %46 = vector.extract_strided_slice %30 {offsets = [0, 0], sizes = [8, 241], strides = [1, 1]} : vector<8x256xf32> to vector<8x241xf32>
    %47 = tpu.concatenate %45, %46 in 1 : vector<8x15xf32>, vector<8x241xf32> -> vector<8x256xf32>
    %c2 = arith.constant 2 : index
    %c0_38 = arith.constant 0 : index
    %c0_39 = arith.constant 0 : index
    %48 = vector.load %arg8[%c2, %c0_38, %c0_39] : memref<9x1x256xf32, #tpu.memory_space<vmem>>, vector<1x1x256xf32>
    %49 = vector.shape_cast %48 : vector<1x1x256xf32> to vector<1x256xf32>
    %50 = vector.broadcast %49 : vector<1x256xf32> to vector<8x256xf32>
    %51 = arith.mulf %47, %50 : vector<8x256xf32>
    %52 = vector.extract_strided_slice %30 {offsets = [0, 255], sizes = [8, 1], strides = [1, 1]} : vector<8x256xf32> to vector<8x1xf32>
    %53 = vector.extract_strided_slice %30 {offsets = [0, 0], sizes = [8, 255], strides = [1, 1]} : vector<8x256xf32> to vector<8x255xf32>
    %54 = tpu.concatenate %52, %53 in 1 : vector<8x1xf32>, vector<8x255xf32> -> vector<8x256xf32>
    %c3 = arith.constant 3 : index
    %c0_40 = arith.constant 0 : index
    %c0_41 = arith.constant 0 : index
    %55 = vector.load %arg8[%c3, %c0_40, %c0_41] : memref<9x1x256xf32, #tpu.memory_space<vmem>>, vector<1x1x256xf32>
    %56 = vector.shape_cast %55 : vector<1x1x256xf32> to vector<1x256xf32>
    %57 = vector.broadcast %56 : vector<1x256xf32> to vector<8x256xf32>
    %58 = arith.mulf %54, %57 : vector<8x256xf32>
    %c4 = arith.constant 4 : index
    %c0_42 = arith.constant 0 : index
    %c0_43 = arith.constant 0 : index
    %59 = vector.load %arg8[%c4, %c0_42, %c0_43] : memref<9x1x256xf32, #tpu.memory_space<vmem>>, vector<1x1x256xf32>
    %60 = vector.shape_cast %59 : vector<1x1x256xf32> to vector<1x256xf32>
    %61 = vector.broadcast %60 : vector<1x256xf32> to vector<8x256xf32>
    %62 = arith.mulf %30, %61 : vector<8x256xf32>
    %63 = vector.extract_strided_slice %30 {offsets = [0, 1], sizes = [8, 255], strides = [1, 1]} : vector<8x256xf32> to vector<8x255xf32>
    %64 = vector.extract_strided_slice %30 {offsets = [0, 0], sizes = [8, 1], strides = [1, 1]} : vector<8x256xf32> to vector<8x1xf32>
    %65 = tpu.concatenate %63, %64 in 1 : vector<8x255xf32>, vector<8x1xf32> -> vector<8x256xf32>
    %c5 = arith.constant 5 : index
    %c0_44 = arith.constant 0 : index
    %c0_45 = arith.constant 0 : index
    %66 = vector.load %arg8[%c5, %c0_44, %c0_45] : memref<9x1x256xf32, #tpu.memory_space<vmem>>, vector<1x1x256xf32>
    %67 = vector.shape_cast %66 : vector<1x1x256xf32> to vector<1x256xf32>
    %68 = vector.broadcast %67 : vector<1x256xf32> to vector<8x256xf32>
    %69 = arith.mulf %65, %68 : vector<8x256xf32>
    %70 = vector.extract_strided_slice %30 {offsets = [0, 15], sizes = [8, 241], strides = [1, 1]} : vector<8x256xf32> to vector<8x241xf32>
    %71 = vector.extract_strided_slice %30 {offsets = [0, 0], sizes = [8, 15], strides = [1, 1]} : vector<8x256xf32> to vector<8x15xf32>
    %72 = tpu.concatenate %70, %71 in 1 : vector<8x241xf32>, vector<8x15xf32> -> vector<8x256xf32>
    %c6 = arith.constant 6 : index
    %c0_46 = arith.constant 0 : index
    %c0_47 = arith.constant 0 : index
    %73 = vector.load %arg8[%c6, %c0_46, %c0_47] : memref<9x1x256xf32, #tpu.memory_space<vmem>>, vector<1x1x256xf32>
    %74 = vector.shape_cast %73 : vector<1x1x256xf32> to vector<1x256xf32>
    %75 = vector.broadcast %74 : vector<1x256xf32> to vector<8x256xf32>
    %76 = arith.mulf %72, %75 : vector<8x256xf32>
    %77 = vector.extract_strided_slice %30 {offsets = [0, 16], sizes = [8, 240], strides = [1, 1]} : vector<8x256xf32> to vector<8x240xf32>
    %78 = vector.extract_strided_slice %30 {offsets = [0, 0], sizes = [8, 16], strides = [1, 1]} : vector<8x256xf32> to vector<8x16xf32>
    %79 = tpu.concatenate %77, %78 in 1 : vector<8x240xf32>, vector<8x16xf32> -> vector<8x256xf32>
    %c7 = arith.constant 7 : index
    %c0_48 = arith.constant 0 : index
    %c0_49 = arith.constant 0 : index
    %80 = vector.load %arg8[%c7, %c0_48, %c0_49] : memref<9x1x256xf32, #tpu.memory_space<vmem>>, vector<1x1x256xf32>
    %81 = vector.shape_cast %80 : vector<1x1x256xf32> to vector<1x256xf32>
    %82 = vector.broadcast %81 : vector<1x256xf32> to vector<8x256xf32>
    %83 = arith.mulf %79, %82 : vector<8x256xf32>
    %84 = vector.extract_strided_slice %30 {offsets = [0, 17], sizes = [8, 239], strides = [1, 1]} : vector<8x256xf32> to vector<8x239xf32>
    %85 = vector.extract_strided_slice %30 {offsets = [0, 0], sizes = [8, 17], strides = [1, 1]} : vector<8x256xf32> to vector<8x17xf32>
    %86 = tpu.concatenate %84, %85 in 1 : vector<8x239xf32>, vector<8x17xf32> -> vector<8x256xf32>
    %c8 = arith.constant 8 : index
    %c0_50 = arith.constant 0 : index
    %c0_51 = arith.constant 0 : index
    %87 = vector.load %arg8[%c8, %c0_50, %c0_51] : memref<9x1x256xf32, #tpu.memory_space<vmem>>, vector<1x1x256xf32>
    %88 = vector.shape_cast %87 : vector<1x1x256xf32> to vector<1x256xf32>
    %89 = vector.broadcast %88 : vector<1x256xf32> to vector<8x256xf32>
    %90 = arith.mulf %86, %89 : vector<8x256xf32>
    %91 = tpu.concatenate %37, %44, %51, %58, %62, %69, %76, %83, %90 in 0 : vector<8x256xf32>, vector<8x256xf32>, vector<8x256xf32>, vector<8x256xf32>, vector<8x256xf32>, vector<8x256xf32>, vector<8x256xf32>, vector<8x256xf32>, vector<8x256xf32> -> vector<72x256xf32>
    %92 = arith.truncf %91 : vector<72x256xf32> to vector<72x256xbf16>
    %c0_52 = arith.constant 0 : index
    %c0_53 = arith.constant 0 : index
    %93 = vector.load %arg16[%c0_52, %c0_53] : memref<8x1xf32, #tpu.memory_space<vmem>>, vector<8x1xf32>
    %c0_54 = arith.constant 0 : index
    %c0_55 = arith.constant 0 : index
    %94 = vector.load %arg15[%c0_54, %c0_55] : memref<8x72xbf16, #tpu.memory_space<vmem>>, vector<8x72xbf16>
    %cst_56 = arith.constant dense<0.000000e+00> : vector<8x256xf32>
    %95 = tpu.matmul %94, %92, %cst_56 {dimension_numbers = #tpu.dot_dimension_numbers<[1], [0], [0], [1], [0, 0, 1, 1], [], []>} : vector<8x72xbf16>, vector<72x256xbf16>, vector<8x256xf32> -> vector<8x256xf32>
    %96 = vector.broadcast %93 : vector<8x1xf32> to vector<8x256xf32>
    %97 = arith.addf %96, %95 : vector<8x256xf32>
    %cst_57 = arith.constant 5.000000e-01 : f32
    %98 = vector.broadcast %cst_57 : f32 to vector<8x256xf32>
    %99 = arith.mulf %98, %97 : vector<8x256xf32>
    %cst_58 = arith.constant 0.707106769 : f32
    %100 = vector.broadcast %cst_58 : f32 to vector<8x256xf32>
    %101 = arith.mulf %97, %100 : vector<8x256xf32>
    %102 = math.absf %101 : vector<8x256xf32>
    %cst_59 = arith.constant 0.327591091 : f32
    %103 = vector.broadcast %cst_59 : f32 to vector<8x256xf32>
    %104 = arith.mulf %103, %102 : vector<8x256xf32>
    %cst_60 = arith.constant 1.000000e+00 : f32
    %105 = vector.broadcast %cst_60 : f32 to vector<8x256xf32>
    %106 = arith.addf %105, %104 : vector<8x256xf32>
    %107 = tpu.reciprocal %106 {approx = true} : vector<8x256xf32> -> vector<8x256xf32>
    %cst_61 = arith.constant 1.06140542 : f32
    %108 = vector.broadcast %cst_61 : f32 to vector<8x256xf32>
    %109 = arith.mulf %108, %107 : vector<8x256xf32>
    %cst_62 = arith.constant -1.45315206 : f32
    %110 = vector.broadcast %cst_62 : f32 to vector<8x256xf32>
    %111 = arith.addf %109, %110 : vector<8x256xf32>
    %112 = arith.mulf %111, %107 : vector<8x256xf32>
    %cst_63 = arith.constant 1.42141378 : f32
    %113 = vector.broadcast %cst_63 : f32 to vector<8x256xf32>
    %114 = arith.addf %112, %113 : vector<8x256xf32>
    %115 = arith.mulf %114, %107 : vector<8x256xf32>
    %cst_64 = arith.constant -0.284496725 : f32
    %116 = vector.broadcast %cst_64 : f32 to vector<8x256xf32>
    %117 = arith.addf %115, %116 : vector<8x256xf32>
    %118 = arith.mulf %117, %107 : vector<8x256xf32>
    %cst_65 = arith.constant 0.254829586 : f32
    %119 = vector.broadcast %cst_65 : f32 to vector<8x256xf32>
    %120 = arith.addf %118, %119 : vector<8x256xf32>
    %121 = arith.mulf %120, %107 : vector<8x256xf32>
    %cst_66 = arith.constant 0.000000e+00 : f32
    %122 = vector.broadcast %cst_66 : f32 to vector<8x256xf32>
    %123 = arith.subf %122, %102 : vector<8x256xf32>
    %124 = arith.mulf %123, %102 : vector<8x256xf32>
    %125 = math.exp %124 : vector<8x256xf32>
    %126 = arith.mulf %121, %125 : vector<8x256xf32>
    %cst_67 = arith.constant 1.000000e+00 : f32
    %127 = vector.broadcast %cst_67 : f32 to vector<8x256xf32>
    %128 = arith.subf %127, %126 : vector<8x256xf32>
    %cst_68 = arith.constant 0.000000e+00 : f32
    %129 = vector.broadcast %cst_68 : f32 to vector<8x256xf32>
    %130 = arith.cmpf olt, %101, %129 : vector<8x256xf32>
    %cst_69 = arith.constant 0.000000e+00 : f32
    %131 = vector.broadcast %cst_69 : f32 to vector<8x256xf32>
    %132 = arith.subf %131, %128 : vector<8x256xf32>
    %133 = arith.select %130, %132, %128 : vector<8x256xi1>, vector<8x256xf32>
    %cst_70 = arith.constant 1.000000e+00 : f32
    %134 = vector.broadcast %cst_70 : f32 to vector<8x256xf32>
    %135 = arith.addf %134, %133 : vector<8x256xf32>
    %136 = arith.mulf %99, %135 : vector<8x256xf32>
    %c0_71 = arith.constant 0 : index
    %c0_72 = arith.constant 0 : index
    %137 = vector.load %arg18[%c0_71, %c0_72] : memref<3x1xf32, #tpu.memory_space<vmem>>, vector<3x1xf32>
    %c0_73 = arith.constant 0 : index
    %c0_74 = arith.constant 0 : index
    %138 = vector.load %arg17[%c0_73, %c0_74] : memref<3x8xbf16, #tpu.memory_space<vmem>>, vector<3x8xbf16>
    %139 = arith.truncf %136 : vector<8x256xf32> to vector<8x256xbf16>
    %cst_75 = arith.constant dense<0.000000e+00> : vector<3x256xf32>
    %140 = tpu.matmul %138, %139, %cst_75 {dimension_numbers = #tpu.dot_dimension_numbers<[1], [0], [0], [1], [0, 0, 1, 1], [], []>} : vector<3x8xbf16>, vector<8x256xbf16>, vector<3x256xf32> -> vector<3x256xf32>
    %141 = vector.broadcast %137 : vector<3x1xf32> to vector<3x256xf32>
    %142 = arith.addf %141, %140 : vector<3x256xf32>
    %143 = arith.truncf %142 : vector<3x256xf32> to vector<3x256xbf16>
    %c0_76 = arith.constant 0 : index
    %c0_77 = arith.constant 0 : index
    %144 = vector.load %arg9[%c0_76, %c0_77] : memref<256x4096xbf16, #tpu.memory_space<vmem>>, vector<256x4096xbf16>
    %cst_78 = arith.constant dense<0.000000e+00> : vector<3x4096xf32>
    %145 = tpu.matmul %143, %144, %cst_78 {dimension_numbers = #tpu.dot_dimension_numbers<[1], [0], [0], [1], [0, 0, 1, 1], [], []>} : vector<3x256xbf16>, vector<256x4096xbf16>, vector<3x4096xf32> -> vector<3x4096xf32>
    %c0_79 = arith.constant 0 : index
    %c0_80 = arith.constant 0 : index
    %c0_81 = arith.constant 0 : index
    %146 = vector.load %arg19[%c0_79, %c0_80, %c0_81] : memref<1x3x4096xf32, #tpu.memory_space<vmem>>, vector<1x3x4096xf32>
    %147 = vector.shape_cast %146 : vector<1x3x4096xf32> to vector<3x4096xf32>
    %148 = vector.shape_cast %145 : vector<3x4096xf32> to vector<1x3x4096xf32>
    tpu.vector_store %arg19[%c0_79, %c0_80, %c0_81], %148 {strides = array<i32>} : memref<1x3x4096xf32, #tpu.memory_space<vmem>>, vector<1x3x4096xf32>,
    return
  }
  func.func @transform_0(%arg0: i32) -> (i32, i32, i32) {
    %c0_i32 = arith.constant 0 : i32
    %c0_i32_0 = arith.constant 0 : i32
    %c0_i32_1 = arith.constant 0 : i32
    return %arg0, %c0_i32, %c0_i32_0 : i32, i32, i32
  }
  func.func @transform_1(%arg0: i32) -> (i32, i32, i32) {
    %c0_i32 = arith.constant 0 : i32
    %c0_i32_0 = arith.constant 0 : i32
    %c0_i32_1 = arith.constant 0 : i32
    return %arg0, %c0_i32, %c0_i32_0 : i32, i32, i32
  }
  func.func @transform_2(%arg0: i32) -> (i32, i32, i32) {
    %c0_i32 = arith.constant 0 : i32
    %c0_i32_0 = arith.constant 0 : i32
    %c0_i32_1 = arith.constant 0 : i32
    return %arg0, %c0_i32, %c0_i32_0 : i32, i32, i32
  }
  func.func @transform_3(%arg0: i32) -> (i32, i32, i32) {
    %c0_i32 = arith.constant 0 : i32
    %c0_i32_0 = arith.constant 0 : i32
    %c0_i32_1 = arith.constant 0 : i32
    return %arg0, %c0_i32, %c0_i32_0 : i32, i32, i32
  }
  func.func @transform_4(%arg0: i32) -> (i32, i32) {
    %c0_i32 = arith.constant 0 : i32
    %c0_i32_0 = arith.constant 0 : i32
    %c0_i32_1 = arith.constant 0 : i32
    return %c0_i32, %c0_i32_0 : i32, i32
  }
  func.func @transform_5(%arg0: i32) -> (i32, i32) {
    %c0_i32 = arith.constant 0 : i32
    %c0_i32_0 = arith.constant 0 : i32
    %c0_i32_1 = arith.constant 0 : i32
    return %c0_i32, %c0_i32_0 : i32, i32
  }
  func.func @transform_6(%arg0: i32) -> (i32, i32) {
    %c0_i32 = arith.constant 0 : i32
    %c0_i32_0 = arith.constant 0 : i32
    %c0_i32_1 = arith.constant 0 : i32
    return %c0_i32, %c0_i32_0 : i32, i32
  }
  func.func @transform_7(%arg0: i32) -> (i32, i32, i32) {
    %c0_i32 = arith.constant 0 : i32
    %c0_i32_0 = arith.constant 0 : i32
    %c0_i32_1 = arith.constant 0 : i32
    %c0_i32_2 = arith.constant 0 : i32
    return %c0_i32, %c0_i32_0, %c0_i32_1 : i32, i32, i32
  }
  func.func @transform_8(%arg0: i32) -> (i32, i32) {
    %c0_i32 = arith.constant 0 : i32
    %c0_i32_0 = arith.constant 0 : i32
    %c0_i32_1 = arith.constant 0 : i32
    return %c0_i32, %c0_i32_0 : i32, i32
  }
  func.func @transform_9(%arg0: i32) -> (i32, i32) {
    %c0_i32 = arith.constant 0 : i32
    %c0_i32_0 = arith.constant 0 : i32
    %c0_i32_1 = arith.constant 0 : i32
    return %c0_i32, %c0_i32_0 : i32, i32
  }
  func.func @transform_10(%arg0: i32) -> (i32, i32) {
    %c0_i32 = arith.constant 0 : i32
    %c0_i32_0 = arith.constant 0 : i32
    %c0_i32_1 = arith.constant 0 : i32
    return %c0_i32, %c0_i32_0 : i32, i32
  }
  func.func @transform_11(%arg0: i32) -> (i32, i32) {
    %c0_i32 = arith.constant 0 : i32
    %c0_i32_0 = arith.constant 0 : i32
    %c0_i32_1 = arith.constant 0 : i32
    return %c0_i32, %c0_i32_0 : i32, i32
  }
  func.func @transform_12(%arg0: i32) -> (i32, i32) {
    %c0_i32 = arith.constant 0 : i32
    %c0_i32_0 = arith.constant 0 : i32
    %c0_i32_1 = arith.constant 0 : i32
    return %c0_i32, %c0_i32_0 : i32, i32
  }
  func.func @transform_13(%arg0: i32) -> (i32, i32) {
    %c0_i32 = arith.constant 0 : i32
    %c0_i32_0 = arith.constant 0 : i32
    %c0_i32_1 = arith.constant 0 : i32
    return %c0_i32, %c0_i32_0 : i32, i32
  }
  func.func @transform_14(%arg0: i32) -> (i32, i32) {
    %c0_i32 = arith.constant 0 : i32
    %c0_i32_0 = arith.constant 0 : i32
    %c0_i32_1 = arith.constant 0 : i32
    return %c0_i32, %c0_i32_0 : i32, i32
  }
  func.func @transform_15(%arg0: i32) -> (i32, i32) {
    %c0_i32 = arith.constant 0 : i32
    %c0_i32_0 = arith.constant 0 : i32
    %c0_i32_1 = arith.constant 0 : i32
    return %c0_i32, %c0_i32_0 : i32, i32
  }
  func.func @transform_16(%arg0: i32) -> (i32, i32) {
    %c0_i32 = arith.constant 0 : i32
    %c0_i32_0 = arith.constant 0 : i32
    %c0_i32_1 = arith.constant 0 : i32
    return %c0_i32, %c0_i32_0 : i32, i32
  }
  func.func @transform_17(%arg0: i32) -> (i32, i32) {
    %c0_i32 = arith.constant 0 : i32
    %c0_i32_0 = arith.constant 0 : i32
    %c0_i32_1 = arith.constant 0 : i32
    return %c0_i32, %c0_i32_0 : i32, i32
  }
  func.func @transform_18(%arg0: i32) -> (i32, i32, i32) {
    %c0_i32 = arith.constant 0 : i32
    %c0_i32_0 = arith.constant 0 : i32
    %c0_i32_1 = arith.constant 0 : i32
    return %arg0, %c0_i32, %c0_i32_0 : i32, i32, i32
  }
}

</mosaic_0001>

<llo_original>
// kernel: tpu_custom_call.1
$region0: #{tpu_custom_call.1}
  #allocation0 [shape = 'u32[]', space=smem, size = 0x4, offset = 0x4, fixed_abs, tag = 'smem constant byte address 0x4 - core index']
  #allocation1 [shape = 'u32[144,128]{1,0:T(1,128)}', space=vmem, size = 0x12000, scoped, tag = 'internal scratch']
  %s0 = inlined_call_operand.hbm [shape: f32[8,128], index: 0, kind: input, shape index: {}]
  %s1 = inlined_call_operand.hbm [shape: f32[8,128], index: 1, kind: output, shape index: {}]
  %s2 = sld [smem:[#allocation0]]
  $region18: #{tpu_custom_call.1} parent=0
    _
  %s4 = ssub.s32 1, %s2
  %s5 = scalar_select 0, %s4, %s2
  $region1: #{tpu_custom_call.1} parent=0
    #allocation2 [shape = 'u8[4096]{0}', space=vmem, size = 0x1000, scoped, tag = 'input window, operand 0, single buffered']
    #allocation3 [shape = 's32[1]{0}', space=sflag, size = 0x4, scoped, tag = 'scoped memory for tpu_custom_call.1']
    #allocation4 [shape = 's32[1]{0}', space=sflag, size = 0x4, scoped, tag = 'scoped memory for tpu_custom_call.1']
    #allocation5 [shape = 'u8[4096]{0}', space=vmem, size = 0x1000, scoped, tag = 'output window, operand 0, single buffered']
    %6 = vsyncpa [#allocation3], 0
    %7 = vsyncpa [#allocation4], 0
    // Predicated region
    $region2: #{tpu_custom_call.1} parent=1 // pred_check
      _
    $region3: #{tpu_custom_call.1} parent=1 // pred_check_branch
      %9 = sbr.rel (0) target = $region5
    $region4: #{tpu_custom_call.1} parent=1 // pred_region
      %s11 = ssub.s32 128, 128
      %12 = vsyncadd [#allocation3], %s11
      %s14 = sshll.u32 [#allocation2], 4
      %s15 = int_to_ptr.vmem [resolvable:$true] %s14
      %17 = dma.hbm_to_vmem [thread:$0]  %s0, 128, %s15, [#allocation3]
    $region5: #{tpu_custom_call.1} parent=1 // pred_fallthru
      _
    // Predicated region
    $region6: #{tpu_custom_call.1} parent=1 // pred_check
      _
    $region7: #{tpu_custom_call.1} parent=1 // pred_check_branch
      %19 = sbr.rel (0) target = $region9
    $region8: #{tpu_custom_call.1} parent=1 // pred_region
      %20 = dma.done [#allocation3], 128
    $region9: #{tpu_custom_call.1} parent=1 // pred_fallthru
      _
    %v21 = vld [vmem:[#allocation2] sm:$0xff]
    %22 = vrot.lane.b32.xlu0 %v21, 1
    %v23 = vpop.permute.xlu0 %22
    %24 = vst [vmem:[#allocation5] sm:$0xff] %v23
    // Predicated region
    $region10: #{tpu_custom_call.1} parent=1 // pred_check
      _
    $region11: #{tpu_custom_call.1} parent=1 // pred_check_branch
      %26 = sbr.rel (0) target = $region13
    $region12: #{tpu_custom_call.1} parent=1 // pred_region
      %s28 = ssub.s32 128, 128
      %29 = vsyncadd [#allocation4], %s28
      %s31 = sshll.u32 [#allocation5], 4
      %s32 = int_to_ptr.vmem [resolvable:$true] %s31
      %34 = dma.vmem_to_hbm [thread:$0]  %s32, 128, %s1, [#allocation4]
    $region13: #{tpu_custom_call.1} parent=1 // pred_fallthru
      _
    // Predicated region
    $region14: #{tpu_custom_call.1} parent=1 // pred_check
      _
    $region15: #{tpu_custom_call.1} parent=1 // pred_check_branch
      %36 = sbr.rel (0) target = $region17
    $region16: #{tpu_custom_call.1} parent=1 // pred_region
      %37 = dma.done [#allocation4], 128
    $region17: #{tpu_custom_call.1} parent=1 // pred_fallthru
      _
    %38 = vsyncpa [#allocation3], 1
    %39 = vsyncpa [#allocation4], 1

// kernel: roweeder_flat_forward.1
$region0: #{roweeder_flat_forward.1}
  #allocation0 [shape = 'u32[]', space=smem, size = 0x4, offset = 0x4, fixed_abs, tag = 'smem constant byte address 0x4 - core index']
  #allocation1 [shape = 'u32[144,128]{1,0:T(1,128)}', space=vmem, size = 0x12000, scoped, tag = 'internal scratch']
  %s0 = inlined_call_operand.vmem [shape: bf16[2,8,256], index: 0, kind: input, shape index: {}]
  %s1 = inlined_call_operand.vmem [shape: bf16[2,16,64], index: 1, kind: input, shape index: {}]
  %s2 = inlined_call_operand.vmem [shape: bf16[2,24,16], index: 2, kind: input, shape index: {}]
  %s3 = inlined_call_operand.vmem [shape: bf16[2,32,4], index: 3, kind: input, shape index: {}]
  %s4 = inlined_call_operand.vmem [shape: bf16[64,256], index: 4, kind: input, shape index: {}]
  %s5 = inlined_call_operand.vmem [shape: bf16[16,256], index: 5, kind: input, shape index: {}]
  %s6 = inlined_call_operand.vmem [shape: bf16[4,256], index: 6, kind: input, shape index: {}]
  %s7 = inlined_call_operand.vmem [shape: f32[9,1,256], index: 7, kind: input, shape index: {}]
  %s8 = inlined_call_operand.vmem [shape: bf16[256,4096], index: 8, kind: input, shape index: {}]
  %s9 = inlined_call_operand.vmem [shape: bf16[8,8], index: 9, kind: input, shape index: {}]
  %s10 = inlined_call_operand.vmem [shape: bf16[8,16], index: 10, kind: input, shape index: {}]
  %s11 = inlined_call_operand.vmem [shape: bf16[8,24], index: 11, kind: input, shape index: {}]
  %s12 = inlined_call_operand.vmem [shape: bf16[8,32], index: 12, kind: input, shape index: {}]
  %s13 = inlined_call_operand.vmem [shape: f32[8,1], index: 13, kind: input, shape index: {}]
  %s14 = inlined_call_operand.vmem [shape: bf16[8,72], index: 14, kind: input, shape index: {}]
  %s15 = inlined_call_operand.vmem [shape: f32[8,1], index: 15, kind: input, shape index: {}]
  %s16 = inlined_call_operand.vmem [shape: bf16[3,8], index: 16, kind: input, shape index: {}]
  %s17 = inlined_call_operand.vmem [shape: f32[3,1], index: 17, kind: input, shape index: {}]
  %s18 = inlined_call_operand.vmem [shape: f32[2,3,4096], index: 18, kind: output, shape index: {}]
  %s19 = sld [smem:[#allocation0]]
  $region105: #{roweeder_flat_forward.1} parent=0
    _
  %s21 = ssub.s32 1, %s19
  %s22 = scalar_select 0, %s21, %s19
  loop: start=0, step=1, limit=4
  $region2: #{roweeder_flat_forward.1} parent=0 // loop_pre_header
    _
  $region3: #{roweeder_flat_forward.1} parent=0 // loop_header
    %s24 = sphi 0, %s28
    %p25 = scmp.ge.s32.totalorder %s24, 4
    %s34 = sphi 0, %s36
    %s37 = sphi 0, %s34
    %s38 = sphi 0, %s37
    %s54 = sphi 0, %s38
    %s60 = sphi 0, %s62
    %s63 = sphi 0, %s60
    %s64 = sphi 0, %s63
    %s80 = sphi 0, %s64
    %s86 = sphi 0, %s88
    %s89 = sphi 0, %s86
    %s90 = sphi 0, %s89
    %s106 = sphi 0, %s90
    %s112 = sphi 0, %s114
    %s115 = sphi 0, %s112
    %s116 = sphi 0, %s115
    %s132 = sphi 0, %s116
    %s136 = sphi 0, %s136
    %s138 = sphi 0, %s136
    %s139 = sphi 0, %s138
    %s153 = sphi 0, %s139
    %s157 = sphi 0, %s157
    %s159 = sphi 0, %s157
    %s160 = sphi 0, %s159
    %s174 = sphi 0, %s160
    %s178 = sphi 0, %s178
    %s180 = sphi 0, %s178
    %s181 = sphi 0, %s180
    %s195 = sphi 0, %s181
    %s199 = sphi 0, %s199
    %s201 = sphi 0, %s199
    %s202 = sphi 0, %s201
    %s216 = sphi 0, %s202
    %s220 = sphi 0, %s220
    %s222 = sphi 0, %s220
    %s223 = sphi 0, %s222
    %s237 = sphi 0, %s223
    %s241 = sphi 0, %s241
    %s243 = sphi 0, %s241
    %s244 = sphi 0, %s243
    %s258 = sphi 0, %s244
    %s262 = sphi 0, %s262
    %s264 = sphi 0, %s262
    %s265 = sphi 0, %s264
    %s279 = sphi 0, %s265
    %s283 = sphi 0, %s283
    %s285 = sphi 0, %s283
    %s286 = sphi 0, %s285
    %s300 = sphi 0, %s286
    %s304 = sphi 0, %s304
    %s306 = sphi 0, %s304
    %s307 = sphi 0, %s306
    %s321 = sphi 0, %s307
    %s325 = sphi 0, %s325
    %s327 = sphi 0, %s325
    %s328 = sphi 0, %s327
    %s342 = sphi 0, %s328
    %s346 = sphi 0, %s346
    %s348 = sphi 0, %s346
    %s349 = sphi 0, %s348
    %s363 = sphi 0, %s349
    %s367 = sphi 0, %s367
    %s369 = sphi 0, %s367
    %s370 = sphi 0, %s369
    %s384 = sphi 0, %s370
    %s388 = sphi 0, %s388
    %s390 = sphi 0, %s388
    %s391 = sphi 0, %s390
    %s405 = sphi 0, %s391
    %s409 = sphi 0, %s409
    %s411 = sphi 0, %s409
    %s412 = sphi 0, %s411
    %s426 = sphi 0, %s412
    %s432 = sphi 0, %s434
    %s435 = sphi 0, %s432
    %s436 = sphi 0, %s435
    %s452 = sphi 0, %s436
  $region4: #{roweeder_flat_forward.1} parent=0 // loop_header_branch
    %27 = sbr.rel (%p25) target = $region8
  $region5: #{roweeder_flat_forward.1} parent=0 // loop_body
    %s29 = ssub.s32 %s24, 1
    %s30 = ssub.s32 %s24, 2
    %s31 = sadd.s32 %s24, 1
    %s32 = ssub.s32 %s24, %s31
    %p33 = scmp.eq.s32.totalorder %s32, 0
    %s35 = sadd.s32 %s34, 1
    %s36 = scalar_select %p33, %s34, %s35
    %p39 = pneg %p33
    %p40 = scmp.eq.s32.totalorder %s24, 1
    %p41 = por %p39, %p40
    %p42 = scmp.ne.s32.totalorder %s34, %s37
    %p43 = scmp.eq.s32.totalorder %s24, 0
    %p44 = por %p42, %p43
    %p45 = scmp.ne.s32.totalorder %s34, %s37
    %p46 = scmp.eq.s32.totalorder %s29, 1
    %p47 = por %p45, %p46
    %p48 = scmp.ne.s32.totalorder %s37, %s38
    %p49 = scmp.eq.s32.totalorder %s29, 0
    %p50 = por %p48, %p49
    %p51 = scmp.ne.s32.totalorder %s37, %s38
    %p52 = scmp.eq.s32.totalorder %s30, 1
    %p53 = por %p51, %p52
    %p55 = scmp.ne.s32.totalorder %s38, %s54
    %p56 = scmp.eq.s32.totalorder %s30, 0
    %p57 = por %p55, %p56
    %s58 = ssub.s32 %s24, %s31
    %p59 = scmp.eq.s32.totalorder %s58, 0
    %s61 = sadd.s32 %s60, 1
    %s62 = scalar_select %p59, %s60, %s61
    %p65 = pneg %p59
    %p66 = scmp.eq.s32.totalorder %s24, 1
    %p67 = por %p65, %p66
    %p68 = scmp.ne.s32.totalorder %s60, %s63
    %p69 = scmp.eq.s32.totalorder %s24, 0
    %p70 = por %p68, %p69
    %p71 = scmp.ne.s32.totalorder %s60, %s63
    %p72 = scmp.eq.s32.totalorder %s29, 1
    %p73 = por %p71, %p72
    %p74 = scmp.ne.s32.totalorder %s63, %s64
    %p75 = scmp.eq.s32.totalorder %s29, 0
    %p76 = por %p74, %p75
    %p77 = scmp.ne.s32.totalorder %s63, %s64
    %p78 = scmp.eq.s32.totalorder %s30, 1
    %p79 = por %p77, %p78
    %p81 = scmp.ne.s32.totalorder %s64, %s80
    %p82 = scmp.eq.s32.totalorder %s30, 0
    %p83 = por %p81, %p82
    %s84 = ssub.s32 %s24, %s31
    %p85 = scmp.eq.s32.totalorder %s84, 0
    %s87 = sadd.s32 %s86, 1
    %s88 = scalar_select %p85, %s86, %s87
    %p91 = pneg %p85
    %p92 = scmp.eq.s32.totalorder %s24, 1
    %p93 = por %p91, %p92
    %p94 = scmp.ne.s32.totalorder %s86, %s89
    %p95 = scmp.eq.s32.totalorder %s24, 0
    %p96 = por %p94, %p95
    %p97 = scmp.ne.s32.totalorder %s86, %s89
    %p98 = scmp.eq.s32.totalorder %s29, 1
    %p99 = por %p97, %p98
    %p100 = scmp.ne.s32.totalorder %s89, %s90
    %p101 = scmp.eq.s32.totalorder %s29, 0
    %p102 = por %p100, %p101
    %p103 = scmp.ne.s32.totalorder %s89, %s90
    %p104 = scmp.eq.s32.totalorder %s30, 1
    %p105 = por %p103, %p104
    %p107 = scmp.ne.s32.totalorder %s90, %s106
    %p108 = scmp.eq.s32.totalorder %s30, 0
    %p109 = por %p107, %p108
    %s110 = ssub.s32 %s24, %s31
    %p111 = scmp.eq.s32.totalorder %s110, 0
    %s113 = sadd.s32 %s112, 1
    %s114 = scalar_select %p111, %s112, %s113
    %p117 = pneg %p111
    %p118 = scmp.eq.s32.totalorder %s24, 1
    %p119 = por %p117, %p118
    %p120 = scmp.ne.s32.totalorder %s112, %s115
    %p121 = scmp.eq.s32.totalorder %s24, 0
    %p122 = por %p120, %p121
    %p123 = scmp.ne.s32.totalorder %s112, %s115
    %p124 = scmp.eq.s32.totalorder %s29, 1
    %p125 = por %p123, %p124
    %p126 = scmp.ne.s32.totalorder %s115, %s116
    %p127 = scmp.eq.s32.totalorder %s29, 0
    %p128 = por %p126, %p127
    %p129 = scmp.ne.s32.totalorder %s115, %s116
    %p130 = scmp.eq.s32.totalorder %s30, 1
    %p131 = por %p129, %p130
    %p133 = scmp.ne.s32.totalorder %s116, %s132
    %p134 = scmp.eq.s32.totalorder %s30, 0
    %p135 = por %p133, %p134
    %s137 = sadd.s32 %s136, 1
    %p140 = scmp.eq.s32.totalorder %s24, 1
    %p141 = scmp.ne.s32.totalorder %s136, %s138
    %p142 = scmp.eq.s32.totalorder %s24, 0
    %p143 = por %p141, %p142
    %p144 = scmp.ne.s32.totalorder %s136, %s138
    %p145 = scmp.eq.s32.totalorder %s29, 1
    %p146 = por %p144, %p145
    %p147 = scmp.ne.s32.totalorder %s138, %s139
    %p148 = scmp.eq.s32.totalorder %s29, 0
    %p149 = por %p147, %p148
    %p150 = scmp.ne.s32.totalorder %s138, %s139
    %p151 = scmp.eq.s32.totalorder %s30, 1
    %p152 = por %p150, %p151
    %p154 = scmp.ne.s32.totalorder %s139, %s153
    %p155 = scmp.eq.s32.totalorder %s30, 0
    %p156 = por %p154, %p155
    %s158 = sadd.s32 %s157, 1
    %p161 = scmp.eq.s32.totalorder %s24, 1
    %p162 = scmp.ne.s32.totalorder %s157, %s159
    %p163 = scmp.eq.s32.totalorder %s24, 0
    %p164 = por %p162, %p163
    %p165 = scmp.ne.s32.totalorder %s157, %s159
    %p166 = scmp.eq.s32.totalorder %s29, 1
    %p167 = por %p165, %p166
    %p168 = scmp.ne.s32.totalorder %s159, %s160
    %p169 = scmp.eq.s32.totalorder %s29, 0
    %p170 = por %p168, %p169
    %p171 = scmp.ne.s32.totalorder %s159, %s160
    %p172 = scmp.eq.s32.totalorder %s30, 1
    %p173 = por %p171, %p172
    %p175 = scmp.ne.s32.totalorder %s160, %s174
    %p176 = scmp.eq.s32.totalorder %s30, 0
    %p177 = por %p175, %p176
    %s179 = sadd.s32 %s178, 1
    %p182 = scmp.eq.s32.totalorder %s24, 1
    %p183 = scmp.ne.s32.totalorder %s178, %s180
    %p184 = scmp.eq.s32.totalorder %s24, 0
    %p185 = por %p183, %p184
    %p186 = scmp.ne.s32.totalorder %s178, %s180
    %p187 = scmp.eq.s32.totalorder %s29, 1
    %p188 = por %p186, %p187
    %p189 = scmp.ne.s32.totalorder %s180, %s181
    %p190 = scmp.eq.s32.totalorder %s29, 0
    %p191 = por %p189, %p190
    %p192 = scmp.ne.s32.totalorder %s180, %s181
    %p193 = scmp.eq.s32.totalorder %s30, 1
    %p194 = por %p192, %p193
    %p196 = scmp.ne.s32.totalorder %s181, %s195
    %p197 = scmp.eq.s32.totalorder %s30, 0
    %p198 = por %p196, %p197
    %s200 = sadd.s32 %s199, 1
    %p203 = scmp.eq.s32.totalorder %s24, 1
    %p204 = scmp.ne.s32.totalorder %s199, %s201
    %p205 = scmp.eq.s32.totalorder %s24, 0
    %p206 = por %p204, %p205
    %p207 = scmp.ne.s32.totalorder %s199, %s201
    %p208 = scmp.eq.s32.totalorder %s29, 1
    %p209 = por %p207, %p208
    %p210 = scmp.ne.s32.totalorder %s201, %s202
    %p211 = scmp.eq.s32.totalorder %s29, 0
    %p212 = por %p210, %p211
    %p213 = scmp.ne.s32.totalorder %s201, %s202
    %p214 = scmp.eq.s32.totalorder %s30, 1
    %p215 = por %p213, %p214
    %p217 = scmp.ne.s32.totalorder %s202, %s216
    %p218 = scmp.eq.s32.totalorder %s30, 0
    %p219 = por %p217, %p218
    %s221 = sadd.s32 %s220, 1
    %p224 = scmp.eq.s32.totalorder %s24, 1
    %p225 = scmp.ne.s32.totalorder %s220, %s222
    %p226 = scmp.eq.s32.totalorder %s24, 0
    %p227 = por %p225, %p226
    %p228 = scmp.ne.s32.totalorder %s220, %s222
    %p229 = scmp.eq.s32.totalorder %s29, 1
    %p230 = por %p228, %p229
    %p231 = scmp.ne.s32.totalorder %s222, %s223
    %p232 = scmp.eq.s32.totalorder %s29, 0
    %p233 = por %p231, %p232
    %p234 = scmp.ne.s32.totalorder %s222, %s223
    %p235 = scmp.eq.s32.totalorder %s30, 1
    %p236 = por %p234, %p235
    %p238 = scmp.ne.s32.totalorder %s223, %s237
    %p239 = scmp.eq.s32.totalorder %s30, 0
    %p240 = por %p238, %p239
    %s242 = sadd.s32 %s241, 1
    %p245 = scmp.eq.s32.totalorder %s24, 1
    %p246 = scmp.ne.s32.totalorder %s241, %s243
    %p247 = scmp.eq.s32.totalorder %s24, 0
    %p248 = por %p246, %p247
    %p249 = scmp.ne.s32.totalorder %s241, %s243
    %p250 = scmp.eq.s32.totalorder %s29, 1
    %p251 = por %p249, %p250
    %p252 = scmp.ne.s32.totalorder %s243, %s244
    %p253 = scmp.eq.s32.totalorder %s29, 0
    %p254 = por %p252, %p253
    %p255 = scmp.ne.s32.totalorder %s243, %s244
    %p256 = scmp.eq.s32.totalorder %s30, 1
    %p257 = por %p255, %p256
    %p259 = scmp.ne.s32.totalorder %s244, %s258
    %p260 = scmp.eq.s32.totalorder %s30, 0
    %p261 = por %p259, %p260
    %s263 = sadd.s32 %s262, 1
    %p266 = scmp.eq.s32.totalorder %s24, 1
    %p267 = scmp.ne.s32.totalorder %s262, %s264
    %p268 = scmp.eq.s32.totalorder %s24, 0
    %p269 = por %p267, %p268
    %p270 = scmp.ne.s32.totalorder %s262, %s264
    %p271 = scmp.eq.s32.totalorder %s29, 1
    %p272 = por %p270, %p271
    %p273 = scmp.ne.s32.totalorder %s264, %s265
    %p274 = scmp.eq.s32.totalorder %s29, 0
    %p275 = por %p273, %p274
    %p276 = scmp.ne.s32.totalorder %s264, %s265
    %p277 = scmp.eq.s32.totalorder %s30, 1
    %p278 = por %p276, %p277
    %p280 = scmp.ne.s32.totalorder %s265, %s279
    %p281 = scmp.eq.s32.totalorder %s30, 0
    %p282 = por %p280, %p281
    %s284 = sadd.s32 %s283, 1
    %p287 = scmp.eq.s32.totalorder %s24, 1
    %p288 = scmp.ne.s32.totalorder %s283, %s285
    %p289 = scmp.eq.s32.totalorder %s24, 0
    %p290 = por %p288, %p289
    %p291 = scmp.ne.s32.totalorder %s283, %s285
    %p292 = scmp.eq.s32.totalorder %s29, 1
    %p293 = por %p291, %p292
    %p294 = scmp.ne.s32.totalorder %s285, %s286
    %p295 = scmp.eq.s32.totalorder %s29, 0
    %p296 = por %p294, %p295
    %p297 = scmp.ne.s32.totalorder %s285, %s286
    %p298 = scmp.eq.s32.totalorder %s30, 1
    %p299 = por %p297, %p298
    %p301 = scmp.ne.s32.totalorder %s286, %s300
    %p302 = scmp.eq.s32.totalorder %s30, 0
    %p303 = por %p301, %p302
    %s305 = sadd.s32 %s304, 1
    %p308 = scmp.eq.s32.totalorder %s24, 1
    %p309 = scmp.ne.s32.totalorder %s304, %s306
    %p310 = scmp.eq.s32.totalorder %s24, 0
    %p311 = por %p309, %p310
    %p312 = scmp.ne.s32.totalorder %s304, %s306
    %p313 = scmp.eq.s32.totalorder %s29, 1
    %p314 = por %p312, %p313
    %p315 = scmp.ne.s32.totalorder %s306, %s307
    %p316 = scmp.eq.s32.totalorder %s29, 0
    %p317 = por %p315, %p316
    %p318 = scmp.ne.s32.totalorder %s306, %s307
    %p319 = scmp.eq.s32.totalorder %s30, 1
    %p320 = por %p318, %p319
    %p322 = scmp.ne.s32.totalorder %s307, %s321
    %p323 = scmp.eq.s32.totalorder %s30, 0
    %p324 = por %p322, %p323
    %s326 = sadd.s32 %s325, 1
    %p329 = scmp.eq.s32.totalorder %s24, 1
    %p330 = scmp.ne.s32.totalorder %s325, %s327
    %p331 = scmp.eq.s32.totalorder %s24, 0
    %p332 = por %p330, %p331
    %p333 = scmp.ne.s32.totalorder %s325, %s327
    %p334 = scmp.eq.s32.totalorder %s29, 1
    %p335 = por %p333, %p334
    %p336 = scmp.ne.s32.totalorder %s327, %s328
    %p337 = scmp.eq.s32.totalorder %s29, 0
    %p338 = por %p336, %p337
    %p339 = scmp.ne.s32.totalorder %s327, %s328
    %p340 = scmp.eq.s32.totalorder %s30, 1
    %p341 = por %p339, %p340
    %p343 = scmp.ne.s32.totalorder %s328, %s342
    %p344 = scmp.eq.s32.totalorder %s30, 0
    %p345 = por %p343, %p344
    %s347 = sadd.s32 %s346, 1
    %p350 = scmp.eq.s32.totalorder %s24, 1
    %p351 = scmp.ne.s32.totalorder %s346, %s348
    %p352 = scmp.eq.s32.totalorder %s24, 0
    %p353 = por %p351, %p352
    %p354 = scmp.ne.s32.totalorder %s346, %s348
    %p355 = scmp.eq.s32.totalorder %s29, 1
    %p356 = por %p354, %p355
    %p357 = scmp.ne.s32.totalorder %s348, %s349
    %p358 = scmp.eq.s32.totalorder %s29, 0
    %p359 = por %p357, %p358
    %p360 = scmp.ne.s32.totalorder %s348, %s349
    %p361 = scmp.eq.s32.totalorder %s30, 1
    %p362 = por %p360, %p361
    %p364 = scmp.ne.s32.totalorder %s349, %s363
    %p365 = scmp.eq.s32.totalorder %s30, 0
    %p366 = por %p364, %p365
    %s368 = sadd.s32 %s367, 1
    %p371 = scmp.eq.s32.totalorder %s24, 1
    %p372 = scmp.ne.s32.totalorder %s367, %s369
    %p373 = scmp.eq.s32.totalorder %s24, 0
    %p374 = por %p372, %p373
    %p375 = scmp.ne.s32.totalorder %s367, %s369
    %p376 = scmp.eq.s32.totalorder %s29, 1
    %p377 = por %p375, %p376
    %p378 = scmp.ne.s32.totalorder %s369, %s370
    %p379 = scmp.eq.s32.totalorder %s29, 0
    %p380 = por %p378, %p379
    %p381 = scmp.ne.s32.totalorder %s369, %s370
    %p382 = scmp.eq.s32.totalorder %s30, 1
    %p383 = por %p381, %p382
    %p385 = scmp.ne.s32.totalorder %s370, %s384
    %p386 = scmp.eq.s32.totalorder %s30, 0
    %p387 = por %p385, %p386
    %s389 = sadd.s32 %s388, 1
    %p392 = scmp.eq.s32.totalorder %s24, 1
    %p393 = scmp.ne.s32.totalorder %s388, %s390
    %p394 = scmp.eq.s32.totalorder %s24, 0
    %p395 = por %p393, %p394
    %p396 = scmp.ne.s32.totalorder %s388, %s390
    %p397 = scmp.eq.s32.totalorder %s29, 1
    %p398 = por %p396, %p397
    %p399 = scmp.ne.s32.totalorder %s390, %s391
    %p400 = scmp.eq.s32.totalorder %s29, 0
    %p401 = por %p399, %p400
    %p402 = scmp.ne.s32.totalorder %s390, %s391
    %p403 = scmp.eq.s32.totalorder %s30, 1
    %p404 = por %p402, %p403
    %p406 = scmp.ne.s32.totalorder %s391, %s405
    %p407 = scmp.eq.s32.totalorder %s30, 0
    %p408 = por %p406, %p407
    %s410 = sadd.s32 %s409, 1
    %p413 = scmp.eq.s32.totalorder %s24, 1
    %p414 = scmp.ne.s32.totalorder %s409, %s411
    %p415 = scmp.eq.s32.totalorder %s24, 0
    %p416 = por %p414, %p415
    %p417 = scmp.ne.s32.totalorder %s409, %s411
    %p418 = scmp.eq.s32.totalorder %s29, 1
    %p419 = por %p417, %p418
    %p420 = scmp.ne.s32.totalorder %s411, %s412
    %p421 = scmp.eq.s32.totalorder %s29, 0
    %p422 = por %p420, %p421
    %p423 = scmp.ne.s32.totalorder %s411, %s412
    %p424 = scmp.eq.s32.totalorder %s30, 1
    %p425 = por %p423, %p424
    %p427 = scmp.ne.s32.totalorder %s412, %s426
    %p428 = scmp.eq.s32.totalorder %s30, 0
    %p429 = por %p427, %p428
    %s430 = ssub.s32 %s24, %s31
    %p431 = scmp.eq.s32.totalorder %s430, 0
    %s433 = sadd.s32 %s432, 1
    %s434 = scalar_select %p431, %s432, %s433
    %p437 = pneg %p431
    %p438 = scmp.eq.s32.totalorder %s24, 1
    %p439 = por %p437, %p438
    %p440 = scmp.ne.s32.totalorder %s432, %s435
    %p441 = scmp.eq.s32.totalorder %s24, 0
    %p442 = por %p440, %p441
    %p443 = scmp.ne.s32.totalorder %s432, %s435
    %p444 = scmp.eq.s32.totalorder %s29, 1
    %p445 = por %p443, %p444
    %p446 = scmp.ne.s32.totalorder %s435, %s436
    %p447 = scmp.eq.s32.totalorder %s29, 0
    %p448 = por %p446, %p447
    %p449 = scmp.ne.s32.totalorder %s435, %s436
    %p450 = scmp.eq.s32.totalorder %s30, 1
    %p451 = por %p449, %p450
    %p453 = scmp.ne.s32.totalorder %s436, %s452
    %p454 = scmp.eq.s32.totalorder %s30, 0
    %p455 = por %p453, %p454
    %p456 = scmp.le.s32.totalorder 1, %s24
    %p457 = scmp.lt.s32.totalorder %s24, 3
    %p458 = pnand %p456, %p457
    %p459 = pneg %p458
    // Predicated region
    $region9: #{roweeder_flat_forward.1} parent=5 // pred_check
      _
    $region10: #{roweeder_flat_forward.1} parent=5 // pred_check_branch
      %461 = sbr.rel (%p458) target = $region12
    $region11: #{roweeder_flat_forward.1} parent=5 // pred_region
      %s462 = ssub.s32 %s24, 1
      // Predicated region
      $region13: #{roweeder_flat_forward.1} parent=11 // pred_check
        %p463 = pneg %p149
      $region14: #{roweeder_flat_forward.1} parent=11 // pred_check_branch
        %465 = sbr.rel (%p463) target = $region16
      $region15: #{roweeder_flat_forward.1} parent=11 // pred_region
        _
      $region16: #{roweeder_flat_forward.1} parent=11 // pred_fallthru
        _
      // Predicated region
      $region17: #{roweeder_flat_forward.1} parent=11 // pred_check
        %p466 = pneg %p170
      $region18: #{roweeder_flat_forward.1} parent=11 // pred_check_branch
        %468 = sbr.rel (%p466) target = $region20
      $region19: #{roweeder_flat_forward.1} parent=11 // pred_region
        _
      $region20: #{roweeder_flat_forward.1} parent=11 // pred_fallthru
        _
      // Predicated region
      $region21: #{roweeder_flat_forward.1} parent=11 // pred_check
        %p469 = pneg %p191
      $region22: #{roweeder_flat_forward.1} parent=11 // pred_check_branch
        %471 = sbr.rel (%p469) target = $region24
      $region23: #{roweeder_flat_forward.1} parent=11 // pred_region
        _
      $region24: #{roweeder_flat_forward.1} parent=11 // pred_fallthru
        _
      // Predicated region
      $region25: #{roweeder_flat_forward.1} parent=11 // pred_check
        %p472 = pneg %p212
      $region26: #{roweeder_flat_forward.1} parent=11 // pred_check_branch
        %474 = sbr.rel (%p472) target = $region28
      $region27: #{roweeder_flat_forward.1} parent=11 // pred_region
        _
      $region28: #{roweeder_flat_forward.1} parent=11 // pred_fallthru
        _
      // Predicated region
      $region29: #{roweeder_flat_forward.1} parent=11 // pred_check
        %p475 = pneg %p233
      $region30: #{roweeder_flat_forward.1} parent=11 // pred_check_branch
        %477 = sbr.rel (%p475) target = $region32
      $region31: #{roweeder_flat_forward.1} parent=11 // pred_region
        _
      $region32: #{roweeder_flat_forward.1} parent=11 // pred_fallthru
        _
      // Predicated region
      $region33: #{roweeder_flat_forward.1} parent=11 // pred_check
        %p478 = pneg %p254
      $region34: #{roweeder_flat_forward.1} parent=11 // pred_check_branch
        %480 = sbr.rel (%p478) target = $region36
      $region35: #{roweeder_flat_forward.1} parent=11 // pred_region
        _
      $region36: #{roweeder_flat_forward.1} parent=11 // pred_fallthru
        _
      // Predicated region
      $region37: #{roweeder_flat_forward.1} parent=11 // pred_check
        %p481 = pneg %p275
      $region38: #{roweeder_flat_forward.1} parent=11 // pred_check_branch
        %483 = sbr.rel (%p481) target = $region40
      $region39: #{roweeder_flat_forward.1} parent=11 // pred_region
        _
      $region40: #{roweeder_flat_forward.1} parent=11 // pred_fallthru
        _
      // Predicated region
      $region41: #{roweeder_flat_forward.1} parent=11 // pred_check
        %p484 = pneg %p296
      $region42: #{roweeder_flat_forward.1} parent=11 // pred_check_branch
        %486 = sbr.rel (%p484) target = $region44
      $region43: #{roweeder_flat_forward.1} parent=11 // pred_region
        _
      $region44: #{roweeder_flat_forward.1} parent=11 // pred_fallthru
        _
      // Predicated region
      $region45: #{roweeder_flat_forward.1} parent=11 // pred_check
        %p487 = pneg %p317
      $region46: #{roweeder_flat_forward.1} parent=11 // pred_check_branch
        %489 = sbr.rel (%p487) target = $region48
      $region47: #{roweeder_flat_forward.1} parent=11 // pred_region
        _
      $region48: #{roweeder_flat_forward.1} parent=11 // pred_fallthru
        _
      // Predicated region
      $region49: #{roweeder_flat_forward.1} parent=11 // pred_check
        %p490 = pneg %p338
      $region50: #{roweeder_flat_forward.1} parent=11 // pred_check_branch
        %492 = sbr.rel (%p490) target = $region52
      $region51: #{roweeder_flat_forward.1} parent=11 // pred_region
        _
      $region52: #{roweeder_flat_forward.1} parent=11 // pred_fallthru
        _
      // Predicated region
      $region53: #{roweeder_flat_forward.1} parent=11 // pred_check
        %p493 = pneg %p359
      $region54: #{roweeder_flat_forward.1} parent=11 // pred_check_branch
        %495 = sbr.rel (%p493) target = $region56
      $region55: #{roweeder_flat_forward.1} parent=11 // pred_region
        _
      $region56: #{roweeder_flat_forward.1} parent=11 // pred_fallthru
        _
      // Predicated region
      $region57: #{roweeder_flat_forward.1} parent=11 // pred_check
        %p496 = pneg %p380
      $region58: #{roweeder_flat_forward.1} parent=11 // pred_check_branch
        %498 = sbr.rel (%p496) target = $region60
      $region59: #{roweeder_flat_forward.1} parent=11 // pred_region
        _
      $region60: #{roweeder_flat_forward.1} parent=11 // pred_fallthru
        _
      // Predicated region
      $region61: #{roweeder_flat_forward.1} parent=11 // pred_check
        %p499 = pneg %p401
      $region62: #{roweeder_flat_forward.1} parent=11 // pred_check_branch
        %501 = sbr.rel (%p499) target = $region64
      $region63: #{roweeder_flat_forward.1} parent=11 // pred_region
        _
      $region64: #{roweeder_flat_forward.1} parent=11 // pred_fallthru
        _
      // Predicated region
      $region65: #{roweeder_flat_forward.1} parent=11 // pred_check
        %p502 = pneg %p422
      $region66: #{roweeder_flat_forward.1} parent=11 // pred_check_branch
        %504 = sbr.rel (%p502) target = $region68
      $region67: #{roweeder_flat_forward.1} parent=11 // pred_region
        _
      $region68: #{roweeder_flat_forward.1} parent=11 // pred_fallthru
        _
    $region12: #{roweeder_flat_forward.1} parent=5 // pred_fallthru
      _
    %p505 = scmp.lt.s32.totalorder %s24, 2
    // Predicated region
    $region69: #{roweeder_flat_forward.1} parent=5 // pred_check
      %p506 = pneg %p505
    $region70: #{roweeder_flat_forward.1} parent=5 // pred_check_branch
      %508 = sbr.rel (%p506) target = $region72
    $region71: #{roweeder_flat_forward.1} parent=5 // pred_region
      // Predicated region
      $region73: #{roweeder_flat_forward.1} parent=71 // pred_check
        %p509 = pneg %p44
      $region74: #{roweeder_flat_forward.1} parent=71 // pred_check_branch
        %511 = sbr.rel (%p509) target = $region76
      $region75: #{roweeder_flat_forward.1} parent=71 // pred_region
        %p512 = scmp.lt.s32.totalorder %s24, 1
        %s513 = scalar_select %p512, %s24, 1
        %s514 = smul.addr %s513, 2
        %s515 = smul.addr %s514, 4
        %s516 = scalar_lea.vmem %s0, %s515
      $region76: #{roweeder_flat_forward.1} parent=71 // pred_fallthru
        _
      // Predicated region
      $region77: #{roweeder_flat_forward.1} parent=71 // pred_check
        %p517 = pneg %p70
      $region78: #{roweeder_flat_forward.1} parent=71 // pred_check_branch
        %519 = sbr.rel (%p517) target = $region80
      $region79: #{roweeder_flat_forward.1} parent=71 // pred_region
        %p520 = scmp.lt.s32.totalorder %s24, 1
        %s521 = scalar_select %p520, %s24, 1
        %s522 = smul.addr %s521, 2
        %s523 = smul.addr %s522, 4
        %s524 = scalar_lea.vmem %s1, %s523
      $region80: #{roweeder_flat_forward.1} parent=71 // pred_fallthru
        _
      // Predicated region
      $region81: #{roweeder_flat_forward.1} parent=71 // pred_check
        %p525 = pneg %p96
      $region82: #{roweeder_flat_forward.1} parent=71 // pred_check_branch
        %527 = sbr.rel (%p525) target = $region84
      $region83: #{roweeder_flat_forward.1} parent=71 // pred_region
        %p528 = scmp.lt.s32.totalorder %s24, 1
        %s529 = scalar_select %p528, %s24, 1
        %s530 = smul.addr %s529, 3
        %s531 = smul.addr %s530, 4
        %s532 = scalar_lea.vmem %s2, %s531
      $region84: #{roweeder_flat_forward.1} parent=71 // pred_fallthru
        _
      // Predicated region
      $region85: #{roweeder_flat_forward.1} parent=71 // pred_check
        %p533 = pneg %p122
      $region86: #{roweeder_flat_forward.1} parent=71 // pred_check_branch
        %535 = sbr.rel (%p533) target = $region88
      $region87: #{roweeder_flat_forward.1} parent=71 // pred_region
        %p536 = scmp.lt.s32.totalorder %s24, 1
        %s537 = scalar_select %p536, %s24, 1
        %s538 = smul.addr %s537, 4
        %s539 = smul.addr %s538, 4
        %s540 = scalar_lea.vmem %s3, %s539
      $region88: #{roweeder_flat_forward.1} parent=71 // pred_fallthru
        _
    $region72: #{roweeder_flat_forward.1} parent=5 // pred_fallthru
      _
    %p541 = scmp.le.s32.totalorder 1, %s24
    %p542 = scmp.lt.s32.totalorder %s24, 3
    %p543 = pnand %p541, %p542
    %p544 = pneg %p543
    // Predicated region
    $region89: #{roweeder_flat_forward.1} parent=5 // pred_check
      _
    $region90: #{roweeder_flat_forward.1} parent=5 // pred_check_branch
      %546 = sbr.rel (%p543) target = $region92
    $region91: #{roweeder_flat_forward.1} parent=5 // pred_region
      %s547 = ssub.s32 %s24, 1
      %p548 = scmp.lt.s32.totalorder %s29, 1
      %s549 = scalar_select %p548, %s29, 1
      %s550 = smul.addr %s549, 2
      %s551 = smul.addr %s550, 4
      %s552 = scalar_lea.vmem %s0, %s551
      %p553 = pneg %p50
      %p554 = pneg %p47
      %p555 = scmp.lt.s32.totalorder %s29, 1
      %s556 = scalar_select %p555, %s29, 1
      %s557 = smul.addr %s556, 2
      %s558 = smul.addr %s557, 4
      %s559 = scalar_lea.vmem %s1, %s558
      %p560 = pneg %p76
      %p561 = pneg %p73
      %p562 = scmp.lt.s32.totalorder %s29, 1
      %s563 = scalar_select %p562, %s29, 1
      %s564 = smul.addr %s563, 3
      %s565 = smul.addr %s564, 4
      %s566 = scalar_lea.vmem %s2, %s565
      %p567 = pneg %p102
      %p568 = pneg %p99
      %p569 = scmp.lt.s32.totalorder %s29, 1
      %s570 = scalar_select %p569, %s29, 1
      %s571 = smul.addr %s570, 4
      %s572 = smul.addr %s571, 4
      %s573 = scalar_lea.vmem %s3, %s572
      %p574 = pneg %p128
      %p575 = pneg %p125
      %p576 = pneg %p149
      %p577 = pneg %p146
      %p578 = pneg %p170
      %p579 = pneg %p167
      %p580 = pneg %p191
      %p581 = pneg %p188
      %p582 = pneg %p212
      %p583 = pneg %p209
      %p584 = pneg %p233
      %p585 = pneg %p230
      %p586 = pneg %p254
      %p587 = pneg %p251
      %p588 = pneg %p275
      %p589 = pneg %p272
      %p590 = pneg %p296
      %p591 = pneg %p293
      %p592 = pneg %p317
      %p593 = pneg %p314
      %p594 = pneg %p338
      %p595 = pneg %p335
      %p596 = pneg %p359
      %p597 = pneg %p356
      %p598 = pneg %p380
      %p599 = pneg %p377
      %p600 = pneg %p401
      %p601 = pneg %p398
      %p602 = pneg %p422
      %p603 = pneg %p419
      %p604 = pneg %p448
      %p605 = pneg %p445
      %p606 = scmp.lt.s32.totalorder %s29, 1
      %s607 = scalar_select %p606, %s29, 1
      %s608 = smul.addr %s607, 32
      %s609 = smul.addr %s608, 4
      %s610 = scalar_lea.vmem %s18, %s609
      %p611 = scmp.lt.s32.totalorder %s29, 1
      %s612 = scalar_select %p611, %s29, 1
      %s613 = smul.addr %s612, 2
      %s614 = smul.addr %s613, 4
      %s615 = scalar_lea.vmem %s0, %s614
      %p616 = scmp.lt.s32.totalorder %s29, 1
      %s617 = scalar_select %p616, %s29, 1
      %s618 = smul.addr %s617, 2
      %s619 = smul.addr %s618, 4
      %s620 = scalar_lea.vmem %s1, %s619
      %p621 = scmp.lt.s32.totalorder %s29, 1
      %s622 = scalar_select %p621, %s29, 1
      %s623 = smul.addr %s622, 3
      %s624 = smul.addr %s623, 4
      %s625 = scalar_lea.vmem %s2, %s624
      %p626 = scmp.lt.s32.totalorder %s29, 1
      %s627 = scalar_select %p626, %s29, 1
      %s628 = smul.addr %s627, 4
      %s629 = smul.addr %s628, 4
      %s630 = scalar_lea.vmem %s3, %s629
      %p631 = scmp.lt.s32.totalorder %s29, 1
      %s632 = scalar_select %p631, %s29, 1
      %s633 = smul.addr %s632, 32
      %s634 = smul.addr %s633, 4
      %s635 = scalar_lea.vmem %s18, %s634
      %v637 = vld [vmem:[%s13] sm:$0xff]
      %v638 = vld [vmem:[%s9] sm:$0xf]
      %v639 = vld [vmem:[%s615] sm:$0xff]
      %v641 = vunpack.c.l.b16 %v639
      %v642 = vunpack.c.h.b16 %v639
      %v643 = vpack.c.b16 %v641, %v641
      %v644 = vpack.c.b16 %v642, %v642
      %vm645 = vcmask 64512
      %v647 = vsel %vm645, %v638, 0
      %vm649 = vcmask 1043456
      %v651 = vsel %vm649, %v643, 0
      %v654 = vsel %vm649, %v644, 0
      %656 = vmatprep.subr.bf16.mxu0 %v654
      %657 = vmatpush1.bf16.msra.mxu0 %v651
      %658 = vmatprep.subr.bf16.mxu0 0
      %659 = vmatpush1.bf16.msra.mxu0 0
      %660 = vmatprep.subr.bf16.mxu0 0
      %661 = vmatpush1.bf16.msra.mxu0 0
      %662 = vmatprep.subr.bf16.mxu0 0
      %663 = vmatpush1.bf16.msra.mxu0 0
      %664 = vmatprep.subr.bf16.mxu0 0
      %665 = vmatpush1.bf16.msra.mxu0 0
      %666 = vmatprep.subr.bf16.mxu0 0
      %667 = vmatpush1.bf16.msra.mxu0 0
      %668 = vmatprep.subr.bf16.mxu0 0
      %669 = vmatpush1.bf16.msra.mxu0 0
      %670 = vmatprep.subr.bf16.mxu0 0
      %671 = vmatpush1.bf16.msra.mxu0 0
      %672 = vmatprep.subr.bf16.mxu0 0
      %673 = vmatpush1.bf16.msra.mxu0 0
      %674 = vmatprep.subr.bf16.mxu0 0
      %675 = vmatpush1.bf16.msra.mxu0 0
      %676 = vmatprep.subr.bf16.mxu0 0
      %677 = vmatpush1.bf16.msra.mxu0 0
      %678 = vmatprep.subr.bf16.mxu0 0
      %679 = vmatpush1.bf16.msra.mxu0 0
      %680 = vmatprep.subr.bf16.mxu0 0
      %681 = vmatpush1.bf16.msra.mxu0 0
      %682 = vmatprep.subr.bf16.mxu0 0
      %683 = vmatpush1.bf16.msra.mxu0 0
      %684 = vmatprep.subr.bf16.mxu0 0
      %685 = vmatpush1.bf16.msra.mxu0 0
      %686 = vmatprep.subr.bf16.mxu0 0
      %687 = vmatpush1.bf16.msra.mxu0 0
      %688 = vmatprep.mubr.bf16.mxu0 0
      %689 = vmatmul.mubr.bf16.gmra.mrb[0].mxu0 %v647
      %v690 = vpop.f32.mrb[0].mxu0
      %v691 = vadd.f32 0.0, %v690
      %v692 = vpop.f32.mrb[0].mxu0
      %v693 = vadd.f32 0.0, %v692
      %v694 = vpop.f32.mrb[0].mxu0
      %v695 = vpop.f32.mrb[0].mxu0
      %696 = vdwg.mxu0
      %698 = vset.pattern.permute.xlu0 0
      %699 = vperm.xlu0 %698, %v637
      %v700 = vpop.permute.xlu0 %699
      %v702 = vadd.f32 %v700, %v691
      %v703 = vadd.f32 %v700, %v693
      %v704 = vld [vmem:[%s10] sm:$0xf]
      %v705 = vld [vmem:[%s620] sm:$0xf]
      %v706 = vld [vmem:[%s620 + $0x4] sm:$0xf]
      %v709 = vunpack.c.l.b16 %v705
      %v710 = vunpack.c.l.b16 %v706
      %v711 = vpack.c.b16 %v710, %v709
      %vm713 = vcmask 130048
      %v715 = vsel %vm713, %v704, 0
      %717 = vmatprep.subr.bf16.mxu0 0
      %718 = vmatpush1.bf16.msra.mxu0 %v711
      %719 = vmatprep.subr.bf16.mxu0 0
      %720 = vmatpush1.bf16.msra.mxu0 0
      %721 = vmatprep.subr.bf16.mxu0 0
      %722 = vmatpush1.bf16.msra.mxu0 0
      %723 = vmatprep.subr.bf16.mxu0 0
      %724 = vmatpush1.bf16.msra.mxu0 0
      %725 = vmatprep.subr.bf16.mxu0 0
      %726 = vmatpush1.bf16.msra.mxu0 0
      %727 = vmatprep.subr.bf16.mxu0 0
      %728 = vmatpush1.bf16.msra.mxu0 0
      %729 = vmatprep.subr.bf16.mxu0 0
      %730 = vmatpush1.bf16.msra.mxu0 0
      %731 = vmatprep.subr.bf16.mxu0 0
      %732 = vmatpush1.bf16.msra.mxu0 0
      %733 = vmatprep.subr.bf16.mxu0 0
      %734 = vmatpush1.bf16.msra.mxu0 0
      %735 = vmatprep.subr.bf16.mxu0 0
      %736 = vmatpush1.bf16.msra.mxu0 0
      %737 = vmatprep.subr.bf16.mxu0 0
      %738 = vmatpush1.bf16.msra.mxu0 0
      %739 = vmatprep.subr.bf16.mxu0 0
      %740 = vmatpush1.bf16.msra.mxu0 0
      %741 = vmatprep.subr.bf16.mxu0 0
      %742 = vmatpush1.bf16.msra.mxu0 0
      %743 = vmatprep.subr.bf16.mxu0 0
      %744 = vmatpush1.bf16.msra.mxu0 0
      %745 = vmatprep.subr.bf16.mxu0 0
      %746 = vmatpush1.bf16.msra.mxu0 0
      %747 = vmatprep.subr.bf16.mxu0 0
      %748 = vmatpush1.bf16.msra.mxu0 0
      %749 = vmatprep.mubr.bf16.mxu0 0
      %750 = vmatmul.mubr.bf16.gmra.mrb[0].mxu0 %v715
      %v751 = vpop.f32.mrb[0].mxu0
      %v752 = vadd.f32 0.0, %v751
      %v753 = vpop.f32.mrb[0].mxu0
      %v754 = vpop.f32.mrb[0].mxu0
      %v755 = vpop.f32.mrb[0].mxu0
      %756 = vdwg.mxu0
      %v757 = vpack.c.bf16 %v752, %v752
      %v758 = vld [vmem:[%s4] sm:$0xff]
      %v759 = vld [vmem:[%s4 + $0x8] sm:$0xff]
      %v760 = vld [vmem:[%s4 + $0x10] sm:$0xff]
      %v761 = vld [vmem:[%s4 + $0x18] sm:$0xff]
      %v762 = vld [vmem:[%s4 + $0x20] sm:$0xff]
      %v763 = vld [vmem:[%s4 + $0x28] sm:$0xff]
      %v764 = vld [vmem:[%s4 + $0x30] sm:$0xff]
      %v765 = vld [vmem:[%s4 + $0x38] sm:$0xff]
      %v774 = vunpack.c.l.b16 %v758
      %v775 = vunpack.c.h.b16 %v758
      %v776 = vunpack.c.l.b16 %v759
      %v777 = vunpack.c.h.b16 %v759
      %v778 = vunpack.c.l.b16 %v760
      %v779 = vunpack.c.h.b16 %v760
      %v780 = vunpack.c.l.b16 %v761
      %v781 = vunpack.c.h.b16 %v761
      %v782 = vunpack.c.l.b16 %v762
      %v783 = vunpack.c.h.b16 %v762
      %v784 = vunpack.c.l.b16 %v763
      %v785 = vunpack.c.h.b16 %v763
      %v786 = vunpack.c.l.b16 %v764
      %v787 = vunpack.c.h.b16 %v764
      %v788 = vunpack.c.l.b16 %v765
      %v789 = vunpack.c.h.b16 %v765
      %v790 = vpack.c.b16 %v776, %v774
      %v791 = vpack.c.b16 %v777, %v775
      %v792 = vpack.c.b16 %v780, %v778
      %v793 = vpack.c.b16 %v781, %v779
      %v794 = vpack.c.b16 %v784, %v782
      %v795 = vpack.c.b16 %v785, %v783
      %v796 = vpack.c.b16 %v788, %v786
      %v797 = vpack.c.b16 %v789, %v787
      %vm806 = vcmask 523264
      %v808 = vsel %vm806, %v757, 0
      %810 = vmatprep.subr.bf16.mxu0 %v791
      %811 = vmatpush1.bf16.msra.mxu0 %v790
      %812 = vmatprep.subr.bf16.mxu0 %v793
      %813 = vmatpush1.bf16.msra.mxu0 %v792
      %814 = vmatprep.subr.bf16.mxu0 %v795
      %815 = vmatpush1.bf16.msra.mxu0 %v794
      %816 = vmatprep.subr.bf16.mxu0 %v797
      %817 = vmatpush1.bf16.msra.mxu0 %v796
      %818 = vmatprep.subr.bf16.mxu0 0
      %819 = vmatpush1.bf16.msra.mxu0 0
      %820 = vmatprep.subr.bf16.mxu0 0
      %821 = vmatpush1.bf16.msra.mxu0 0
      %822 = vmatprep.subr.bf16.mxu0 0
      %823 = vmatpush1.bf16.msra.mxu0 0
      %824 = vmatprep.subr.bf16.mxu0 0
      %825 = vmatpush1.bf16.msra.mxu0 0
      %826 = vmatprep.subr.bf16.mxu0 0
      %827 = vmatpush1.bf16.msra.mxu0 0
      %828 = vmatprep.subr.bf16.mxu0 0
      %829 = vmatpush1.bf16.msra.mxu0 0
      %830 = vmatprep.subr.bf16.mxu0 0
      %831 = vmatpush1.bf16.msra.mxu0 0
      %832 = vmatprep.subr.bf16.mxu0 0
      %833 = vmatpush1.bf16.msra.mxu0 0
      %834 = vmatprep.subr.bf16.mxu0 0
      %835 = vmatpush1.bf16.msra.mxu0 0
      %836 = vmatprep.subr.bf16.mxu0 0
      %837 = vmatpush1.bf16.msra.mxu0 0
      %838 = vmatprep.subr.bf16.mxu0 0
      %839 = vmatpush1.bf16.msra.mxu0 0
      %840 = vmatprep.subr.bf16.mxu0 0
      %841 = vmatpush1.bf16.msra.mxu0 0
      %842 = vmatprep.mubr.bf16.mxu0 0
      %843 = vmatmul.mubr.bf16.gmra.mrb[0].mxu0 %v808
      %v844 = vpop.f32.mrb[0].mxu0
      %v845 = vadd.f32 0.0, %v844
      %v846 = vpop.f32.mrb[0].mxu0
      %v847 = vadd.f32 0.0, %v846
      %v848 = vpop.f32.mrb[0].mxu0
      %v849 = vpop.f32.mrb[0].mxu0
      %850 = vdwg.mxu0
      %v851 = vadd.f32 %v702, %v845
      %v852 = vadd.f32 %v703, %v847
      %v853 = vld [vmem:[%s11] sm:$0xf]
      %v854 = vld [vmem:[%s625] sm:$0xf]
      %v855 = vld [vmem:[%s625 + $0x4] sm:$0xf]
      %v856 = vld [vmem:[%s625 + $0x8] sm:$0xf]
      %v860 = vunpack.c.l.b16 %v854
      %v861 = vunpack.c.l.b16 %v855
      %v862 = vunpack.c.l.b16 %v856
      %v863 = vpack.c.b16 %v861, %v860
      %v864 = vpack.c.b16 %v862, %v862
      %vm866 = vcmask 195584
      %v868 = vsel %vm866, %v853, 0
      %v871 = vsel %vm649, %v864, 0
      %873 = vmatprep.subr.bf16.mxu0 0
      %874 = vmatpush1.bf16.msra.mxu0 %v863
      %875 = vmatprep.subr.bf16.mxu0 0
      %876 = vmatpush1.bf16.msra.mxu0 %v871
      %877 = vmatprep.subr.bf16.mxu0 0
      %878 = vmatpush1.bf16.msra.mxu0 0
      %879 = vmatprep.subr.bf16.mxu0 0
      %880 = vmatpush1.bf16.msra.mxu0 0
      %881 = vmatprep.subr.bf16.mxu0 0
      %882 = vmatpush1.bf16.msra.mxu0 0
      %883 = vmatprep.subr.bf16.mxu0 0
      %884 = vmatpush1.bf16.msra.mxu0 0
      %885 = vmatprep.subr.bf16.mxu0 0
      %886 = vmatpush1.bf16.msra.mxu0 0
      %887 = vmatprep.subr.bf16.mxu0 0
      %888 = vmatpush1.bf16.msra.mxu0 0
      %889 = vmatprep.subr.bf16.mxu0 0
      %890 = vmatpush1.bf16.msra.mxu0 0
      %891 = vmatprep.subr.bf16.mxu0 0
      %892 = vmatpush1.bf16.msra.mxu0 0
      %893 = vmatprep.subr.bf16.mxu0 0
      %894 = vmatpush1.bf16.msra.mxu0 0
      %895 = vmatprep.subr.bf16.mxu0 0
      %896 = vmatpush1.bf16.msra.mxu0 0
      %897 = vmatprep.subr.bf16.mxu0 0
      %898 = vmatpush1.bf16.msra.mxu0 0
      %899 = vmatprep.subr.bf16.mxu0 0
      %900 = vmatpush1.bf16.msra.mxu0 0
      %901 = vmatprep.subr.bf16.mxu0 0
      %902 = vmatpush1.bf16.msra.mxu0 0
      %903 = vmatprep.subr.bf16.mxu0 0
      %904 = vmatpush1.bf16.msra.mxu0 0
      %905 = vmatprep.mubr.bf16.mxu0 0
      %906 = vmatmul.mubr.bf16.gmra.mrb[0].mxu0 %v868
      %v907 = vpop.f32.mrb[0].mxu0
      %v908 = vadd.f32 0.0, %v907
      %v909 = vpop.f32.mrb[0].mxu0
      %v910 = vpop.f32.mrb[0].mxu0
      %v911 = vpop.f32.mrb[0].mxu0
      %912 = vdwg.mxu0
      %v913 = vpack.c.bf16 %v908, %v908
      %v914 = vld [vmem:[%s5] sm:$0xff]
      %v915 = vld [vmem:[%s5 + $0x8] sm:$0xff]
      %v918 = vunpack.c.l.b16 %v914
      %v919 = vunpack.c.h.b16 %v914
      %v920 = vunpack.c.l.b16 %v915
      %v921 = vunpack.c.h.b16 %v915
      %v922 = vpack.c.b16 %v920, %v918
      %v923 = vpack.c.b16 %v921, %v919
      %v927 = vsel %vm713, %v913, 0
      %929 = vmatprep.subr.bf16.mxu0 %v923
      %930 = vmatpush1.bf16.msra.mxu0 %v922
      %931 = vmatprep.subr.bf16.mxu0 0
      %932 = vmatpush1.bf16.msra.mxu0 0
      %933 = vmatprep.subr.bf16.mxu0 0
      %934 = vmatpush1.bf16.msra.mxu0 0
      %935 = vmatprep.subr.bf16.mxu0 0
      %936 = vmatpush1.bf16.msra.mxu0 0
      %937 = vmatprep.subr.bf16.mxu0 0
      %938 = vmatpush1.bf16.msra.mxu0 0
      %939 = vmatprep.subr.bf16.mxu0 0
      %940 = vmatpush1.bf16.msra.mxu0 0
      %941 = vmatprep.subr.bf16.mxu0 0
      %942 = vmatpush1.bf16.msra.mxu0 0
      %943 = vmatprep.subr.bf16.mxu0 0
      %944 = vmatpush1.bf16.msra.mxu0 0
      %945 = vmatprep.subr.bf16.mxu0 0
      %946 = vmatpush1.bf16.msra.mxu0 0
      %947 = vmatprep.subr.bf16.mxu0 0
      %948 = vmatpush1.bf16.msra.mxu0 0
      %949 = vmatprep.subr.bf16.mxu0 0
      %950 = vmatpush1.bf16.msra.mxu0 0
      %951 = vmatprep.subr.bf16.mxu0 0
      %952 = vmatpush1.bf16.msra.mxu0 0
      %953 = vmatprep.subr.bf16.mxu0 0
      %954 = vmatpush1.bf16.msra.mxu0 0
      %955 = vmatprep.subr.bf16.mxu0 0
      %956 = vmatpush1.bf16.msra.mxu0 0
      %957 = vmatprep.subr.bf16.mxu0 0
      %958 = vmatpush1.bf16.msra.mxu0 0
      %959 = vmatprep.subr.bf16.mxu0 0
      %960 = vmatpush1.bf16.msra.mxu0 0
      %961 = vmatprep.mubr.bf16.mxu0 0
      %962 = vmatmul.mubr.bf16.gmra.mrb[0].mxu0 %v927
      %v963 = vpop.f32.mrb[0].mxu0
      %v964 = vadd.f32 0.0, %v963
      %v965 = vpop.f32.mrb[0].mxu0
      %v966 = vadd.f32 0.0, %v965
      %v967 = vpop.f32.mrb[0].mxu0
      %v968 = vpop.f32.mrb[0].mxu0
      %969 = vdwg.mxu0
      %v970 = vadd.f32 %v851, %v964
      %v971 = vadd.f32 %v852, %v966
      %v972 = vld [vmem:[%s12] sm:$0xf]
      %v973 = vld [vmem:[%s630] sm:$0xf]
      %v974 = vld [vmem:[%s630 + $0x4] sm:$0xf]
      %v975 = vld [vmem:[%s630 + $0x8] sm:$0xf]
      %v976 = vld [vmem:[%s630 + $0xc] sm:$0xf]
      %v981 = vunpack.c.l.b16 %v973
      %v982 = vunpack.c.l.b16 %v974
      %v983 = vunpack.c.l.b16 %v975
      %v984 = vunpack.c.l.b16 %v976
      %v985 = vpack.c.b16 %v982, %v981
      %v986 = vpack.c.b16 %v984, %v983
      %vm989 = vcmask 261120
      %v991 = vsel %vm989, %v972, 0
      %993 = vmatprep.subr.bf16.mxu0 0
      %994 = vmatpush1.bf16.msra.mxu0 %v985
      %995 = vmatprep.subr.bf16.mxu0 0
      %996 = vmatpush1.bf16.msra.mxu0 %v986
      %997 = vmatprep.subr.bf16.mxu0 0
      %998 = vmatpush1.bf16.msra.mxu0 0
      %999 = vmatprep.subr.bf16.mxu0 0
      %1000 = vmatpush1.bf16.msra.mxu0 0
      %1001 = vmatprep.subr.bf16.mxu0 0
      %1002 = vmatpush1.bf16.msra.mxu0 0
      %1003 = vmatprep.subr.bf16.mxu0 0
      %1004 = vmatpush1.bf16.msra.mxu0 0
      %1005 = vmatprep.subr.bf16.mxu0 0
      %1006 = vmatpush1.bf16.msra.mxu0 0
      %1007 = vmatprep.subr.bf16.mxu0 0
      %1008 = vmatpush1.bf16.msra.mxu0 0
      %1009 = vmatprep.subr.bf16.mxu0 0
      %1010 = vmatpush1.bf16.msra.mxu0 0
      %1011 = vmatprep.subr.bf16.mxu0 0
      %1012 = vmatpush1.bf16.msra.mxu0 0
      %1013 = vmatprep.subr.bf16.mxu0 0
      %1014 = vmatpush1.bf16.msra.mxu0 0
      %1015 = vmatprep.subr.bf16.mxu0 0
      %1016 = vmatpush1.bf16.msra.mxu0 0
      %1017 = vmatprep.subr.bf16.mxu0 0
      %1018 = vmatpush1.bf16.msra.mxu0 0
      %1019 = vmatprep.subr.bf16.mxu0 0
      %1020 = vmatpush1.bf16.msra.mxu0 0
      %1021 = vmatprep.subr.bf16.mxu0 0
      %1022 = vmatpush1.bf16.msra.mxu0 0
      %1023 = vmatprep.subr.bf16.mxu0 0
      %1024 = vmatpush1.bf16.msra.mxu0 0
      %1025 = vmatprep.mubr.bf16.mxu0 0
      %1026 = vmatmul.mubr.bf16.gmra.mrb[0].mxu0 %v991
      %v1027 = vpop.f32.mrb[0].mxu0
      %v1028 = vadd.f32 0.0, %v1027
      %v1029 = vpop.f32.mrb[0].mxu0
      %v1030 = vpop.f32.mrb[0].mxu0
      %v1031 = vpop.f32.mrb[0].mxu0
      %1032 = vdwg.mxu0
      %v1033 = vpack.c.bf16 %v1028, %v1028
      %v1034 = vld [vmem:[%s6] sm:$0xf]
      %v1037 = vunpack.c.l.s4 1983009808
      %v1038 = vunpack.c.0.s8 %v1037
      %v1039 = vlaneseq
      %v1040 = vshrl.u32 %v1039, 7
      %v1041 = vsub.s32 %v1038, %v1040
      %v1042 = vrot.slane %v1034, %v1041
      %v1043 = vcombine.high %v1042, %v1042
      %vm1044 = vcmask 31744
      %v1046 = vsel %vm1044, %v1033, 0
      %vm1048 = vcmask 1041408
      %v1050 = vsel %vm1048, %v1042, 0
      %v1053 = vsel %vm1048, %v1043, 0
      %1055 = vmatprep.subr.bf16.mxu0 %v1053
      %1056 = vmatpush1.bf16.msra.mxu0 %v1050
      %1057 = vmatprep.subr.bf16.mxu0 0
      %1058 = vmatpush1.bf16.msra.mxu0 0
      %1059 = vmatprep.subr.bf16.mxu0 0
      %1060 = vmatpush1.bf16.msra.mxu0 0
      %1061 = vmatprep.subr.bf16.mxu0 0
      %1062 = vmatpush1.bf16.msra.mxu0 0
      %1063 = vmatprep.subr.bf16.mxu0 0
      %1064 = vmatpush1.bf16.msra.mxu0 0
      %1065 = vmatprep.subr.bf16.mxu0 0
      %1066 = vmatpush1.bf16.msra.mxu0 0
      %1067 = vmatprep.subr.bf16.mxu0 0
      %1068 = vmatpush1.bf16.msra.mxu0 0
      %1069 = vmatprep.subr.bf16.mxu0 0
      %1070 = vmatpush1.bf16.msra.mxu0 0
      %1071 = vmatprep.subr.bf16.mxu0 0
      %1072 = vmatpush1.bf16.msra.mxu0 0
      %1073 = vmatprep.subr.bf16.mxu0 0
      %1074 = vmatpush1.bf16.msra.mxu0 0
      %1075 = vmatprep.subr.bf16.mxu0 0
      %1076 = vmatpush1.bf16.msra.mxu0 0
      %1077 = vmatprep.subr.bf16.mxu0 0
      %1078 = vmatpush1.bf16.msra.mxu0 0
      %1079 = vmatprep.subr.bf16.mxu0 0
      %1080 = vmatpush1.bf16.msra.mxu0 0
      %1081 = vmatprep.subr.bf16.mxu0 0
      %1082 = vmatpush1.bf16.msra.mxu0 0
      %1083 = vmatprep.subr.bf16.mxu0 0
      %1084 = vmatpush1.bf16.msra.mxu0 0
      %1085 = vmatprep.subr.bf16.mxu0 0
      %1086 = vmatpush1.bf16.msra.mxu0 0
      %1087 = vmatprep.mubr.bf16.mxu0 0
      %1088 = vmatmul.mubr.bf16.gmra.mrb[0].mxu0 %v1046
      %v1089 = vpop.f32.mrb[0].mxu0
      %v1090 = vadd.f32 0.0, %v1089
      %v1091 = vpop.f32.mrb[0].mxu0
      %v1092 = vadd.f32 0.0, %v1091
      %v1093 = vpop.f32.mrb[0].mxu0
      %v1094 = vpop.f32.mrb[0].mxu0
      %1095 = vdwg.mxu0
      %v1096 = vadd.f32 %v970, %v1090
      %v1097 = vadd.f32 %v971, %v1092
      %1099 = vrot.lane.b32.xlu0 %v1097, 17
      %v1100 = vpop.permute.xlu0 %1099
      %1103 = vrot.lane.b32.xlu0 %v1096, 17
      %v1104 = vpop.permute.xlu0 %1103
      %vm1105 = vcmask 138240
      %v1106 = vsel %vm1105, %v1104, %v1100
      %v1109 = vsel %vm1105, %v1100, %v1104
      %v1110 = vld [vmem:[%s7] sm:$0x3]
      %v1112 = vlaneseq
      %v1113 = vshrl.u32 %v1112, 7
      %v1114 = vsub.s32 0, %v1113
      %v1115 = vrot.slane %v1110, %v1114
      %v1116 = vlaneseq
      %v1117 = vshrl.u32 %v1116, 7
      %v1118 = vsub.s32 1, %v1117
      %v1119 = vrot.slane %v1110, %v1118
      %v1122 = vmul.f32 %v1109, %v1115
      %v1123 = vmul.f32 %v1106, %v1119
      %1124 = vrot.lane.b32.xlu0 %v1097, 16
      %v1125 = vpop.permute.xlu0 %1124
      %1127 = vrot.lane.b32.xlu0 %v1096, 16
      %v1128 = vpop.permute.xlu0 %1127
      %v1129 = vsel %vm713, %v1128, %v1125
      %v1132 = vsel %vm713, %v1125, %v1128
      %s1133 = scalar_lea.vmem %s7, 2
      %v1134 = vld [vmem:[%s1133] sm:$0x3]
      %v1136 = vlaneseq
      %v1137 = vshrl.u32 %v1136, 7
      %v1138 = vsub.s32 0, %v1137
      %v1139 = vrot.slane %v1134, %v1138
      %v1140 = vlaneseq
      %v1141 = vshrl.u32 %v1140, 7
      %v1142 = vsub.s32 1, %v1141
      %v1143 = vrot.slane %v1134, %v1142
      %v1146 = vmul.f32 %v1132, %v1139
      %v1147 = vmul.f32 %v1129, %v1143
      %1148 = vrot.lane.b32.xlu0 %v1097, 15
      %v1149 = vpop.permute.xlu0 %1148
      %1151 = vrot.lane.b32.xlu0 %v1096, 15
      %v1152 = vpop.permute.xlu0 %1151
      %vm1153 = vcmask 121856
      %v1154 = vsel %vm1153, %v1152, %v1149
      %v1157 = vsel %vm1153, %v1149, %v1152
      %s1158 = scalar_lea.vmem %s7, 4
      %v1159 = vld [vmem:[%s1158] sm:$0x3]
      %v1161 = vlaneseq
      %v1162 = vshrl.u32 %v1161, 7
      %v1163 = vsub.s32 0, %v1162
      %v1164 = vrot.slane %v1159, %v1163
      %v1165 = vlaneseq
      %v1166 = vshrl.u32 %v1165, 7
      %v1167 = vsub.s32 1, %v1166
      %v1168 = vrot.slane %v1159, %v1167
      %v1171 = vmul.f32 %v1157, %v1164
      %v1172 = vmul.f32 %v1154, %v1168
      %1173 = vrot.lane.b32.xlu0 %v1097, 1
      %v1174 = vpop.permute.xlu0 %1173
      %1176 = vrot.lane.b32.xlu0 %v1096, 1
      %v1177 = vpop.permute.xlu0 %1176
      %vm1178 = vcmask 7168
      %v1179 = vsel %vm1178, %v1177, %v1174
      %v1182 = vsel %vm1178, %v1174, %v1177
      %s1183 = scalar_lea.vmem %s7, 6
      %v1184 = vld [vmem:[%s1183] sm:$0x3]
      %v1186 = vlaneseq
      %v1187 = vshrl.u32 %v1186, 7
      %v1188 = vsub.s32 0, %v1187
      %v1189 = vrot.slane %v1184, %v1188
      %v1190 = vlaneseq
      %v1191 = vshrl.u32 %v1190, 7
      %v1192 = vsub.s32 1, %v1191
      %v1193 = vrot.slane %v1184, %v1192
      %v1196 = vmul.f32 %v1182, %v1189
      %v1197 = vmul.f32 %v1179, %v1193
      %s1198 = scalar_lea.vmem %s7, 8
      %v1199 = vld [vmem:[%s1198] sm:$0x3]
      %v1201 = vlaneseq
      %v1202 = vshrl.u32 %v1201, 7
      %v1203 = vsub.s32 0, %v1202
      %v1204 = vrot.slane %v1199, %v1203
      %v1205 = vlaneseq
      %v1206 = vshrl.u32 %v1205, 7
      %v1207 = vsub.s32 1, %v1206
      %v1208 = vrot.slane %v1199, %v1207
      %v1211 = vmul.f32 %v1096, %v1204
      %v1212 = vmul.f32 %v1097, %v1208
      %1213 = vrot.lane.b32.xlu0 %v1096, 127
      %v1214 = vpop.permute.xlu0 %1213
      %1215 = vrot.lane.b32.xlu0 %v1097, 127
      %v1216 = vpop.permute.xlu0 %1215
      %vm1217 = vcmask 1039360
      %v1218 = vsel %vm1217, %v1214, %v1216
      %v1222 = vsel %vm1217, %v1216, %v1214
      %s1223 = scalar_lea.vmem %s7, 10
      %v1224 = vld [vmem:[%s1223] sm:$0x3]
      %v1226 = vlaneseq
      %v1227 = vshrl.u32 %v1226, 7
      %v1228 = vsub.s32 0, %v1227
      %v1229 = vrot.slane %v1224, %v1228
      %v1230 = vlaneseq
      %v1231 = vshrl.u32 %v1230, 7
      %v1232 = vsub.s32 1, %v1231
      %v1233 = vrot.slane %v1224, %v1232
      %v1236 = vmul.f32 %v1218, %v1229
      %v1237 = vmul.f32 %v1222, %v1233
      %1238 = vrot.lane.b32.xlu0 %v1096, 113
      %v1239 = vpop.permute.xlu0 %1238
      %1240 = vrot.lane.b32.xlu0 %v1097, 113
      %v1241 = vpop.permute.xlu0 %1240
      %vm1242 = vcmask 924672
      %v1243 = vsel %vm1242, %v1239, %v1241
      %v1247 = vsel %vm1242, %v1241, %v1239
      %s1248 = scalar_lea.vmem %s7, 12
      %v1249 = vld [vmem:[%s1248] sm:$0x3]
      %v1251 = vlaneseq
      %v1252 = vshrl.u32 %v1251, 7
      %v1253 = vsub.s32 0, %v1252
      %v1254 = vrot.slane %v1249, %v1253
      %v1255 = vlaneseq
      %v1256 = vshrl.u32 %v1255, 7
      %v1257 = vsub.s32 1, %v1256
      %v1258 = vrot.slane %v1249, %v1257
      %v1261 = vmul.f32 %v1243, %v1254
      %v1262 = vmul.f32 %v1247, %v1258
      %1263 = vrot.lane.b32.xlu0 %v1096, 112
      %v1264 = vpop.permute.xlu0 %1263
      %1265 = vrot.lane.b32.xlu0 %v1097, 112
      %v1266 = vpop.permute.xlu0 %1265
      %vm1267 = vcmask 916480
      %v1268 = vsel %vm1267, %v1264, %v1266
      %v1272 = vsel %vm1267, %v1266, %v1264
      %s1273 = scalar_lea.vmem %s7, 14
      %v1274 = vld [vmem:[%s1273] sm:$0x3]
      %v1276 = vlaneseq
      %v1277 = vshrl.u32 %v1276, 7
      %v1278 = vsub.s32 0, %v1277
      %v1279 = vrot.slane %v1274, %v1278
      %v1280 = vlaneseq
      %v1281 = vshrl.u32 %v1280, 7
      %v1282 = vsub.s32 1, %v1281
      %v1283 = vrot.slane %v1274, %v1282
      %v1286 = vmul.f32 %v1268, %v1279
      %v1287 = vmul.f32 %v1272, %v1283
      %1288 = vrot.lane.b32.xlu0 %v1096, 111
      %v1289 = vpop.permute.xlu0 %1288
      %1290 = vrot.lane.b32.xlu0 %v1097, 111
      %v1291 = vpop.permute.xlu0 %1290
      %vm1292 = vcmask 908288
      %v1293 = vsel %vm1292, %v1289, %v1291
      %v1297 = vsel %vm1292, %v1291, %v1289
      %s1298 = scalar_lea.vmem %s7, 16
      %v1299 = vld [vmem:[%s1298] sm:$0x3]
      %v1301 = vlaneseq
      %v1302 = vshrl.u32 %v1301, 7
      %v1303 = vsub.s32 0, %v1302
      %v1304 = vrot.slane %v1299, %v1303
      %v1305 = vlaneseq
      %v1306 = vshrl.u32 %v1305, 7
      %v1307 = vsub.s32 1, %v1306
      %v1308 = vrot.slane %v1299, %v1307
      %v1311 = vmul.f32 %v1293, %v1304
      %v1312 = vmul.f32 %v1297, %v1308
      %v1313 = vpack.c.bf16 %v1146, %v1122
      %v1314 = vpack.c.bf16 %v1147, %v1123
      %v1315 = vpack.c.bf16 %v1196, %v1171
      %v1316 = vpack.c.bf16 %v1197, %v1172
      %v1317 = vpack.c.bf16 %v1236, %v1211
      %v1318 = vpack.c.bf16 %v1237, %v1212
      %v1319 = vpack.c.bf16 %v1286, %v1261
      %v1320 = vpack.c.bf16 %v1287, %v1262
      %v1321 = vpack.c.bf16 %v1311, %v1311
      %v1322 = vpack.c.bf16 %v1312, %v1312
      %v1323 = vld [vmem:[%s15] sm:$0xff]
      %v1324 = vld [vmem:[%s14] sm:$0xf]
      %vm1325 = vcmask 588800
      %v1327 = vsel %vm1325, %v1324, 0
      %v1330 = vsel %vm649, %v1321, 0
      %v1333 = vsel %vm649, %v1322, 0
      %1335 = vmatprep.subr.bf16.mxu0 %v1314
      %1336 = vmatpush1.bf16.msra.mxu0 %v1313
      %1337 = vmatprep.subr.bf16.mxu0 %v1316
      %1338 = vmatpush1.bf16.msra.mxu0 %v1315
      %1339 = vmatprep.subr.bf16.mxu0 %v1318
      %1340 = vmatpush1.bf16.msra.mxu0 %v1317
      %1341 = vmatprep.subr.bf16.mxu0 %v1320
      %1342 = vmatpush1.bf16.msra.mxu0 %v1319
      %1343 = vmatprep.subr.bf16.mxu0 %v1333
      %1344 = vmatpush1.bf16.msra.mxu0 %v1330
      %1345 = vmatprep.subr.bf16.mxu0 0
      %1346 = vmatpush1.bf16.msra.mxu0 0
      %1347 = vmatprep.subr.bf16.mxu0 0
      %1348 = vmatpush1.bf16.msra.mxu0 0
      %1349 = vmatprep.subr.bf16.mxu0 0
      %1350 = vmatpush1.bf16.msra.mxu0 0
      %1351 = vmatprep.subr.bf16.mxu0 0
      %1352 = vmatpush1.bf16.msra.mxu0 0
      %1353 = vmatprep.subr.bf16.mxu0 0
      %1354 = vmatpush1.bf16.msra.mxu0 0
      %1355 = vmatprep.subr.bf16.mxu0 0
      %1356 = vmatpush1.bf16.msra.mxu0 0
      %1357 = vmatprep.subr.bf16.mxu0 0
      %1358 = vmatpush1.bf16.msra.mxu0 0
      %1359 = vmatprep.subr.bf16.mxu0 0
      %1360 = vmatpush1.bf16.msra.mxu0 0
      %1361 = vmatprep.subr.bf16.mxu0 0
      %1362 = vmatpush1.bf16.msra.mxu0 0
      %1363 = vmatprep.subr.bf16.mxu0 0
      %1364 = vmatpush1.bf16.msra.mxu0 0
      %1365 = vmatprep.subr.bf16.mxu0 0
      %1366 = vmatpush1.bf16.msra.mxu0 0
      %1367 = vmatprep.mubr.bf16.mxu0 0
      %1368 = vmatmul.mubr.bf16.gmra.mrb[0].mxu0 %v1327
      %v1369 = vpop.f32.mrb[0].mxu0
      %v1370 = vadd.f32 0.0, %v1369
      %v1371 = vpop.f32.mrb[0].mxu0
      %v1372 = vadd.f32 0.0, %v1371
      %v1373 = vpop.f32.mrb[0].mxu0
      %v1374 = vpop.f32.mrb[0].mxu0
      %1375 = vdwg.mxu0
      %1377 = vset.pattern.permute.xlu0 0
      %1378 = vperm.xlu0 %1377, %v1323
      %v1379 = vpop.permute.xlu0 %1378
      %v1381 = vadd.f32 %v1379, %v1370
      %v1382 = vadd.f32 %v1379, %v1372
      %v1383 = vmul.f32 %v1381, 0.5
      %v1384 = vmul.f32 %v1382, 0.5
      %v1385 = vmul.f32 %v1381, 0.70710677
      %v1386 = vmul.f32 %v1382, 0.70710677
      %v1387 = vand.u32 2147483647, %v1385
      %v1388 = vand.u32 2147483647, %v1386
      %v1389 = vmul.f32 %v1387, 0.3275911
      %v1390 = vmul.f32 %v1388, 0.3275911
      %v1391 = vadd.f32 %v1389, 1.0
      %v1392 = vadd.f32 %v1390, 1.0
      %v1393 = vrcp.pop %v1391
      %v1394 = vrcp.pop %v1392
      %v1395 = vmul.f32 %v1393, 1.0614054
      %v1396 = vmul.f32 %v1394, 1.0614054
      %v1397 = vadd.f32 %v1395, -1.4531521
      %v1398 = vadd.f32 %v1396, -1.4531521
      %v1399 = vmul.f32 %v1397, %v1393
      %v1400 = vmul.f32 %v1398, %v1394
      %v1401 = vadd.f32 %v1399, 1.4214138
      %v1402 = vadd.f32 %v1400, 1.4214138
      %v1403 = vmul.f32 %v1401, %v1393
      %v1404 = vmul.f32 %v1402, %v1394
      %v1405 = vadd.f32 %v1403, -0.28449672
      %v1406 = vadd.f32 %v1404, -0.28449672
      %v1407 = vmul.f32 %v1405, %v1393
      %v1408 = vmul.f32 %v1406, %v1394
      %v1409 = vadd.f32 %v1407, 0.2548296
      %v1410 = vadd.f32 %v1408, 0.2548296
      %v1411 = vmul.f32 %v1409, %v1393
      %v1412 = vmul.f32 %v1410, %v1394
      %v1413 = vsub.f32 0.0, %v1387
      %v1414 = vsub.f32 0.0, %v1388
      %v1415 = vmul.f32 %v1413, %v1387
      %v1416 = vmul.f32 %v1414, %v1388
      %v1417 = vmul.f32 %v1415, 1.442695
      %v1418 = vpow.pop %v1417
      %v1419 = vmul.f32 %v1416, 1.442695
      %v1420 = vpow.pop %v1419
      %v1421 = vmul.f32 %v1411, %v1418
      %v1422 = vmul.f32 %v1412, %v1420
      %v1423 = vsub.f32 1.0, %v1421
      %v1424 = vsub.f32 1.0, %v1422
      %vm1425 = vcmp.lt.f32.partialorder %v1385, 0.0
      %vm1426 = vcmp.lt.f32.partialorder %v1386, 0.0
      %v1427 = vsub.f32 0.0, %v1423
      %v1428 = vsub.f32 0.0, %v1424
      %v1429 = vsel %vm1425, %v1427, %v1423
      %v1430 = vsel %vm1426, %v1428, %v1424
      %v1431 = vadd.f32 %v1429, 1.0
      %v1432 = vadd.f32 %v1430, 1.0
      %v1433 = vmul.f32 %v1383, %v1431
      %v1434 = vmul.f32 %v1384, %v1432
      %v1435 = vld [vmem:[%s17] sm:$0x7]
      %v1436 = vld [vmem:[%s16] sm:$0x3]
      %v1437 = vpack.c.bf16 %v1433, %v1433
      %v1438 = vpack.c.bf16 %v1434, %v1434
      %v1440 = vsel %vm645, %v1436, 0
      %v1443 = vsel %vm649, %v1437, 0
      %v1446 = vsel %vm649, %v1438, 0
      %1448 = vmatprep.subr.bf16.mxu0 %v1446
      %1449 = vmatpush1.bf16.msra.mxu0 %v1443
      %1450 = vmatprep.subr.bf16.mxu0 0
      %1451 = vmatpush1.bf16.msra.mxu0 0
      %1452 = vmatprep.subr.bf16.mxu0 0
      %1453 = vmatpush1.bf16.msra.mxu0 0
      %1454 = vmatprep.subr.bf16.mxu0 0
      %1455 = vmatpush1.bf16.msra.mxu0 0
      %1456 = vmatprep.subr.bf16.mxu0 0
      %1457 = vmatpush1.bf16.msra.mxu0 0
      %1458 = vmatprep.subr.bf16.mxu0 0
      %1459 = vmatpush1.bf16.msra.mxu0 0
      %1460 = vmatprep.subr.bf16.mxu0 0
      %1461 = vmatpush1.bf16.msra.mxu0 0
      %1462 = vmatprep.subr.bf16.mxu0 0
      %1463 = vmatpush1.bf16.msra.mxu0 0
      %1464 = vmatprep.subr.bf16.mxu0 0
      %1465 = vmatpush1.bf16.msra.mxu0 0
      %1466 = vmatprep.subr.bf16.mxu0 0
      %1467 = vmatpush1.bf16.msra.mxu0 0
      %1468 = vmatprep.subr.bf16.mxu0 0
      %1469 = vmatpush1.bf16.msra.mxu0 0
      %1470 = vmatprep.subr.bf16.mxu0 0
      %1471 = vmatpush1.bf16.msra.mxu0 0
      %1472 = vmatprep.subr.bf16.mxu0 0
      %1473 = vmatpush1.bf16.msra.mxu0 0
      %1474 = vmatprep.subr.bf16.mxu0 0
      %1475 = vmatpush1.bf16.msra.mxu0 0
      %1476 = vmatprep.subr.bf16.mxu0 0
      %1477 = vmatpush1.bf16.msra.mxu0 0
      %1478 = vmatprep.subr.bf16.mxu0 0
      %1479 = vmatpush1.bf16.msra.mxu0 0
      %1480 = vmatprep.mubr.bf16.mxu0 0
      %1481 = vmatmul.mubr.bf16.gmra.mrb[0].mxu0 %v1440
      %v1482 = vpop.f32.mrb[0].mxu0
      %v1483 = vadd.f32 0.0, %v1482
      %v1484 = vpop.f32.mrb[0].mxu0
      %v1485 = vadd.f32 0.0, %v1484
      %v1486 = vpop.f32.mrb[0].mxu0
      %v1487 = vpop.f32.mrb[0].mxu0
      %1488 = vdwg.mxu0
      %1490 = vset.pattern.permute.xlu0 0
      %1491 = vperm.xlu0 %1490, %v1435
      %v1492 = vpop.permute.xlu0 %1491
      %v1494 = vadd.f32 %v1492, %v1483
      %v1495 = vadd.f32 %v1492, %v1485
      %v1496 = vpack.c.bf16 %v1494, %v1494
      %v1497 = vpack.c.bf16 %v1495, %v1495
      %v1498 = vld [vmem:[%s8] sm:$0xff]
      %v1499 = vld [vmem:[%s8 + $0x8] sm:$0xff]
      %v1500 = vld [vmem:[%s8 + $0x10] sm:$0xff]
      %v1501 = vld [vmem:[%s8 + $0x18] sm:$0xff]
      %v1502 = vld [vmem:[%s8 + $0x20] sm:$0xff]
      %v1503 = vld [vmem:[%s8 + $0x28] sm:$0xff]
      %v1504 = vld [vmem:[%s8 + $0x30] sm:$0xff]
      %v1505 = vld [vmem:[%s8 + $0x38] sm:$0xff]
      %v1506 = vld [vmem:[%s8 + $0x40] sm:$0xff]
      %v1507 = vld [vmem:[%s8 + $0x48] sm:$0xff]
      %v1508 = vld [vmem:[%s8 + $0x50] sm:$0xff]
      %v1509 = vld [vmem:[%s8 + $0x58] sm:$0xff]
      %v1510 = vld [vmem:[%s8 + $0x60] sm:$0xff]
      %v1511 = vld [vmem:[%s8 + $0x68] sm:$0xff]
      %v1512 = vld [vmem:[%s8 + $0x70] sm:$0xff]
      %v1513 = vld [vmem:[%s8 + $0x78] sm:$0xff]
      %v1514 = vld [vmem:[%s8 + $0x80] sm:$0xff]
      %v1515 = vld [vmem:[%s8 + $0x88] sm:$0xff]
      %v1516 = vld [vmem:[%s8 + $0x90] sm:$0xff]
      %v1517 = vld [vmem:[%s8 + $0x98] sm:$0xff]
      %v1518 = vld [vmem:[%s8 + $0xa0] sm:$0xff]
      %v1519 = vld [vmem:[%s8 + $0xa8] sm:$0xff]
      %v1520 = vld [vmem:[%s8 + $0xb0] sm:$0xff]
      %v1521 = vld [vmem:[%s8 + $0xb8] sm:$0xff]
      %v1522 = vld [vmem:[%s8 + $0xc0] sm:$0xff]
      %v1523 = vld [vmem:[%s8 + $0xc8] sm:$0xff]
      %v1524 = vld [vmem:[%s8 + $0xd0] sm:$0xff]
      %v1525 = vld [vmem:[%s8 + $0xd8] sm:$0xff]
      %v1526 = vld [vmem:[%s8 + $0xe0] sm:$0xff]
      %v1527 = vld [vmem:[%s8 + $0xe8] sm:$0xff]
      %v1528 = vld [vmem:[%s8 + $0xf0] sm:$0xff]
      %v1529 = vld [vmem:[%s8 + $0xf8] sm:$0xff]
      %v1530 = vld [vmem:[%s8 + $0x100] sm:$0xff]
      %v1531 = vld [vmem:[%s8 + $0x108] sm:$0xff]
      %v1532 = vld [vmem:[%s8 + $0x110] sm:$0xff]
      %v1533 = vld [vmem:[%s8 + $0x118] sm:$0xff]
      %v1534 = vld [vmem:[%s8 + $0x120] sm:$0xff]
      %v1535 = vld [vmem:[%s8 + $0x128] sm:$0xff]
      %v1536 = vld [vmem:[%s8 + $0x130] sm:$0xff]
      %v1537 = vld [vmem:[%s8 + $0x138] sm:$0xff]
      %v1538 = vld [vmem:[%s8 + $0x140] sm:$0xff]
      %v1539 = vld [vmem:[%s8 + $0x148] sm:$0xff]
      %v1540 = vld [vmem:[%s8 + $0x150] sm:$0xff]
      %v1541 = vld [vmem:[%s8 + $0x158] sm:$0xff]
      %v1542 = vld [vmem:[%s8 + $0x160] sm:$0xff]
      %v1543 = vld [vmem:[%s8 + $0x168] sm:$0xff]
      %v1544 = vld [vmem:[%s8 + $0x170] sm:$0xff]
      %v1545 = vld [vmem:[%s8 + $0x178] sm:$0xff]
      %v1546 = vld [vmem:[%s8 + $0x180] sm:$0xff]
      %v1547 = vld [vmem:[%s8 + $0x188] sm:$0xff]
      %v1548 = vld [vmem:[%s8 + $0x190] sm:$0xff]
      %v1549 = vld [vmem:[%s8 + $0x198] sm:$0xff]
      %v1550 = vld [vmem:[%s8 + $0x1a0] sm:$0xff]
      %v1551 = vld [vmem:[%s8 + $0x1a8] sm:$0xff]
      %v1552 = vld [vmem:[%s8 + $0x1b0] sm:$0xff]
      %v1553 = vld [vmem:[%s8 + $0x1b8] sm:$0xff]
      %v1554 = vld [vmem:[%s8 + $0x1c0] sm:$0xff]
      %v1555 = vld [vmem:[%s8 + $0x1c8] sm:$0xff]
      %v1556 = vld [vmem:[%s8 + $0x1d0] sm:$0xff]
      %v1557 = vld [vmem:[%s8 + $0x1d8] sm:$0xff]
      %v1558 = vld [vmem:[%s8 + $0x1e0] sm:$0xff]
      %v1559 = vld [vmem:[%s8 + $0x1e8] sm:$0xff]
      %v1560 = vld [vmem:[%s8 + $0x1f0] sm:$0xff]
      %v1561 = vld [vmem:[%s8 + $0x1f8] sm:$0xff]
      %v1562 = vld [vmem:[%s8 + $0x200] sm:$0xff]
      %v1563 = vld [vmem:[%s8 + $0x208] sm:$0xff]
      %v1564 = vld [vmem:[%s8 + $0x210] sm:$0xff]
      %v1565 = vld [vmem:[%s8 + $0x218] sm:$0xff]
      %v1566 = vld [vmem:[%s8 + $0x220] sm:$0xff]
      %v1567 = vld [vmem:[%s8 + $0x228] sm:$0xff]
      %v1568 = vld [vmem:[%s8 + $0x230] sm:$0xff]
      %v1569 = vld [vmem:[%s8 + $0x238] sm:$0xff]
      %v1570 = vld [vmem:[%s8 + $0x240] sm:$0xff]
      %v1571 = vld [vmem:[%s8 + $0x248] sm:$0xff]
      %v1572 = vld [vmem:[%s8 + $0x250] sm:$0xff]
      %v1573 = vld [vmem:[%s8 + $0x258] sm:$0xff]
      %v1574 = vld [vmem:[%s8 + $0x260] sm:$0xff]
      %v1575 = vld [vmem:[%s8 + $0x268] sm:$0xff]
      %v1576 = vld [vmem:[%s8 + $0x270] sm:$0xff]
      %v1577 = vld [vmem:[%s8 + $0x278] sm:$0xff]
      %v1578 = vld [vmem:[%s8 + $0x280] sm:$0xff]
      %v1579 = vld [vmem:[%s8 + $0x288] sm:$0xff]
      %v1580 = vld [vmem:[%s8 + $0x290] sm:$0xff]
      %v1581 = vld [vmem:[%s8 + $0x298] sm:$0xff]
      %v1582 = vld [vmem:[%s8 + $0x2a0] sm:$0xff]
      %v1583 = vld [vmem:[%s8 + $0x2a8] sm:$0xff]
      %v1584 = vld [vmem:[%s8 + $0x2b0] sm:$0xff]
      %v1585 = vld [vmem:[%s8 + $0x2b8] sm:$0xff]
      %v1586 = vld [vmem:[%s8 + $0x2c0] sm:$0xff]
      %v1587 = vld [vmem:[%s8 + $0x2c8] sm:$0xff]
      %v1588 = vld [vmem:[%s8 + $0x2d0] sm:$0xff]
      %v1589 = vld [vmem:[%s8 + $0x2d8] sm:$0xff]
      %v1590 = vld [vmem:[%s8 + $0x2e0] sm:$0xff]
      %v1591 = vld [vmem:[%s8 + $0x2e8] sm:$0xff]
      %v1592 = vld [vmem:[%s8 + $0x2f0] sm:$0xff]
      %v1593 = vld [vmem:[%s8 + $0x2f8] sm:$0xff]
      %v1594 = vld [vmem:[%s8 + $0x300] sm:$0xff]
      %v1595 = vld [vmem:[%s8 + $0x308] sm:$0xff]
      %v1596 = vld [vmem:[%s8 + $0x310] sm:$0xff]
      %v1597 = vld [vmem:[%s8 + $0x318] sm:$0xff]
      %v1598 = vld [vmem:[%s8 + $0x320] sm:$0xff]
      %v1599 = vld [vmem:[%s8 + $0x328] sm:$0xff]
      %v1600 = vld [vmem:[%s8 + $0x330] sm:$0xff]
      %v1601 = vld [vmem:[%s8 + $0x338] sm:$0xff]
      %v1602 = vld [vmem:[%s8 + $0x340] sm:$0xff]
      %v1603 = vld [vmem:[%s8 + $0x348] sm:$0xff]
      %v1604 = vld [vmem:[%s8 + $0x350] sm:$0xff]
      %v1605 = vld [vmem:[%s8 + $0x358] sm:$0xff]
      %v1606 = vld [vmem:[%s8 + $0x360] sm:$0xff]
      %v1607 = vld [vmem:[%s8 + $0x368] sm:$0xff]
      %v1608 = vld [vmem:[%s8 + $0x370] sm:$0xff]
      %v1609 = vld [vmem:[%s8 + $0x378] sm:$0xff]
      %v1610 = vld [vmem:[%s8 + $0x380] sm:$0xff]
      %v1611 = vld [vmem:[%s8 + $0x388] sm:$0xff]
      %v1612 = vld [vmem:[%s8 + $0x390] sm:$0xff]
      %v1613 = vld [vmem:[%s8 + $0x398] sm:$0xff]
      %v1614 = vld [vmem:[%s8 + $0x3a0] sm:$0xff]
      %v1615 = vld [vmem:[%s8 + $0x3a8] sm:$0xff]
      %v1616 = vld [vmem:[%s8 + $0x3b0] sm:$0xff]
      %v1617 = vld [vmem:[%s8 + $0x3b8] sm:$0xff]
      %v1618 = vld [vmem:[%s8 + $0x3c0] sm:$0xff]
      %v1619 = vld [vmem:[%s8 + $0x3c8] sm:$0xff]
      %v1620 = vld [vmem:[%s8 + $0x3d0] sm:$0xff]
      %v1621 = vld [vmem:[%s8 + $0x3d8] sm:$0xff]
      %v1622 = vld [vmem:[%s8 + $0x3e0] sm:$0xff]
      %v1623 = vld [vmem:[%s8 + $0x3e8] sm:$0xff]
      %v1624 = vld [vmem:[%s8 + $0x3f0] sm:$0xff]
      %v1625 = vld [vmem:[%s8 + $0x3f8] sm:$0xff]
      %v1626 = vld [vmem:[%s8 + $0x400] sm:$0xff]
      %v1627 = vld [vmem:[%s8 + $0x408] sm:$0xff]
      %v1628 = vld [vmem:[%s8 + $0x410] sm:$0xff]
      %v1629 = vld [vmem:[%s8 + $0x418] sm:$0xff]
      %v1630 = vld [vmem:[%s8 + $0x420] sm:$0xff]
      %v1631 = vld [vmem:[%s8 + $0x428] sm:$0xff]
      %v1632 = vld [vmem:[%s8 + $0x430] sm:$0xff]
      %v1633 = vld [vmem:[%s8 + $0x438] sm:$0xff]
      %v1634 = vld [vmem:[%s8 + $0x440] sm:$0xff]
      %v1635 = vld [vmem:[%s8 + $0x448] sm:$0xff]
      %v1636 = vld [vmem:[%s8 + $0x450] sm:$0xff]
      %v1637 = vld [vmem:[%s8 + $0x458] sm:$0xff]
      %v1638 = vld [vmem:[%s8 + $0x460] sm:$0xff]
      %v1639 = vld [vmem:[%s8 + $0x468] sm:$0xff]
      %v1640 = vld [vmem:[%s8 + $0x470] sm:$0xff]
      %v1641 = vld [vmem:[%s8 + $0x478] sm:$0xff]
      %v1642 = vld [vmem:[%s8 + $0x480] sm:$0xff]
      %v1643 = vld [vmem:[%s8 + $0x488] sm:$0xff]
      %v1644 = vld [vmem:[%s8 + $0x490] sm:$0xff]
      %v1645 = vld [vmem:[%s8 + $0x498] sm:$0xff]
      %v1646 = vld [vmem:[%s8 + $0x4a0] sm:$0xff]
      %v1647 = vld [vmem:[%s8 + $0x4a8] sm:$0xff]
      %v1648 = vld [vmem:[%s8 + $0x4b0] sm:$0xff]
      %v1649 = vld [vmem:[%s8 + $0x4b8] sm:$0xff]
      %v1650 = vld [vmem:[%s8 + $0x4c0] sm:$0xff]
      %v1651 = vld [vmem:[%s8 + $0x4c8] sm:$0xff]
      %v1652 = vld [vmem:[%s8 + $0x4d0] sm:$0xff]
      %v1653 = vld [vmem:[%s8 + $0x4d8] sm:$0xff]
      %v1654 = vld [vmem:[%s8 + $0x4e0] sm:$0xff]
      %v1655 = vld [vmem:[%s8 + $0x4e8] sm:$0xff]
      %v1656 = vld [vmem:[%s8 + $0x4f0] sm:$0xff]
      %v1657 = vld [vmem:[%s8 + $0x4f8] sm:$0xff]
      %v1658 = vld [vmem:[%s8 + $0x500] sm:$0xff]
      %v1659 = vld [vmem:[%s8 + $0x508] sm:$0xff]
      %v1660 = vld [vmem:[%s8 + $0x510] sm:$0xff]
      %v1661 = vld [vmem:[%s8 + $0x518] sm:$0xff]
      %v1662 = vld [vmem:[%s8 + $0x520] sm:$0xff]
      %v1663 = vld [vmem:[%s8 + $0x528] sm:$0xff]
      %v1664 = vld [vmem:[%s8 + $0x530] sm:$0xff]
      %v1665 = vld [vmem:[%s8 + $0x538] sm:$0xff]
      %v1666 = vld [vmem:[%s8 + $0x540] sm:$0xff]
      %v1667 = vld [vmem:[%s8 + $0x548] sm:$0xff]
      %v1668 = vld [vmem:[%s8 + $0x550] sm:$0xff]
      %v1669 = vld [vmem:[%s8 + $0x558] sm:$0xff]
      %v1670 = vld [vmem:[%s8 + $0x560] sm:$0xff]
      %v1671 = vld [vmem:[%s8 + $0x568] sm:$0xff]
      %v1672 = vld [vmem:[%s8 + $0x570] sm:$0xff]
      %v1673 = vld [vmem:[%s8 + $0x578] sm:$0xff]
      %v1674 = vld [vmem:[%s8 + $0x580] sm:$0xff]
      %v1675 = vld [vmem:[%s8 + $0x588] sm:$0xff]
      %v1676 = vld [vmem:[%s8 + $0x590] sm:$0xff]
      %v1677 = vld [vmem:[%s8 + $0x598] sm:$0xff]
      %v1678 = vld [vmem:[%s8 + $0x5a0] sm:$0xff]
      %v1679 = vld [vmem:[%s8 + $0x5a8] sm:$0xff]
      %v1680 = vld [vmem:[%s8 + $0x5b0] sm:$0xff]
      %v1681 = vld [vmem:[%s8 + $0x5b8] sm:$0xff]
      %v1682 = vld [vmem:[%s8 + $0x5c0] sm:$0xff]
      %v1683 = vld [vmem:[%s8 + $0x5c8] sm:$0xff]
      %v1684 = vld [vmem:[%s8 + $0x5d0] sm:$0xff]
      %v1685 = vld [vmem:[%s8 + $0x5d8] sm:$0xff]
      %v1686 = vld [vmem:[%s8 + $0x5e0] sm:$0xff]
      %v1687 = vld [vmem:[%s8 + $0x5e8] sm:$0xff]
      %v1688 = vld [vmem:[%s8 + $0x5f0] sm:$0xff]
      %v1689 = vld [vmem:[%s8 + $0x5f8] sm:$0xff]
      %v1690 = vld [vmem:[%s8 + $0x600] sm:$0xff]
      %v1691 = vld [vmem:[%s8 + $0x608] sm:$0xff]
      %v1692 = vld [vmem:[%s8 + $0x610] sm:$0xff]
      %v1693 = vld [vmem:[%s8 + $0x618] sm:$0xff]
      %v1694 = vld [vmem:[%s8 + $0x620] sm:$0xff]
      %v1695 = vld [vmem:[%s8 + $0x628] sm:$0xff]
      %v1696 = vld [vmem:[%s8 + $0x630] sm:$0xff]
      %v1697 = vld [vmem:[%s8 + $0x638] sm:$0xff]
      %v1698 = vld [vmem:[%s8 + $0x640] sm:$0xff]
      %v1699 = vld [vmem:[%s8 + $0x648] sm:$0xff]
      %v1700 = vld [vmem:[%s8 + $0x650] sm:$0xff]
      %v1701 = vld [vmem:[%s8 + $0x658] sm:$0xff]
      %v1702 = vld [vmem:[%s8 + $0x660] sm:$0xff]
      %v1703 = vld [vmem:[%s8 + $0x668] sm:$0xff]
      %v1704 = vld [vmem:[%s8 + $0x670] sm:$0xff]
      %v1705 = vld [vmem:[%s8 + $0x678] sm:$0xff]
      %v1706 = vld [vmem:[%s8 + $0x680] sm:$0xff]
      %v1707 = vld [vmem:[%s8 + $0x688] sm:$0xff]
      %v1708 = vld [vmem:[%s8 + $0x690] sm:$0xff]
      %v1709 = vld [vmem:[%s8 + $0x698] sm:$0xff]
      %v1710 = vld [vmem:[%s8 + $0x6a0] sm:$0xff]
      %v1711 = vld [vmem:[%s8 + $0x6a8] sm:$0xff]
      %v1712 = vld [vmem:[%s8 + $0x6b0] sm:$0xff]
      %v1713 = vld [vmem:[%s8 + $0x6b8] sm:$0xff]
      %v1714 = vld [vmem:[%s8 + $0x6c0] sm:$0xff]
      %v1715 = vld [vmem:[%s8 + $0x6c8] sm:$0xff]
      %v1716 = vld [vmem:[%s8 + $0x6d0] sm:$0xff]
      %v1717 = vld [vmem:[%s8 + $0x6d8] sm:$0xff]
      %v1718 = vld [vmem:[%s8 + $0x6e0] sm:$0xff]
      %v1719 = vld [vmem:[%s8 + $0x6e8] sm:$0xff]
      %v1720 = vld [vmem:[%s8 + $0x6f0] sm:$0xff]
      %v1721 = vld [vmem:[%s8 + $0x6f8] sm:$0xff]
      %v1722 = vld [vmem:[%s8 + $0x700] sm:$0xff]
      %v1723 = vld [vmem:[%s8 + $0x708] sm:$0xff]
      %v1724 = vld [vmem:[%s8 + $0x710] sm:$0xff]
      %v1725 = vld [vmem:[%s8 + $0x718] sm:$0xff]
      %v1726 = vld [vmem:[%s8 + $0x720] sm:$0xff]
      %v1727 = vld [vmem:[%s8 + $0x728] sm:$0xff]
      %v1728 = vld [vmem:[%s8 + $0x730] sm:$0xff]
      %v1729 = vld [vmem:[%s8 + $0x738] sm:$0xff]
      %v1730 = vld [vmem:[%s8 + $0x740] sm:$0xff]
      %v1731 = vld [vmem:[%s8 + $0x748] sm:$0xff]
      %v1732 = vld [vmem:[%s8 + $0x750] sm:$0xff]
      %v1733 = vld [vmem:[%s8 + $0x758] sm:$0xff]
      %v1734 = vld [vmem:[%s8 + $0x760] sm:$0xff]
      %v1735 = vld [vmem:[%s8 + $0x768] sm:$0xff]
      %v1736 = vld [vmem:[%s8 + $0x770] sm:$0xff]
      %v1737 = vld [vmem:[%s8 + $0x778] sm:$0xff]
      %v1738 = vld [vmem:[%s8 + $0x780] sm:$0xff]
      %v1739 = vld [vmem:[%s8 + $0x788] sm:$0xff]
      %v1740 = vld [vmem:[%s8 + $0x790] sm:$0xff]
      %v1741 = vld [vmem:[%s8 + $0x798] sm:$0xff]
      %v1742 = vld [vmem:[%s8 + $0x7a0] sm:$0xff]
      %v1743 = vld [vmem:[%s8 + $0x7a8] sm:$0xff]
      %v1744 = vld [vmem:[%s8 + $0x7b0] sm:$0xff]
      %v1745 = vld [vmem:[%s8 + $0x7b8] sm:$0xff]
      %v1746 = vld [vmem:[%s8 + $0x7c0] sm:$0xff]
      %v1747 = vld [vmem:[%s8 + $0x7c8] sm:$0xff]
      %v1748 = vld [vmem:[%s8 + $0x7d0] sm:$0xff]
      %v1749 = vld [vmem:[%s8 + $0x7d8] sm:$0xff]
      %v1750 = vld [vmem:[%s8 + $0x7e0] sm:$0xff]
      %v1751 = vld [vmem:[%s8 + $0x7e8] sm:$0xff]
      %v1752 = vld [vmem:[%s8 + $0x7f0] sm:$0xff]
      %v1753 = vld [vmem:[%s8 + $0x7f8] sm:$0xff]
      %v1754 = vld [vmem:[%s8 + $0x800] sm:$0xff]
      %v1755 = vld [vmem:[%s8 + $0x808] sm:$0xff]
      %v1756 = vld [vmem:[%s8 + $0x810] sm:$0xff]
      %v1757 = vld [vmem:[%s8 + $0x818] sm:$0xff]
      %v1758 = vld [vmem:[%s8 + $0x820] sm:$0xff]
      %v1759 = vld [vmem:[%s8 + $0x828] sm:$0xff]
      %v1760 = vld [vmem:[%s8 + $0x830] sm:$0xff]
      %v1761 = vld [vmem:[%s8 + $0x838] sm:$0xff]
      %v1762 = vld [vmem:[%s8 + $0x840] sm:$0xff]
      %v1763 = vld [vmem:[%s8 + $0x848] sm:$0xff]
      %v1764 = vld [vmem:[%s8 + $0x850] sm:$0xff]
      %v1765 = vld [vmem:[%s8 + $0x858] sm:$0xff]
      %v1766 = vld [vmem:[%s8 + $0x860] sm:$0xff]
      %v1767 = vld [vmem:[%s8 + $0x868] sm:$0xff]
      %v1768 = vld [vmem:[%s8 + $0x870] sm:$0xff]
      %v1769 = vld [vmem:[%s8 + $0x878] sm:$0xff]
      %v1770 = vld [vmem:[%s8 + $0x880] sm:$0xff]
      %v1771 = vld [vmem:[%s8 + $0x888] sm:$0xff]
      %v1772 = vld [vmem:[%s8 + $0x890] sm:$0xff]
      %v1773 = vld [vmem:[%s8 + $0x898] sm:$0xff]
      %v1774 = vld [vmem:[%s8 + $0x8a0] sm:$0xff]
      %v1775 = vld [vmem:[%s8 + $0x8a8] sm:$0xff]
      %v1776 = vld [vmem:[%s8 + $0x8b0] sm:$0xff]
      %v1777 = vld [vmem:[%s8 + $0x8b8] sm:$0xff]
      %v1778 = vld [vmem:[%s8 + $0x8c0] sm:$0xff]
      %v1779 = vld [vmem:[%s8 + $0x8c8] sm:$0xff]
      %v1780 = vld [vmem:[%s8 + $0x8d0] sm:$0xff]
      %v1781 = vld [vmem:[%s8 + $0x8d8] sm:$0xff]
      %v1782 = vld [vmem:[%s8 + $0x8e0] sm:$0xff]
      %v1783 = vld [vmem:[%s8 + $0x8e8] sm:$0xff]
      %v1784 = vld [vmem:[%s8 + $0x8f0] sm:$0xff]
      %v1785 = vld [vmem:[%s8 + $0x8f8] sm:$0xff]
      %v1786 = vld [vmem:[%s8 + $0x900] sm:$0xff]
      %v1787 = vld [vmem:[%s8 + $0x908] sm:$0xff]
      %v1788 = vld [vmem:[%s8 + $0x910] sm:$0xff]
      %v1789 = vld [vmem:[%s8 + $0x918] sm:$0xff]
      %v1790 = vld [vmem:[%s8 + $0x920] sm:$0xff]
      %v1791 = vld [vmem:[%s8 + $0x928] sm:$0xff]
      %v1792 = vld [vmem:[%s8 + $0x930] sm:$0xff]
      %v1793 = vld [vmem:[%s8 + $0x938] sm:$0xff]
      %v1794 = vld [vmem:[%s8 + $0x940] sm:$0xff]
      %v1795 = vld [vmem:[%s8 + $0x948] sm:$0xff]
      %v1796 = vld [vmem:[%s8 + $0x950] sm:$0xff]
      %v1797 = vld [vmem:[%s8 + $0x958] sm:$0xff]
      %v1798 = vld [vmem:[%s8 + $0x960] sm:$0xff]
      %v1799 = vld [vmem:[%s8 + $0x968] sm:$0xff]
      %v1800 = vld [vmem:[%s8 + $0x970] sm:$0xff]
      %v1801 = vld [vmem:[%s8 + $0x978] sm:$0xff]
      %v1802 = vld [vmem:[%s8 + $0x980] sm:$0xff]
      %v1803 = vld [vmem:[%s8 + $0x988] sm:$0xff]
      %v1804 = vld [vmem:[%s8 + $0x990] sm:$0xff]
      %v1805 = vld [vmem:[%s8 + $0x998] sm:$0xff]
      %v1806 = vld [vmem:[%s8 + $0x9a0] sm:$0xff]
      %v1807 = vld [vmem:[%s8 + $0x9a8] sm:$0xff]
      %v1808 = vld [vmem:[%s8 + $0x9b0] sm:$0xff]
      %v1809 = vld [vmem:[%s8 + $0x9b8] sm:$0xff]
      %v1810 = vld [vmem:[%s8 + $0x9c0] sm:$0xff]
      %v1811 = vld [vmem:[%s8 + $0x9c8] sm:$0xff]
      %v1812 = vld [vmem:[%s8 + $0x9d0] sm:$0xff]
      %v1813 = vld [vmem:[%s8 + $0x9d8] sm:$0xff]
      %v1814 = vld [vmem:[%s8 + $0x9e0] sm:$0xff]
      %v1815 = vld [vmem:[%s8 + $0x9e8] sm:$0xff]
      %v1816 = vld [vmem:[%s8 + $0x9f0] sm:$0xff]
      %v1817 = vld [vmem:[%s8 + $0x9f8] sm:$0xff]
      %v1818 = vld [vmem:[%s8 + $0xa00] sm:$0xff]
      %v1819 = vld [vmem:[%s8 + $0xa08] sm:$0xff]
      %v1820 = vld [vmem:[%s8 + $0xa10] sm:$0xff]
      %v1821 = vld [vmem:[%s8 + $0xa18] sm:$0xff]
      %v1822 = vld [vmem:[%s8 + $0xa20] sm:$0xff]
      %v1823 = vld [vmem:[%s8 + $0xa28] sm:$0xff]
      %v1824 = vld [vmem:[%s8 + $0xa30] sm:$0xff]
      %v1825 = vld [vmem:[%s8 + $0xa38] sm:$0xff]
      %v1826 = vld [vmem:[%s8 + $0xa40] sm:$0xff]
      %v1827 = vld [vmem:[%s8 + $0xa48] sm:$0xff]
      %v1828 = vld [vmem:[%s8 + $0xa50] sm:$0xff]
      %v1829 = vld [vmem:[%s8 + $0xa58] sm:$0xff]
      %v1830 = vld [vmem:[%s8 + $0xa60] sm:$0xff]
      %v1831 = vld [vmem:[%s8 + $0xa68] sm:$0xff]
      %v1832 = vld [vmem:[%s8 + $0xa70] sm:$0xff]
      %v1833 = vld [vmem:[%s8 + $0xa78] sm:$0xff]
      %v1834 = vld [vmem:[%s8 + $0xa80] sm:$0xff]
      %v1835 = vld [vmem:[%s8 + $0xa88] sm:$0xff]
      %v1836 = vld [vmem:[%s8 + $0xa90] sm:$0xff]
      %v1837 = vld [vmem:[%s8 + $0xa98] sm:$0xff]
      %v1838 = vld [vmem:[%s8 + $0xaa0] sm:$0xff]
      %v1839 = vld [vmem:[%s8 + $0xaa8] sm:$0xff]
      %v1840 = vld [vmem:[%s8 + $0xab0] sm:$0xff]
      %v1841 = vld [vmem:[%s8 + $0xab8] sm:$0xff]
      %v1842 = vld [vmem:[%s8 + $0xac0] sm:$0xff]
      %v1843 = vld [vmem:[%s8 + $0xac8] sm:$0xff]
      %v1844 = vld [vmem:[%s8 + $0xad0] sm:$0xff]
      %v1845 = vld [vmem:[%s8 + $0xad8] sm:$0xff]
      %v1846 = vld [vmem:[%s8 + $0xae0] sm:$0xff]
      %v1847 = vld [vmem:[%s8 + $0xae8] sm:$0xff]
      %v1848 = vld [vmem:[%s8 + $0xaf0] sm:$0xff]
      %v1849 = vld [vmem:[%s8 + $0xaf8] sm:$0xff]
      %v1850 = vld [vmem:[%s8 + $0xb00] sm:$0xff]
      %v1851 = vld [vmem:[%s8 + $0xb08] sm:$0xff]
      %v1852 = vld [vmem:[%s8 + $0xb10] sm:$0xff]
      %v1853 = vld [vmem:[%s8 + $0xb18] sm:$0xff]
      %v1854 = vld [vmem:[%s8 + $0xb20] sm:$0xff]
      %v1855 = vld [vmem:[%s8 + $0xb28] sm:$0xff]
      %v1856 = vld [vmem:[%s8 + $0xb30] sm:$0xff]
      %v1857 = vld [vmem:[%s8 + $0xb38] sm:$0xff]
      %v1858 = vld [vmem:[%s8 + $0xb40] sm:$0xff]
      %v1859 = vld [vmem:[%s8 + $0xb48] sm:$0xff]
      %v1860 = vld [vmem:[%s8 + $0xb50] sm:$0xff]
      %v1861 = vld [vmem:[%s8 + $0xb58] sm:$0xff]
      %v1862 = vld [vmem:[%s8 + $0xb60] sm:$0xff]
      %v1863 = vld [vmem:[%s8 + $0xb68] sm:$0xff]
      %v1864 = vld [vmem:[%s8 + $0xb70] sm:$0xff]
      %v1865 = vld [vmem:[%s8 + $0xb78] sm:$0xff]
      %v1866 = vld [vmem:[%s8 + $0xb80] sm:$0xff]
      %v1867 = vld [vmem:[%s8 + $0xb88] sm:$0xff]
      %v1868 = vld [vmem:[%s8 + $0xb90] sm:$0xff]
      %v1869 = vld [vmem:[%s8 + $0xb98] sm:$0xff]
      %v1870 = vld [vmem:[%s8 + $0xba0] sm:$0xff]
      %v1871 = vld [vmem:[%s8 + $0xba8] sm:$0xff]
      %v1872 = vld [vmem:[%s8 + $0xbb0] sm:$0xff]
      %v1873 = vld [vmem:[%s8 + $0xbb8] sm:$0xff]
      %v1874 = vld [vmem:[%s8 + $0xbc0] sm:$0xff]
      %v1875 = vld [vmem:[%s8 + $0xbc8] sm:$0xff]
      %v1876 = vld [vmem:[%s8 + $0xbd0] sm:$0xff]
      %v1877 = vld [vmem:[%s8 + $0xbd8] sm:$0xff]
      %v1878 = vld [vmem:[%s8 + $0xbe0] sm:$0xff]
      %v1879 = vld [vmem:[%s8 + $0xbe8] sm:$0xff]
      %v1880 = vld [vmem:[%s8 + $0xbf0] sm:$0xff]
      %v1881 = vld [vmem:[%s8 + $0xbf8] sm:$0xff]
      %v1882 = vld [vmem:[%s8 + $0xc00] sm:$0xff]
      %v1883 = vld [vmem:[%s8 + $0xc08] sm:$0xff]
      %v1884 = vld [vmem:[%s8 + $0xc10] sm:$0xff]
      %v1885 = vld [vmem:[%s8 + $0xc18] sm:$0xff]
      %v1886 = vld [vmem:[%s8 + $0xc20] sm:$0xff]
      %v1887 = vld [vmem:[%s8 + $0xc28] sm:$0xff]
      %v1888 = vld [vmem:[%s8 + $0xc30] sm:$0xff]
      %v1889 = vld [vmem:[%s8 + $0xc38] sm:$0xff]
      %v1890 = vld [vmem:[%s8 + $0xc40] sm:$0xff]
      %v1891 = vld [vmem:[%s8 + $0xc48] sm:$0xff]
      %v1892 = vld [vmem:[%s8 + $0xc50] sm:$0xff]
      %v1893 = vld [vmem:[%s8 + $0xc58] sm:$0xff]
      %v1894 = vld [vmem:[%s8 + $0xc60] sm:$0xff]
      %v1895 = vld [vmem:[%s8 + $0xc68] sm:$0xff]
      %v1896 = vld [vmem:[%s8 + $0xc70] sm:$0xff]
      %v1897 = vld [vmem:[%s8 + $0xc78] sm:$0xff]
      %v1898 = vld [vmem:[%s8 + $0xc80] sm:$0xff]
      %v1899 = vld [vmem:[%s8 + $0xc88] sm:$0xff]
      %v1900 = vld [vmem:[%s8 + $0xc90] sm:$0xff]
      %v1901 = vld [vmem:[%s8 + $0xc98] sm:$0xff]
      %v1902 = vld [vmem:[%s8 + $0xca0] sm:$0xff]
      %v1903 = vld [vmem:[%s8 + $0xca8] sm:$0xff]
      %v1904 = vld [vmem:[%s8 + $0xcb0] sm:$0xff]
      %v1905 = vld [vmem:[%s8 + $0xcb8] sm:$0xff]
      %v1906 = vld [vmem:[%s8 + $0xcc0] sm:$0xff]
      %v1907 = vld [vmem:[%s8 + $0xcc8] sm:$0xff]
      %v1908 = vld [vmem:[%s8 + $0xcd0] sm:$0xff]
      %v1909 = vld [vmem:[%s8 + $0xcd8] sm:$0xff]
      %v1910 = vld [vmem:[%s8 + $0xce0] sm:$0xff]
      %v1911 = vld [vmem:[%s8 + $0xce8] sm:$0xff]
      %v1912 = vld [vmem:[%s8 + $0xcf0] sm:$0xff]
      %v1913 = vld [vmem:[%s8 + $0xcf8] sm:$0xff]
      %v1914 = vld [vmem:[%s8 + $0xd00] sm:$0xff]
      %v1915 = vld [vmem:[%s8 + $0xd08] sm:$0xff]
      %v1916 = vld [vmem:[%s8 + $0xd10] sm:$0xff]
      %v1917 = vld [vmem:[%s8 + $0xd18] sm:$0xff]
      %v1918 = vld [vmem:[%s8 + $0xd20] sm:$0xff]
      %v1919 = vld [vmem:[%s8 + $0xd28] sm:$0xff]
      %v1920 = vld [vmem:[%s8 + $0xd30] sm:$0xff]
      %v1921 = vld [vmem:[%s8 + $0xd38] sm:$0xff]
      %v1922 = vld [vmem:[%s8 + $0xd40] sm:$0xff]
      %v1923 = vld [vmem:[%s8 + $0xd48] sm:$0xff]
      %v1924 = vld [vmem:[%s8 + $0xd50] sm:$0xff]
      %v1925 = vld [vmem:[%s8 + $0xd58] sm:$0xff]
      %v1926 = vld [vmem:[%s8 + $0xd60] sm:$0xff]
      %v1927 = vld [vmem:[%s8 + $0xd68] sm:$0xff]
      %v1928 = vld [vmem:[%s8 + $0xd70] sm:$0xff]
      %v1929 = vld [vmem:[%s8 + $0xd78] sm:$0xff]
      %v1930 = vld [vmem:[%s8 + $0xd80] sm:$0xff]
      %v1931 = vld [vmem:[%s8 + $0xd88] sm:$0xff]
      %v1932 = vld [vmem:[%s8 + $0xd90] sm:$0xff]
      %v1933 = vld [vmem:[%s8 + $0xd98] sm:$0xff]
      %v1934 = vld [vmem:[%s8 + $0xda0] sm:$0xff]
      %v1935 = vld [vmem:[%s8 + $0xda8] sm:$0xff]
      %v1936 = vld [vmem:[%s8 + $0xdb0] sm:$0xff]
      %v1937 = vld [vmem:[%s8 + $0xdb8] sm:$0xff]
      %v1938 = vld [vmem:[%s8 + $0xdc0] sm:$0xff]
      %v1939 = vld [vmem:[%s8 + $0xdc8] sm:$0xff]
      %v1940 = vld [vmem:[%s8 + $0xdd0] sm:$0xff]
      %v1941 = vld [vmem:[%s8 + $0xdd8] sm:$0xff]
      %v1942 = vld [vmem:[%s8 + $0xde0] sm:$0xff]
      %v1943 = vld [vmem:[%s8 + $0xde8] sm:$0xff]
      %v1944 = vld [vmem:[%s8 + $0xdf0] sm:$0xff]
      %v1945 = vld [vmem:[%s8 + $0xdf8] sm:$0xff]
      %v1946 = vld [vmem:[%s8 + $0xe00] sm:$0xff]
      %v1947 = vld [vmem:[%s8 + $0xe08] sm:$0xff]
      %v1948 = vld [vmem:[%s8 + $0xe10] sm:$0xff]
      %v1949 = vld [vmem:[%s8 + $0xe18] sm:$0xff]
      %v1950 = vld [vmem:[%s8 + $0xe20] sm:$0xff]
      %v1951 = vld [vmem:[%s8 + $0xe28] sm:$0xff]
      %v1952 = vld [vmem:[%s8 + $0xe30] sm:$0xff]
      %v1953 = vld [vmem:[%s8 + $0xe38] sm:$0xff]
      %v1954 = vld [vmem:[%s8 + $0xe40] sm:$0xff]
      %v1955 = vld [vmem:[%s8 + $0xe48] sm:$0xff]
      %v1956 = vld [vmem:[%s8 + $0xe50] sm:$0xff]
      %v1957 = vld [vmem:[%s8 + $0xe58] sm:$0xff]
      %v1958 = vld [vmem:[%s8 + $0xe60] sm:$0xff]
      %v1959 = vld [vmem:[%s8 + $0xe68] sm:$0xff]
      %v1960 = vld [vmem:[%s8 + $0xe70] sm:$0xff]
      %v1961 = vld [vmem:[%s8 + $0xe78] sm:$0xff]
      %v1962 = vld [vmem:[%s8 + $0xe80] sm:$0xff]
      %v1963 = vld [vmem:[%s8 + $0xe88] sm:$0xff]
      %v1964 = vld [vmem:[%s8 + $0xe90] sm:$0xff]
      %v1965 = vld [vmem:[%s8 + $0xe98] sm:$0xff]
      %v1966 = vld [vmem:[%s8 + $0xea0] sm:$0xff]
      %v1967 = vld [vmem:[%s8 + $0xea8] sm:$0xff]
      %v1968 = vld [vmem:[%s8 + $0xeb0] sm:$0xff]
      %v1969 = vld [vmem:[%s8 + $0xeb8] sm:$0xff]
      %v1970 = vld [vmem:[%s8 + $0xec0] sm:$0xff]
      %v1971 = vld [vmem:[%s8 + $0xec8] sm:$0xff]
      %v1972 = vld [vmem:[%s8 + $0xed0] sm:$0xff]
      %v1973 = vld [vmem:[%s8 + $0xed8] sm:$0xff]
      %v1974 = vld [vmem:[%s8 + $0xee0] sm:$0xff]
      %v1975 = vld [vmem:[%s8 + $0xee8] sm:$0xff]
      %v1976 = vld [vmem:[%s8 + $0xef0] sm:$0xff]
      %v1977 = vld [vmem:[%s8 + $0xef8] sm:$0xff]
      %v1978 = vld [vmem:[%s8 + $0xf00] sm:$0xff]
      %v1979 = vld [vmem:[%s8 + $0xf08] sm:$0xff]
      %v1980 = vld [vmem:[%s8 + $0xf10] sm:$0xff]
      %v1981 = vld [vmem:[%s8 + $0xf18] sm:$0xff]
      %v1982 = vld [vmem:[%s8 + $0xf20] sm:$0xff]
      %v1983 = vld [vmem:[%s8 + $0xf28] sm:$0xff]
      %v1984 = vld [vmem:[%s8 + $0xf30] sm:$0xff]
      %v1985 = vld [vmem:[%s8 + $0xf38] sm:$0xff]
      %v1986 = vld [vmem:[%s8 + $0xf40] sm:$0xff]
      %v1987 = vld [vmem:[%s8 + $0xf48] sm:$0xff]
      %v1988 = vld [vmem:[%s8 + $0xf50] sm:$0xff]
      %v1989 = vld [vmem:[%s8 + $0xf58] sm:$0xff]
      %v1990 = vld [vmem:[%s8 + $0xf60] sm:$0xff]
      %v1991 = vld [vmem:[%s8 + $0xf68] sm:$0xff]
      %v1992 = vld [vmem:[%s8 + $0xf70] sm:$0xff]
      %v1993 = vld [vmem:[%s8 + $0xf78] sm:$0xff]
      %v1994 = vld [vmem:[%s8 + $0xf80] sm:$0xff]
      %v1995 = vld [vmem:[%s8 + $0xf88] sm:$0xff]
      %v1996 = vld [vmem:[%s8 + $0xf90] sm:$0xff]
      %v1997 = vld [vmem:[%s8 + $0xf98] sm:$0xff]
      %v1998 = vld [vmem:[%s8 + $0xfa0] sm:$0xff]
      %v1999 = vld [vmem:[%s8 + $0xfa8] sm:$0xff]
      %v2000 = vld [vmem:[%s8 + $0xfb0] sm:$0xff]
      %v2001 = vld [vmem:[%s8 + $0xfb8] sm:$0xff]
      %v2002 = vld [vmem:[%s8 + $0xfc0] sm:$0xff]
      %v2003 = vld [vmem:[%s8 + $0xfc8] sm:$0xff]
      %v2004 = vld [vmem:[%s8 + $0xfd0] sm:$0xff]
      %v2005 = vld [vmem:[%s8 + $0xfd8] sm:$0xff]
      %v2006 = vld [vmem:[%s8 + $0xfe0] sm:$0xff]
      %v2007 = vld [vmem:[%s8 + $0xfe8] sm:$0xff]
      %v2008 = vld [vmem:[%s8 + $0xff0] sm:$0xff]
      %v2009 = vld [vmem:[%s8 + $0xff8] sm:$0xff]
      %v2522 = vunpack.c.l.b16 %v1498
      %v2523 = vunpack.c.h.b16 %v1498
      %v2524 = vunpack.c.l.b16 %v1499
      %v2525 = vunpack.c.h.b16 %v1499
      %v2526 = vunpack.c.l.b16 %v1500
      %v2527 = vunpack.c.h.b16 %v1500
      %v2528 = vunpack.c.l.b16 %v1501
      %v2529 = vunpack.c.h.b16 %v1501
      %v2530 = vunpack.c.l.b16 %v1502
      %v2531 = vunpack.c.h.b16 %v1502
      %v2532 = vunpack.c.l.b16 %v1503
      %v2533 = vunpack.c.h.b16 %v1503
      %v2534 = vunpack.c.l.b16 %v1504
      %v2535 = vunpack.c.h.b16 %v1504
      %v2536 = vunpack.c.l.b16 %v1505
      %v2537 = vunpack.c.h.b16 %v1505
      %v2538 = vunpack.c.l.b16 %v1506
      %v2539 = vunpack.c.h.b16 %v1506
      %v2540 = vunpack.c.l.b16 %v1507
      %v2541 = vunpack.c.h.b16 %v1507
      %v2542 = vunpack.c.l.b16 %v1508
      %v2543 = vunpack.c.h.b16 %v1508
      %v2544 = vunpack.c.l.b16 %v1509
      %v2545 = vunpack.c.h.b16 %v1509
      %v2546 = vunpack.c.l.b16 %v1510
      %v2547 = vunpack.c.h.b16 %v1510
      %v2548 = vunpack.c.l.b16 %v1511
      %v2549 = vunpack.c.h.b16 %v1511
      %v2550 = vunpack.c.l.b16 %v1512
      %v2551 = vunpack.c.h.b16 %v1512
      %v2552 = vunpack.c.l.b16 %v1513
      %v2553 = vunpack.c.h.b16 %v1513
      %v2554 = vunpack.c.l.b16 %v1514
      %v2555 = vunpack.c.h.b16 %v1514
      %v2556 = vunpack.c.l.b16 %v1515
      %v2557 = vunpack.c.h.b16 %v1515
      %v2558 = vunpack.c.l.b16 %v1516
      %v2559 = vunpack.c.h.b16 %v1516
      %v2560 = vunpack.c.l.b16 %v1517
      %v2561 = vunpack.c.h.b16 %v1517
      %v2562 = vunpack.c.l.b16 %v1518
      %v2563 = vunpack.c.h.b16 %v1518
      %v2564 = vunpack.c.l.b16 %v1519
      %v2565 = vunpack.c.h.b16 %v1519
      %v2566 = vunpack.c.l.b16 %v1520
      %v2567 = vunpack.c.h.b16 %v1520
      %v2568 = vunpack.c.l.b16 %v1521
      %v2569 = vunpack.c.h.b16 %v1521
      %v2570 = vunpack.c.l.b16 %v1522
      %v2571 = vunpack.c.h.b16 %v1522
      %v2572 = vunpack.c.l.b16 %v1523
      %v2573 = vunpack.c.h.b16 %v1523
      %v2574 = vunpack.c.l.b16 %v1524
      %v2575 = vunpack.c.h.b16 %v1524
      %v2576 = vunpack.c.l.b16 %v1525
      %v2577 = vunpack.c.h.b16 %v1525
      %v2578 = vunpack.c.l.b16 %v1526
      %v2579 = vunpack.c.h.b16 %v1526
      %v2580 = vunpack.c.l.b16 %v1527
      %v2581 = vunpack.c.h.b16 %v1527
      %v2582 = vunpack.c.l.b16 %v1528
      %v2583 = vunpack.c.h.b16 %v1528
      %v2584 = vunpack.c.l.b16 %v1529
      %v2585 = vunpack.c.h.b16 %v1529
      %v2586 = vunpack.c.l.b16 %v1530
      %v2587 = vunpack.c.h.b16 %v1530
      %v2588 = vunpack.c.l.b16 %v1531
      %v2589 = vunpack.c.h.b16 %v1531
      %v2590 = vunpack.c.l.b16 %v1532
      %v2591 = vunpack.c.h.b16 %v1532
      %v2592 = vunpack.c.l.b16 %v1533
      %v2593 = vunpack.c.h.b16 %v1533
      %v2594 = vunpack.c.l.b16 %v1534
      %v2595 = vunpack.c.h.b16 %v1534
      %v2596 = vunpack.c.l.b16 %v1535
      %v2597 = vunpack.c.h.b16 %v1535
      %v2598 = vunpack.c.l.b16 %v1536
      %v2599 = vunpack.c.h.b16 %v1536
      %v2600 = vunpack.c.l.b16 %v1537
      %v2601 = vunpack.c.h.b16 %v1537
      %v2602 = vunpack.c.l.b16 %v1538
      %v2603 = vunpack.c.h.b16 %v1538
      %v2604 = vunpack.c.l.b16 %v1539
      %v2605 = vunpack.c.h.b16 %v1539
      %v2606 = vunpack.c.l.b16 %v1540
      %v2607 = vunpack.c.h.b16 %v1540
      %v2608 = vunpack.c.l.b16 %v1541
      %v2609 = vunpack.c.h.b16 %v1541
      %v2610 = vunpack.c.l.b16 %v1542
      %v2611 = vunpack.c.h.b16 %v1542
      %v2612 = vunpack.c.l.b16 %v1543
      %v2613 = vunpack.c.h.b16 %v1543
      %v2614 = vunpack.c.l.b16 %v1544
      %v2615 = vunpack.c.h.b16 %v1544
      %v2616 = vunpack.c.l.b16 %v1545
      %v2617 = vunpack.c.h.b16 %v1545
      %v2618 = vunpack.c.l.b16 %v1546
      %v2619 = vunpack.c.h.b16 %v1546
      %v2620 = vunpack.c.l.b16 %v1547
      %v2621 = vunpack.c.h.b16 %v1547
      %v2622 = vunpack.c.l.b16 %v1548
      %v2623 = vunpack.c.h.b16 %v1548
      %v2624 = vunpack.c.l.b16 %v1549
      %v2625 = vunpack.c.h.b16 %v1549
      %v2626 = vunpack.c.l.b16 %v1550
      %v2627 = vunpack.c.h.b16 %v1550
      %v2628 = vunpack.c.l.b16 %v1551
      %v2629 = vunpack.c.h.b16 %v1551
      %v2630 = vunpack.c.l.b16 %v1552
      %v2631 = vunpack.c.h.b16 %v1552
      %v2632 = vunpack.c.l.b16 %v1553
      %v2633 = vunpack.c.h.b16 %v1553
      %v2634 = vunpack.c.l.b16 %v1554
      %v2635 = vunpack.c.h.b16 %v1554
      %v2636 = vunpack.c.l.b16 %v1555
      %v2637 = vunpack.c.h.b16 %v1555
      %v2638 = vunpack.c.l.b16 %v1556
      %v2639 = vunpack.c.h.b16 %v1556
      %v2640 = vunpack.c.l.b16 %v1557
      %v2641 = vunpack.c.h.b16 %v1557
      %v2642 = vunpack.c.l.b16 %v1558
      %v2643 = vunpack.c.h.b16 %v1558
      %v2644 = vunpack.c.l.b16 %v1559
      %v2645 = vunpack.c.h.b16 %v1559
      %v2646 = vunpack.c.l.b16 %v1560
      %v2647 = vunpack.c.h.b16 %v1560
      %v2648 = vunpack.c.l.b16 %v1561
      %v2649 = vunpack.c.h.b16 %v1561
      %v2650 = vunpack.c.l.b16 %v1562
      %v2651 = vunpack.c.h.b16 %v1562
      %v2652 = vunpack.c.l.b16 %v1563
      %v2653 = vunpack.c.h.b16 %v1563
      %v2654 = vunpack.c.l.b16 %v1564
      %v2655 = vunpack.c.h.b16 %v1564
      %v2656 = vunpack.c.l.b16 %v1565
      %v2657 = vunpack.c.h.b16 %v1565
      %v2658 = vunpack.c.l.b16 %v1566
      %v2659 = vunpack.c.h.b16 %v1566
      %v2660 = vunpack.c.l.b16 %v1567
      %v2661 = vunpack.c.h.b16 %v1567
      %v2662 = vunpack.c.l.b16 %v1568
      %v2663 = vunpack.c.h.b16 %v1568
      %v2664 = vunpack.c.l.b16 %v1569
      %v2665 = vunpack.c.h.b16 %v1569
      %v2666 = vunpack.c.l.b16 %v1570
      %v2667 = vunpack.c.h.b16 %v1570
      %v2668 = vunpack.c.l.b16 %v1571
      %v2669 = vunpack.c.h.b16 %v1571
      %v2670 = vunpack.c.l.b16 %v1572
      %v2671 = vunpack.c.h.b16 %v1572
      %v2672 = vunpack.c.l.b16 %v1573
      %v2673 = vunpack.c.h.b16 %v1573
      %v2674 = vunpack.c.l.b16 %v1574
      %v2675 = vunpack.c.h.b16 %v1574
      %v2676 = vunpack.c.l.b16 %v1575
      %v2677 = vunpack.c.h.b16 %v1575
      %v2678 = vunpack.c.l.b16 %v1576
      %v2679 = vunpack.c.h.b16 %v1576
      %v2680 = vunpack.c.l.b16 %v1577
      %v2681 = vunpack.c.h.b16 %v1577
      %v2682 = vunpack.c.l.b16 %v1578
      %v2683 = vunpack.c.h.b16 %v1578
      %v2684 = vunpack.c.l.b16 %v1579
      %v2685 = vunpack.c.h.b16 %v1579
      %v2686 = vunpack.c.l.b16 %v1580
      %v2687 = vunpack.c.h.b16 %v1580
      %v2688 = vunpack.c.l.b16 %v1581
      %v2689 = vunpack.c.h.b16 %v1581
      %v2690 = vunpack.c.l.b16 %v1582
      %v2691 = vunpack.c.h.b16 %v1582
      %v2692 = vunpack.c.l.b16 %v1583
      %v2693 = vunpack.c.h.b16 %v1583
      %v2694 = vunpack.c.l.b16 %v1584
      %v2695 = vunpack.c.h.b16 %v1584
      %v2696 = vunpack.c.l.b16 %v1585
      %v2697 = vunpack.c.h.b16 %v1585
      %v2698 = vunpack.c.l.b16 %v1586
      %v2699 = vunpack.c.h.b16 %v1586
      %v2700 = vunpack.c.l.b16 %v1587
      %v2701 = vunpack.c.h.b16 %v1587
      %v2702 = vunpack.c.l.b16 %v1588
      %v2703 = vunpack.c.h.b16 %v1588
      %v2704 = vunpack.c.l.b16 %v1589
      %v2705 = vunpack.c.h.b16 %v1589
      %v2706 = vunpack.c.l.b16 %v1590
      %v2707 = vunpack.c.h.b16 %v1590
      %v2708 = vunpack.c.l.b16 %v1591
      %v2709 = vunpack.c.h.b16 %v1591
      %v2710 = vunpack.c.l.b16 %v1592
      %v2711 = vunpack.c.h.b16 %v1592
      %v2712 = vunpack.c.l.b16 %v1593
      %v2713 = vunpack.c.h.b16 %v1593
      %v2714 = vunpack.c.l.b16 %v1594
      %v2715 = vunpack.c.h.b16 %v1594
      %v2716 = vunpack.c.l.b16 %v1595
      %v2717 = vunpack.c.h.b16 %v1595
      %v2718 = vunpack.c.l.b16 %v1596
      %v2719 = vunpack.c.h.b16 %v1596
      %v2720 = vunpack.c.l.b16 %v1597
      %v2721 = vunpack.c.h.b16 %v1597
      %v2722 = vunpack.c.l.b16 %v1598
      %v2723 = vunpack.c.h.b16 %v1598
      %v2724 = vunpack.c.l.b16 %v1599
      %v2725 = vunpack.c.h.b16 %v1599
      %v2726 = vunpack.c.l.b16 %v1600
      %v2727 = vunpack.c.h.b16 %v1600
      %v2728 = vunpack.c.l.b16 %v1601
      %v2729 = vunpack.c.h.b16 %v1601
      %v2730 = vunpack.c.l.b16 %v1602
      %v2731 = vunpack.c.h.b16 %v1602
      %v2732 = vunpack.c.l.b16 %v1603
      %v2733 = vunpack.c.h.b16 %v1603
      %v2734 = vunpack.c.l.b16 %v1604
      %v2735 = vunpack.c.h.b16 %v1604
      %v2736 = vunpack.c.l.b16 %v1605
      %v2737 = vunpack.c.h.b16 %v1605
      %v2738 = vunpack.c.l.b16 %v1606
      %v2739 = vunpack.c.h.b16 %v1606
      %v2740 = vunpack.c.l.b16 %v1607
      %v2741 = vunpack.c.h.b16 %v1607
      %v2742 = vunpack.c.l.b16 %v1608
      %v2743 = vunpack.c.h.b16 %v1608
      %v2744 = vunpack.c.l.b16 %v1609
      %v2745 = vunpack.c.h.b16 %v1609
      %v2746 = vunpack.c.l.b16 %v1610
      %v2747 = vunpack.c.h.b16 %v1610
      %v2748 = vunpack.c.l.b16 %v1611
      %v2749 = vunpack.c.h.b16 %v1611
      %v2750 = vunpack.c.l.b16 %v1612
      %v2751 = vunpack.c.h.b16 %v1612
      %v2752 = vunpack.c.l.b16 %v1613
      %v2753 = vunpack.c.h.b16 %v1613
      %v2754 = vunpack.c.l.b16 %v1614
      %v2755 = vunpack.c.h.b16 %v1614
      %v2756 = vunpack.c.l.b16 %v1615
      %v2757 = vunpack.c.h.b16 %v1615
      %v2758 = vunpack.c.l.b16 %v1616
      %v2759 = vunpack.c.h.b16 %v1616
      %v2760 = vunpack.c.l.b16 %v1617
      %v2761 = vunpack.c.h.b16 %v1617
      %v2762 = vunpack.c.l.b16 %v1618
      %v2763 = vunpack.c.h.b16 %v1618
      %v2764 = vunpack.c.l.b16 %v1619
      %v2765 = vunpack.c.h.b16 %v1619
      %v2766 = vunpack.c.l.b16 %v1620
      %v2767 = vunpack.c.h.b16 %v1620
      %v2768 = vunpack.c.l.b16 %v1621
      %v2769 = vunpack.c.h.b16 %v1621
      %v2770 = vunpack.c.l.b16 %v1622
      %v2771 = vunpack.c.h.b16 %v1622
      %v2772 = vunpack.c.l.b16 %v1623
      %v2773 = vunpack.c.h.b16 %v1623
      %v2774 = vunpack.c.l.b16 %v1624
      %v2775 = vunpack.c.h.b16 %v1624
      %v2776 = vunpack.c.l.b16 %v1625
      %v2777 = vunpack.c.h.b16 %v1625
      %v2778 = vunpack.c.l.b16 %v1626
      %v2779 = vunpack.c.h.b16 %v1626
      %v2780 = vunpack.c.l.b16 %v1627
      %v2781 = vunpack.c.h.b16 %v1627
      %v2782 = vunpack.c.l.b16 %v1628
      %v2783 = vunpack.c.h.b16 %v1628
      %v2784 = vunpack.c.l.b16 %v1629
      %v2785 = vunpack.c.h.b16 %v1629
      %v2786 = vunpack.c.l.b16 %v1630
      %v2787 = vunpack.c.h.b16 %v1630
      %v2788 = vunpack.c.l.b16 %v1631
      %v2789 = vunpack.c.h.b16 %v1631
      %v2790 = vunpack.c.l.b16 %v1632
      %v2791 = vunpack.c.h.b16 %v1632
      %v2792 = vunpack.c.l.b16 %v1633
      %v2793 = vunpack.c.h.b16 %v1633
      %v2794 = vunpack.c.l.b16 %v1634
      %v2795 = vunpack.c.h.b16 %v1634
      %v2796 = vunpack.c.l.b16 %v1635
      %v2797 = vunpack.c.h.b16 %v1635
      %v2798 = vunpack.c.l.b16 %v1636
      %v2799 = vunpack.c.h.b16 %v1636
      %v2800 = vunpack.c.l.b16 %v1637
      %v2801 = vunpack.c.h.b16 %v1637
      %v2802 = vunpack.c.l.b16 %v1638
      %v2803 = vunpack.c.h.b16 %v1638
      %v2804 = vunpack.c.l.b16 %v1639
      %v2805 = vunpack.c.h.b16 %v1639
      %v2806 = vunpack.c.l.b16 %v1640
      %v2807 = vunpack.c.h.b16 %v1640
      %v2808 = vunpack.c.l.b16 %v1641
      %v2809 = vunpack.c.h.b16 %v1641
      %v2810 = vunpack.c.l.b16 %v1642
      %v2811 = vunpack.c.h.b16 %v1642
      %v2812 = vunpack.c.l.b16 %v1643
      %v2813 = vunpack.c.h.b16 %v1643
      %v2814 = vunpack.c.l.b16 %v1644
      %v2815 = vunpack.c.h.b16 %v1644
      %v2816 = vunpack.c.l.b16 %v1645
      %v2817 = vunpack.c.h.b16 %v1645
      %v2818 = vunpack.c.l.b16 %v1646
      %v2819 = vunpack.c.h.b16 %v1646
      %v2820 = vunpack.c.l.b16 %v1647
      %v2821 = vunpack.c.h.b16 %v1647
      %v2822 = vunpack.c.l.b16 %v1648
      %v2823 = vunpack.c.h.b16 %v1648
      %v2824 = vunpack.c.l.b16 %v1649
      %v2825 = vunpack.c.h.b16 %v1649
      %v2826 = vunpack.c.l.b16 %v1650
      %v2827 = vunpack.c.h.b16 %v1650
      %v2828 = vunpack.c.l.b16 %v1651
      %v2829 = vunpack.c.h.b16 %v1651
      %v2830 = vunpack.c.l.b16 %v1652
      %v2831 = vunpack.c.h.b16 %v1652
      %v2832 = vunpack.c.l.b16 %v1653
      %v2833 = vunpack.c.h.b16 %v1653
      %v2834 = vunpack.c.l.b16 %v1654
      %v2835 = vunpack.c.h.b16 %v1654
      %v2836 = vunpack.c.l.b16 %v1655
      %v2837 = vunpack.c.h.b16 %v1655
      %v2838 = vunpack.c.l.b16 %v1656
      %v2839 = vunpack.c.h.b16 %v1656
      %v2840 = vunpack.c.l.b16 %v1657
      %v2841 = vunpack.c.h.b16 %v1657
      %v2842 = vunpack.c.l.b16 %v1658
      %v2843 = vunpack.c.h.b16 %v1658
      %v2844 = vunpack.c.l.b16 %v1659
      %v2845 = vunpack.c.h.b16 %v1659
      %v2846 = vunpack.c.l.b16 %v1660
      %v2847 = vunpack.c.h.b16 %v1660
      %v2848 = vunpack.c.l.b16 %v1661
      %v2849 = vunpack.c.h.b16 %v1661
      %v2850 = vunpack.c.l.b16 %v1662
      %v2851 = vunpack.c.h.b16 %v1662
      %v2852 = vunpack.c.l.b16 %v1663
      %v2853 = vunpack.c.h.b16 %v1663
      %v2854 = vunpack.c.l.b16 %v1664
      %v2855 = vunpack.c.h.b16 %v1664
      %v2856 = vunpack.c.l.b16 %v1665
      %v2857 = vunpack.c.h.b16 %v1665
      %v2858 = vunpack.c.l.b16 %v1666
      %v2859 = vunpack.c.h.b16 %v1666
      %v2860 = vunpack.c.l.b16 %v1667
      %v2861 = vunpack.c.h.b16 %v1667
      %v2862 = vunpack.c.l.b16 %v1668
      %v2863 = vunpack.c.h.b16 %v1668
      %v2864 = vunpack.c.l.b16 %v1669
      %v2865 = vunpack.c.h.b16 %v1669
      %v2866 = vunpack.c.l.b16 %v1670
      %v2867 = vunpack.c.h.b16 %v1670
      %v2868 = vunpack.c.l.b16 %v1671
      %v2869 = vunpack.c.h.b16 %v1671
      %v2870 = vunpack.c.l.b16 %v1672
      %v2871 = vunpack.c.h.b16 %v1672
      %v2872 = vunpack.c.l.b16 %v1673
      %v2873 = vunpack.c.h.b16 %v1673
      %v2874 = vunpack.c.l.b16 %v1674
      %v2875 = vunpack.c.h.b16 %v1674
      %v2876 = vunpack.c.l.b16 %v1675
      %v2877 = vunpack.c.h.b16 %v1675
      %v2878 = vunpack.c.l.b16 %v1676
      %v2879 = vunpack.c.h.b16 %v1676
      %v2880 = vunpack.c.l.b16 %v1677
      %v2881 = vunpack.c.h.b16 %v1677
      %v2882 = vunpack.c.l.b16 %v1678
      %v2883 = vunpack.c.h.b16 %v1678
      %v2884 = vunpack.c.l.b16 %v1679
      %v2885 = vunpack.c.h.b16 %v1679
      %v2886 = vunpack.c.l.b16 %v1680
      %v2887 = vunpack.c.h.b16 %v1680
      %v2888 = vunpack.c.l.b16 %v1681
      %v2889 = vunpack.c.h.b16 %v1681
      %v2890 = vunpack.c.l.b16 %v1682
      %v2891 = vunpack.c.h.b16 %v1682
      %v2892 = vunpack.c.l.b16 %v1683
      %v2893 = vunpack.c.h.b16 %v1683
      %v2894 = vunpack.c.l.b16 %v1684
      %v2895 = vunpack.c.h.b16 %v1684
      %v2896 = vunpack.c.l.b16 %v1685
      %v2897 = vunpack.c.h.b16 %v1685
      %v2898 = vunpack.c.l.b16 %v1686
      %v2899 = vunpack.c.h.b16 %v1686
      %v2900 = vunpack.c.l.b16 %v1687
      %v2901 = vunpack.c.h.b16 %v1687
      %v2902 = vunpack.c.l.b16 %v1688
      %v2903 = vunpack.c.h.b16 %v1688
      %v2904 = vunpack.c.l.b16 %v1689
      %v2905 = vunpack.c.h.b16 %v1689
      %v2906 = vunpack.c.l.b16 %v1690
      %v2907 = vunpack.c.h.b16 %v1690
      %v2908 = vunpack.c.l.b16 %v1691
      %v2909 = vunpack.c.h.b16 %v1691
      %v2910 = vunpack.c.l.b16 %v1692
      %v2911 = vunpack.c.h.b16 %v1692
      %v2912 = vunpack.c.l.b16 %v1693
      %v2913 = vunpack.c.h.b16 %v1693
      %v2914 = vunpack.c.l.b16 %v1694
      %v2915 = vunpack.c.h.b16 %v1694
      %v2916 = vunpack.c.l.b16 %v1695
      %v2917 = vunpack.c.h.b16 %v1695
      %v2918 = vunpack.c.l.b16 %v1696
      %v2919 = vunpack.c.h.b16 %v1696
      %v2920 = vunpack.c.l.b16 %v1697
      %v2921 = vunpack.c.h.b16 %v1697
      %v2922 = vunpack.c.l.b16 %v1698
      %v2923 = vunpack.c.h.b16 %v1698
      %v2924 = vunpack.c.l.b16 %v1699
      %v2925 = vunpack.c.h.b16 %v1699
      %v2926 = vunpack.c.l.b16 %v1700
      %v2927 = vunpack.c.h.b16 %v1700
      %v2928 = vunpack.c.l.b16 %v1701
      %v2929 = vunpack.c.h.b16 %v1701
      %v2930 = vunpack.c.l.b16 %v1702
      %v2931 = vunpack.c.h.b16 %v1702
      %v2932 = vunpack.c.l.b16 %v1703
      %v2933 = vunpack.c.h.b16 %v1703
      %v2934 = vunpack.c.l.b16 %v1704
      %v2935 = vunpack.c.h.b16 %v1704
      %v2936 = vunpack.c.l.b16 %v1705
      %v2937 = vunpack.c.h.b16 %v1705
      %v2938 = vunpack.c.l.b16 %v1706
      %v2939 = vunpack.c.h.b16 %v1706
      %v2940 = vunpack.c.l.b16 %v1707
      %v2941 = vunpack.c.h.b16 %v1707
      %v2942 = vunpack.c.l.b16 %v1708
      %v2943 = vunpack.c.h.b16 %v1708
      %v2944 = vunpack.c.l.b16 %v1709
      %v2945 = vunpack.c.h.b16 %v1709
      %v2946 = vunpack.c.l.b16 %v1710
      %v2947 = vunpack.c.h.b16 %v1710
      %v2948 = vunpack.c.l.b16 %v1711
      %v2949 = vunpack.c.h.b16 %v1711
      %v2950 = vunpack.c.l.b16 %v1712
      %v2951 = vunpack.c.h.b16 %v1712
      %v2952 = vunpack.c.l.b16 %v1713
      %v2953 = vunpack.c.h.b16 %v1713
      %v2954 = vunpack.c.l.b16 %v1714
      %v2955 = vunpack.c.h.b16 %v1714
      %v2956 = vunpack.c.l.b16 %v1715
      %v2957 = vunpack.c.h.b16 %v1715
      %v2958 = vunpack.c.l.b16 %v1716
      %v2959 = vunpack.c.h.b16 %v1716
      %v2960 = vunpack.c.l.b16 %v1717
      %v2961 = vunpack.c.h.b16 %v1717
      %v2962 = vunpack.c.l.b16 %v1718
      %v2963 = vunpack.c.h.b16 %v1718
      %v2964 = vunpack.c.l.b16 %v1719
      %v2965 = vunpack.c.h.b16 %v1719
      %v2966 = vunpack.c.l.b16 %v1720
      %v2967 = vunpack.c.h.b16 %v1720
      %v2968 = vunpack.c.l.b16 %v1721
      %v2969 = vunpack.c.h.b16 %v1721
      %v2970 = vunpack.c.l.b16 %v1722
      %v2971 = vunpack.c.h.b16 %v1722
      %v2972 = vunpack.c.l.b16 %v1723
      %v2973 = vunpack.c.h.b16 %v1723
      %v2974 = vunpack.c.l.b16 %v1724
      %v2975 = vunpack.c.h.b16 %v1724
      %v2976 = vunpack.c.l.b16 %v1725
      %v2977 = vunpack.c.h.b16 %v1725
      %v2978 = vunpack.c.l.b16 %v1726
      %v2979 = vunpack.c.h.b16 %v1726
      %v2980 = vunpack.c.l.b16 %v1727
      %v2981 = vunpack.c.h.b16 %v1727
      %v2982 = vunpack.c.l.b16 %v1728
      %v2983 = vunpack.c.h.b16 %v1728
      %v2984 = vunpack.c.l.b16 %v1729
      %v2985 = vunpack.c.h.b16 %v1729
      %v2986 = vunpack.c.l.b16 %v1730
      %v2987 = vunpack.c.h.b16 %v1730
      %v2988 = vunpack.c.l.b16 %v1731
      %v2989 = vunpack.c.h.b16 %v1731
      %v2990 = vunpack.c.l.b16 %v1732
      %v2991 = vunpack.c.h.b16 %v1732
      %v2992 = vunpack.c.l.b16 %v1733
      %v2993 = vunpack.c.h.b16 %v1733
      %v2994 = vunpack.c.l.b16 %v1734
      %v2995 = vunpack.c.h.b16 %v1734
      %v2996 = vunpack.c.l.b16 %v1735
      %v2997 = vunpack.c.h.b16 %v1735
      %v2998 = vunpack.c.l.b16 %v1736
      %v2999 = vunpack.c.h.b16 %v1736
      %v3000 = vunpack.c.l.b16 %v1737
      %v3001 = vunpack.c.h.b16 %v1737
      %v3002 = vunpack.c.l.b16 %v1738
      %v3003 = vunpack.c.h.b16 %v1738
      %v3004 = vunpack.c.l.b16 %v1739
      %v3005 = vunpack.c.h.b16 %v1739
      %v3006 = vunpack.c.l.b16 %v1740
      %v3007 = vunpack.c.h.b16 %v1740
      %v3008 = vunpack.c.l.b16 %v1741
      %v3009 = vunpack.c.h.b16 %v1741
      %v3010 = vunpack.c.l.b16 %v1742
      %v3011 = vunpack.c.h.b16 %v1742
      %v3012 = vunpack.c.l.b16 %v1743
      %v3013 = vunpack.c.h.b16 %v1743
      %v3014 = vunpack.c.l.b16 %v1744
      %v3015 = vunpack.c.h.b16 %v1744
      %v3016 = vunpack.c.l.b16 %v1745
      %v3017 = vunpack.c.h.b16 %v1745
      %v3018 = vunpack.c.l.b16 %v1746
      %v3019 = vunpack.c.h.b16 %v1746
      %v3020 = vunpack.c.l.b16 %v1747
      %v3021 = vunpack.c.h.b16 %v1747
      %v3022 = vunpack.c.l.b16 %v1748
      %v3023 = vunpack.c.h.b16 %v1748
      %v3024 = vunpack.c.l.b16 %v1749
      %v3025 = vunpack.c.h.b16 %v1749
      %v3026 = vunpack.c.l.b16 %v1750
      %v3027 = vunpack.c.h.b16 %v1750
      %v3028 = vunpack.c.l.b16 %v1751
      %v3029 = vunpack.c.h.b16 %v1751
      %v3030 = vunpack.c.l.b16 %v1752
      %v3031 = vunpack.c.h.b16 %v1752
      %v3032 = vunpack.c.l.b16 %v1753
      %v3033 = vunpack.c.h.b16 %v1753
      %v3034 = vunpack.c.l.b16 %v1754
      %v3035 = vunpack.c.h.b16 %v1754
      %v3036 = vunpack.c.l.b16 %v1755
      %v3037 = vunpack.c.h.b16 %v1755
      %v3038 = vunpack.c.l.b16 %v1756
      %v3039 = vunpack.c.h.b16 %v1756
      %v3040 = vunpack.c.l.b16 %v1757
      %v3041 = vunpack.c.h.b16 %v1757
      %v3042 = vunpack.c.l.b16 %v1758
      %v3043 = vunpack.c.h.b16 %v1758
      %v3044 = vunpack.c.l.b16 %v1759
      %v3045 = vunpack.c.h.b16 %v1759
      %v3046 = vunpack.c.l.b16 %v1760
      %v3047 = vunpack.c.h.b16 %v1760
      %v3048 = vunpack.c.l.b16 %v1761
      %v3049 = vunpack.c.h.b16 %v1761
      %v3050 = vunpack.c.l.b16 %v1762
      %v3051 = vunpack.c.h.b16 %v1762
      %v3052 = vunpack.c.l.b16 %v1763
      %v3053 = vunpack.c.h.b16 %v1763
      %v3054 = vunpack.c.l.b16 %v1764
      %v3055 = vunpack.c.h.b16 %v1764
      %v3056 = vunpack.c.l.b16 %v1765
      %v3057 = vunpack.c.h.b16 %v1765
      %v3058 = vunpack.c.l.b16 %v1766
      %v3059 = vunpack.c.h.b16 %v1766
      %v3060 = vunpack.c.l.b16 %v1767
      %v3061 = vunpack.c.h.b16 %v1767
      %v3062 = vunpack.c.l.b16 %v1768
      %v3063 = vunpack.c.h.b16 %v1768
      %v3064 = vunpack.c.l.b16 %v1769
      %v3065 = vunpack.c.h.b16 %v1769
      %v3066 = vunpack.c.l.b16 %v1770
      %v3067 = vunpack.c.h.b16 %v1770
      %v3068 = vunpack.c.l.b16 %v1771
      %v3069 = vunpack.c.h.b16 %v1771
      %v3070 = vunpack.c.l.b16 %v1772
      %v3071 = vunpack.c.h.b16 %v1772
      %v3072 = vunpack.c.l.b16 %v1773
      %v3073 = vunpack.c.h.b16 %v1773
      %v3074 = vunpack.c.l.b16 %v1774
      %v3075 = vunpack.c.h.b16 %v1774
      %v3076 = vunpack.c.l.b16 %v1775
      %v3077 = vunpack.c.h.b16 %v1775
      %v3078 = vunpack.c.l.b16 %v1776
      %v3079 = vunpack.c.h.b16 %v1776
      %v3080 = vunpack.c.l.b16 %v1777
      %v3081 = vunpack.c.h.b16 %v1777
      %v3082 = vunpack.c.l.b16 %v1778
      %v3083 = vunpack.c.h.b16 %v1778
      %v3084 = vunpack.c.l.b16 %v1779
      %v3085 = vunpack.c.h.b16 %v1779
      %v3086 = vunpack.c.l.b16 %v1780
      %v3087 = vunpack.c.h.b16 %v1780
      %v3088 = vunpack.c.l.b16 %v1781
      %v3089 = vunpack.c.h.b16 %v1781
      %v3090 = vunpack.c.l.b16 %v1782
      %v3091 = vunpack.c.h.b16 %v1782
      %v3092 = vunpack.c.l.b16 %v1783
      %v3093 = vunpack.c.h.b16 %v1783
      %v3094 = vunpack.c.l.b16 %v1784
      %v3095 = vunpack.c.h.b16 %v1784
      %v3096 = vunpack.c.l.b16 %v1785
      %v3097 = vunpack.c.h.b16 %v1785
      %v3098 = vunpack.c.l.b16 %v1786
      %v3099 = vunpack.c.h.b16 %v1786
      %v3100 = vunpack.c.l.b16 %v1787
      %v3101 = vunpack.c.h.b16 %v1787
      %v3102 = vunpack.c.l.b16 %v1788
      %v3103 = vunpack.c.h.b16 %v1788
      %v3104 = vunpack.c.l.b16 %v1789
      %v3105 = vunpack.c.h.b16 %v1789
      %v3106 = vunpack.c.l.b16 %v1790
      %v3107 = vunpack.c.h.b16 %v1790
      %v3108 = vunpack.c.l.b16 %v1791
      %v3109 = vunpack.c.h.b16 %v1791
      %v3110 = vunpack.c.l.b16 %v1792
      %v3111 = vunpack.c.h.b16 %v1792
      %v3112 = vunpack.c.l.b16 %v1793
      %v3113 = vunpack.c.h.b16 %v1793
      %v3114 = vunpack.c.l.b16 %v1794
      %v3115 = vunpack.c.h.b16 %v1794
      %v3116 = vunpack.c.l.b16 %v1795
      %v3117 = vunpack.c.h.b16 %v1795
      %v3118 = vunpack.c.l.b16 %v1796
      %v3119 = vunpack.c.h.b16 %v1796
      %v3120 = vunpack.c.l.b16 %v1797
      %v3121 = vunpack.c.h.b16 %v1797
      %v3122 = vunpack.c.l.b16 %v1798
      %v3123 = vunpack.c.h.b16 %v1798
      %v3124 = vunpack.c.l.b16 %v1799
      %v3125 = vunpack.c.h.b16 %v1799
      %v3126 = vunpack.c.l.b16 %v1800
      %v3127 = vunpack.c.h.b16 %v1800
      %v3128 = vunpack.c.l.b16 %v1801
      %v3129 = vunpack.c.h.b16 %v1801
      %v3130 = vunpack.c.l.b16 %v1802
      %v3131 = vunpack.c.h.b16 %v1802
      %v3132 = vunpack.c.l.b16 %v1803
      %v3133 = vunpack.c.h.b16 %v1803
      %v3134 = vunpack.c.l.b16 %v1804
      %v3135 = vunpack.c.h.b16 %v1804
      %v3136 = vunpack.c.l.b16 %v1805
      %v3137 = vunpack.c.h.b16 %v1805
      %v3138 = vunpack.c.l.b16 %v1806
      %v3139 = vunpack.c.h.b16 %v1806
      %v3140 = vunpack.c.l.b16 %v1807
      %v3141 = vunpack.c.h.b16 %v1807
      %v3142 = vunpack.c.l.b16 %v1808
      %v3143 = vunpack.c.h.b16 %v1808
      %v3144 = vunpack.c.l.b16 %v1809
      %v3145 = vunpack.c.h.b16 %v1809
      %v3146 = vunpack.c.l.b16 %v1810
      %v3147 = vunpack.c.h.b16 %v1810
      %v3148 = vunpack.c.l.b16 %v1811
      %v3149 = vunpack.c.h.b16 %v1811
      %v3150 = vunpack.c.l.b16 %v1812
      %v3151 = vunpack.c.h.b16 %v1812
      %v3152 = vunpack.c.l.b16 %v1813
      %v3153 = vunpack.c.h.b16 %v1813
      %v3154 = vunpack.c.l.b16 %v1814
      %v3155 = vunpack.c.h.b16 %v1814
      %v3156 = vunpack.c.l.b16 %v1815
      %v3157 = vunpack.c.h.b16 %v1815
      %v3158 = vunpack.c.l.b16 %v1816
      %v3159 = vunpack.c.h.b16 %v1816
      %v3160 = vunpack.c.l.b16 %v1817
      %v3161 = vunpack.c.h.b16 %v1817
      %v3162 = vunpack.c.l.b16 %v1818
      %v3163 = vunpack.c.h.b16 %v1818
      %v3164 = vunpack.c.l.b16 %v1819
      %v3165 = vunpack.c.h.b16 %v1819
      %v3166 = vunpack.c.l.b16 %v1820
      %v3167 = vunpack.c.h.b16 %v1820
      %v3168 = vunpack.c.l.b16 %v1821
      %v3169 = vunpack.c.h.b16 %v1821
      %v3170 = vunpack.c.l.b16 %v1822
      %v3171 = vunpack.c.h.b16 %v1822
      %v3172 = vunpack.c.l.b16 %v1823
      %v3173 = vunpack.c.h.b16 %v1823
      %v3174 = vunpack.c.l.b16 %v1824
      %v3175 = vunpack.c.h.b16 %v1824
      %v3176 = vunpack.c.l.b16 %v1825
      %v3177 = vunpack.c.h.b16 %v1825
      %v3178 = vunpack.c.l.b16 %v1826
      %v3179 = vunpack.c.h.b16 %v1826
      %v3180 = vunpack.c.l.b16 %v1827
      %v3181 = vunpack.c.h.b16 %v1827
      %v3182 = vunpack.c.l.b16 %v1828
      %v3183 = vunpack.c.h.b16 %v1828
      %v3184 = vunpack.c.l.b16 %v1829
      %v3185 = vunpack.c.h.b16 %v1829
      %v3186 = vunpack.c.l.b16 %v1830
      %v3187 = vunpack.c.h.b16 %v1830
      %v3188 = vunpack.c.l.b16 %v1831
      %v3189 = vunpack.c.h.b16 %v1831
      %v3190 = vunpack.c.l.b16 %v1832
      %v3191 = vunpack.c.h.b16 %v1832
      %v3192 = vunpack.c.l.b16 %v1833
      %v3193 = vunpack.c.h.b16 %v1833
      %v3194 = vunpack.c.l.b16 %v1834
      %v3195 = vunpack.c.h.b16 %v1834
      %v3196 = vunpack.c.l.b16 %v1835
      %v3197 = vunpack.c.h.b16 %v1835
      %v3198 = vunpack.c.l.b16 %v1836
      %v3199 = vunpack.c.h.b16 %v1836
      %v3200 = vunpack.c.l.b16 %v1837
      %v3201 = vunpack.c.h.b16 %v1837
      %v3202 = vunpack.c.l.b16 %v1838
      %v3203 = vunpack.c.h.b16 %v1838
      %v3204 = vunpack.c.l.b16 %v1839
      %v3205 = vunpack.c.h.b16 %v1839
      %v3206 = vunpack.c.l.b16 %v1840
      %v3207 = vunpack.c.h.b16 %v1840
      %v3208 = vunpack.c.l.b16 %v1841
      %v3209 = vunpack.c.h.b16 %v1841
      %v3210 = vunpack.c.l.b16 %v1842
      %v3211 = vunpack.c.h.b16 %v1842
      %v3212 = vunpack.c.l.b16 %v1843
      %v3213 = vunpack.c.h.b16 %v1843
      %v3214 = vunpack.c.l.b16 %v1844
      %v3215 = vunpack.c.h.b16 %v1844
      %v3216 = vunpack.c.l.b16 %v1845
      %v3217 = vunpack.c.h.b16 %v1845
      %v3218 = vunpack.c.l.b16 %v1846
      %v3219 = vunpack.c.h.b16 %v1846
      %v3220 = vunpack.c.l.b16 %v1847
      %v3221 = vunpack.c.h.b16 %v1847
      %v3222 = vunpack.c.l.b16 %v1848
      %v3223 = vunpack.c.h.b16 %v1848
      %v3224 = vunpack.c.l.b16 %v1849
      %v3225 = vunpack.c.h.b16 %v1849
      %v3226 = vunpack.c.l.b16 %v1850
      %v3227 = vunpack.c.h.b16 %v1850
      %v3228 = vunpack.c.l.b16 %v1851
      %v3229 = vunpack.c.h.b16 %v1851
      %v3230 = vunpack.c.l.b16 %v1852
      %v3231 = vunpack.c.h.b16 %v1852
      %v3232 = vunpack.c.l.b16 %v1853
      %v3233 = vunpack.c.h.b16 %v1853
      %v3234 = vunpack.c.l.b16 %v1854
      %v3235 = vunpack.c.h.b16 %v1854
      %v3236 = vunpack.c.l.b16 %v1855
      %v3237 = vunpack.c.h.b16 %v1855
      %v3238 = vunpack.c.l.b16 %v1856
      %v3239 = vunpack.c.h.b16 %v1856
      %v3240 = vunpack.c.l.b16 %v1857
      %v3241 = vunpack.c.h.b16 %v1857
      %v3242 = vunpack.c.l.b16 %v1858
      %v3243 = vunpack.c.h.b16 %v1858
      %v3244 = vunpack.c.l.b16 %v1859
      %v3245 = vunpack.c.h.b16 %v1859
      %v3246 = vunpack.c.l.b16 %v1860
      %v3247 = vunpack.c.h.b16 %v1860
      %v3248 = vunpack.c.l.b16 %v1861
      %v3249 = vunpack.c.h.b16 %v1861
      %v3250 = vunpack.c.l.b16 %v1862
      %v3251 = vunpack.c.h.b16 %v1862
      %v3252 = vunpack.c.l.b16 %v1863
      %v3253 = vunpack.c.h.b16 %v1863
      %v3254 = vunpack.c.l.b16 %v1864
      %v3255 = vunpack.c.h.b16 %v1864
      %v3256 = vunpack.c.l.b16 %v1865
      %v3257 = vunpack.c.h.b16 %v1865
      %v3258 = vunpack.c.l.b16 %v1866
      %v3259 = vunpack.c.h.b16 %v1866
      %v3260 = vunpack.c.l.b16 %v1867
      %v3261 = vunpack.c.h.b16 %v1867
      %v3262 = vunpack.c.l.b16 %v1868
      %v3263 = vunpack.c.h.b16 %v1868
      %v3264 = vunpack.c.l.b16 %v1869
      %v3265 = vunpack.c.h.b16 %v1869
      %v3266 = vunpack.c.l.b16 %v1870
      %v3267 = vunpack.c.h.b16 %v1870
      %v3268 = vunpack.c.l.b16 %v1871
      %v3269 = vunpack.c.h.b16 %v1871
      %v3270 = vunpack.c.l.b16 %v1872
      %v3271 = vunpack.c.h.b16 %v1872
      %v3272 = vunpack.c.l.b16 %v1873
      %v3273 = vunpack.c.h.b16 %v1873
      %v3274 = vunpack.c.l.b16 %v1874
      %v3275 = vunpack.c.h.b16 %v1874
      %v3276 = vunpack.c.l.b16 %v1875
      %v3277 = vunpack.c.h.b16 %v1875
      %v3278 = vunpack.c.l.b16 %v1876
      %v3279 = vunpack.c.h.b16 %v1876
      %v3280 = vunpack.c.l.b16 %v1877
      %v3281 = vunpack.c.h.b16 %v1877
      %v3282 = vunpack.c.l.b16 %v1878
      %v3283 = vunpack.c.h.b16 %v1878
      %v3284 = vunpack.c.l.b16 %v1879
      %v3285 = vunpack.c.h.b16 %v1879
      %v3286 = vunpack.c.l.b16 %v1880
      %v3287 = vunpack.c.h.b16 %v1880
      %v3288 = vunpack.c.l.b16 %v1881
      %v3289 = vunpack.c.h.b16 %v1881
      %v3290 = vunpack.c.l.b16 %v1882
      %v3291 = vunpack.c.h.b16 %v1882
      %v3292 = vunpack.c.l.b16 %v1883
      %v3293 = vunpack.c.h.b16 %v1883
      %v3294 = vunpack.c.l.b16 %v1884
      %v3295 = vunpack.c.h.b16 %v1884
      %v3296 = vunpack.c.l.b16 %v1885
      %v3297 = vunpack.c.h.b16 %v1885
      %v3298 = vunpack.c.l.b16 %v1886
      %v3299 = vunpack.c.h.b16 %v1886
      %v3300 = vunpack.c.l.b16 %v1887
      %v3301 = vunpack.c.h.b16 %v1887
      %v3302 = vunpack.c.l.b16 %v1888
      %v3303 = vunpack.c.h.b16 %v1888
      %v3304 = vunpack.c.l.b16 %v1889
      %v3305 = vunpack.c.h.b16 %v1889
      %v3306 = vunpack.c.l.b16 %v1890
      %v3307 = vunpack.c.h.b16 %v1890
      %v3308 = vunpack.c.l.b16 %v1891
      %v3309 = vunpack.c.h.b16 %v1891
      %v3310 = vunpack.c.l.b16 %v1892
      %v3311 = vunpack.c.h.b16 %v1892
      %v3312 = vunpack.c.l.b16 %v1893
      %v3313 = vunpack.c.h.b16 %v1893
      %v3314 = vunpack.c.l.b16 %v1894
      %v3315 = vunpack.c.h.b16 %v1894
      %v3316 = vunpack.c.l.b16 %v1895
      %v3317 = vunpack.c.h.b16 %v1895
      %v3318 = vunpack.c.l.b16 %v1896
      %v3319 = vunpack.c.h.b16 %v1896
      %v3320 = vunpack.c.l.b16 %v1897
      %v3321 = vunpack.c.h.b16 %v1897
      %v3322 = vunpack.c.l.b16 %v1898
      %v3323 = vunpack.c.h.b16 %v1898
      %v3324 = vunpack.c.l.b16 %v1899
      %v3325 = vunpack.c.h.b16 %v1899
      %v3326 = vunpack.c.l.b16 %v1900
      %v3327 = vunpack.c.h.b16 %v1900
      %v3328 = vunpack.c.l.b16 %v1901
      %v3329 = vunpack.c.h.b16 %v1901
      %v3330 = vunpack.c.l.b16 %v1902
      %v3331 = vunpack.c.h.b16 %v1902
      %v3332 = vunpack.c.l.b16 %v1903
      %v3333 = vunpack.c.h.b16 %v1903
      %v3334 = vunpack.c.l.b16 %v1904
      %v3335 = vunpack.c.h.b16 %v1904
      %v3336 = vunpack.c.l.b16 %v1905
      %v3337 = vunpack.c.h.b16 %v1905
      %v3338 = vunpack.c.l.b16 %v1906
      %v3339 = vunpack.c.h.b16 %v1906
      %v3340 = vunpack.c.l.b16 %v1907
      %v3341 = vunpack.c.h.b16 %v1907
      %v3342 = vunpack.c.l.b16 %v1908
      %v3343 = vunpack.c.h.b16 %v1908
      %v3344 = vunpack.c.l.b16 %v1909
      %v3345 = vunpack.c.h.b16 %v1909
      %v3346 = vunpack.c.l.b16 %v1910
      %v3347 = vunpack.c.h.b16 %v1910
      %v3348 = vunpack.c.l.b16 %v1911
      %v3349 = vunpack.c.h.b16 %v1911
      %v3350 = vunpack.c.l.b16 %v1912
      %v3351 = vunpack.c.h.b16 %v1912
      %v3352 = vunpack.c.l.b16 %v1913
      %v3353 = vunpack.c.h.b16 %v1913
      %v3354 = vunpack.c.l.b16 %v1914
      %v3355 = vunpack.c.h.b16 %v1914
      %v3356 = vunpack.c.l.b16 %v1915
      %v3357 = vunpack.c.h.b16 %v1915
      %v3358 = vunpack.c.l.b16 %v1916
      %v3359 = vunpack.c.h.b16 %v1916
      %v3360 = vunpack.c.l.b16 %v1917
      %v3361 = vunpack.c.h.b16 %v1917
      %v3362 = vunpack.c.l.b16 %v1918
      %v3363 = vunpack.c.h.b16 %v1918
      %v3364 = vunpack.c.l.b16 %v1919
      %v3365 = vunpack.c.h.b16 %v1919
      %v3366 = vunpack.c.l.b16 %v1920
      %v3367 = vunpack.c.h.b16 %v1920
      %v3368 = vunpack.c.l.b16 %v1921
      %v3369 = vunpack.c.h.b16 %v1921
      %v3370 = vunpack.c.l.b16 %v1922
      %v3371 = vunpack.c.h.b16 %v1922
      %v3372 = vunpack.c.l.b16 %v1923
      %v3373 = vunpack.c.h.b16 %v1923
      %v3374 = vunpack.c.l.b16 %v1924
      %v3375 = vunpack.c.h.b16 %v1924
      %v3376 = vunpack.c.l.b16 %v1925
      %v3377 = vunpack.c.h.b16 %v1925
      %v3378 = vunpack.c.l.b16 %v1926
      %v3379 = vunpack.c.h.b16 %v1926
      %v3380 = vunpack.c.l.b16 %v1927
      %v3381 = vunpack.c.h.b16 %v1927
      %v3382 = vunpack.c.l.b16 %v1928
      %v3383 = vunpack.c.h.b16 %v1928
      %v3384 = vunpack.c.l.b16 %v1929
      %v3385 = vunpack.c.h.b16 %v1929
      %v3386 = vunpack.c.l.b16 %v1930
      %v3387 = vunpack.c.h.b16 %v1930
      %v3388 = vunpack.c.l.b16 %v1931
      %v3389 = vunpack.c.h.b16 %v1931
      %v3390 = vunpack.c.l.b16 %v1932
      %v3391 = vunpack.c.h.b16 %v1932
      %v3392 = vunpack.c.l.b16 %v1933
      %v3393 = vunpack.c.h.b16 %v1933
      %v3394 = vunpack.c.l.b16 %v1934
      %v3395 = vunpack.c.h.b16 %v1934
      %v3396 = vunpack.c.l.b16 %v1935
      %v3397 = vunpack.c.h.b16 %v1935
      %v3398 = vunpack.c.l.b16 %v1936
      %v3399 = vunpack.c.h.b16 %v1936
      %v3400 = vunpack.c.l.b16 %v1937
      %v3401 = vunpack.c.h.b16 %v1937
      %v3402 = vunpack.c.l.b16 %v1938
      %v3403 = vunpack.c.h.b16 %v1938
      %v3404 = vunpack.c.l.b16 %v1939
      %v3405 = vunpack.c.h.b16 %v1939
      %v3406 = vunpack.c.l.b16 %v1940
      %v3407 = vunpack.c.h.b16 %v1940
      %v3408 = vunpack.c.l.b16 %v1941
      %v3409 = vunpack.c.h.b16 %v1941
      %v3410 = vunpack.c.l.b16 %v1942
      %v3411 = vunpack.c.h.b16 %v1942
      %v3412 = vunpack.c.l.b16 %v1943
      %v3413 = vunpack.c.h.b16 %v1943
      %v3414 = vunpack.c.l.b16 %v1944
      %v3415 = vunpack.c.h.b16 %v1944
      %v3416 = vunpack.c.l.b16 %v1945
      %v3417 = vunpack.c.h.b16 %v1945
      %v3418 = vunpack.c.l.b16 %v1946
      %v3419 = vunpack.c.h.b16 %v1946
      %v3420 = vunpack.c.l.b16 %v1947
      %v3421 = vunpack.c.h.b16 %v1947
      %v3422 = vunpack.c.l.b16 %v1948
      %v3423 = vunpack.c.h.b16 %v1948
      %v3424 = vunpack.c.l.b16 %v1949
      %v3425 = vunpack.c.h.b16 %v1949
      %v3426 = vunpack.c.l.b16 %v1950
      %v3427 = vunpack.c.h.b16 %v1950
      %v3428 = vunpack.c.l.b16 %v1951
      %v3429 = vunpack.c.h.b16 %v1951
      %v3430 = vunpack.c.l.b16 %v1952
      %v3431 = vunpack.c.h.b16 %v1952
      %v3432 = vunpack.c.l.b16 %v1953
      %v3433 = vunpack.c.h.b16 %v1953
      %v3434 = vunpack.c.l.b16 %v1954
      %v3435 = vunpack.c.h.b16 %v1954
      %v3436 = vunpack.c.l.b16 %v1955
      %v3437 = vunpack.c.h.b16 %v1955
      %v3438 = vunpack.c.l.b16 %v1956
      %v3439 = vunpack.c.h.b16 %v1956
      %v3440 = vunpack.c.l.b16 %v1957
      %v3441 = vunpack.c.h.b16 %v1957
      %v3442 = vunpack.c.l.b16 %v1958
      %v3443 = vunpack.c.h.b16 %v1958
      %v3444 = vunpack.c.l.b16 %v1959
      %v3445 = vunpack.c.h.b16 %v1959
      %v3446 = vunpack.c.l.b16 %v1960
      %v3447 = vunpack.c.h.b16 %v1960
      %v3448 = vunpack.c.l.b16 %v1961
      %v3449 = vunpack.c.h.b16 %v1961
      %v3450 = vunpack.c.l.b16 %v1962
      %v3451 = vunpack.c.h.b16 %v1962
      %v3452 = vunpack.c.l.b16 %v1963
      %v3453 = vunpack.c.h.b16 %v1963
      %v3454 = vunpack.c.l.b16 %v1964
      %v3455 = vunpack.c.h.b16 %v1964
      %v3456 = vunpack.c.l.b16 %v1965
      %v3457 = vunpack.c.h.b16 %v1965
      %v3458 = vunpack.c.l.b16 %v1966
      %v3459 = vunpack.c.h.b16 %v1966
      %v3460 = vunpack.c.l.b16 %v1967
      %v3461 = vunpack.c.h.b16 %v1967
      %v3462 = vunpack.c.l.b16 %v1968
      %v3463 = vunpack.c.h.b16 %v1968
      %v3464 = vunpack.c.l.b16 %v1969
      %v3465 = vunpack.c.h.b16 %v1969
      %v3466 = vunpack.c.l.b16 %v1970
      %v3467 = vunpack.c.h.b16 %v1970
      %v3468 = vunpack.c.l.b16 %v1971
      %v3469 = vunpack.c.h.b16 %v1971
      %v3470 = vunpack.c.l.b16 %v1972
      %v3471 = vunpack.c.h.b16 %v1972
      %v3472 = vunpack.c.l.b16 %v1973
      %v3473 = vunpack.c.h.b16 %v1973
      %v3474 = vunpack.c.l.b16 %v1974
      %v3475 = vunpack.c.h.b16 %v1974
      %v3476 = vunpack.c.l.b16 %v1975
      %v3477 = vunpack.c.h.b16 %v1975
      %v3478 = vunpack.c.l.b16 %v1976
      %v3479 = vunpack.c.h.b16 %v1976
      %v3480 = vunpack.c.l.b16 %v1977
      %v3481 = vunpack.c.h.b16 %v1977
      %v3482 = vunpack.c.l.b16 %v1978
      %v3483 = vunpack.c.h.b16 %v1978
      %v3484 = vunpack.c.l.b16 %v1979
      %v3485 = vunpack.c.h.b16 %v1979
      %v3486 = vunpack.c.l.b16 %v1980
      %v3487 = vunpack.c.h.b16 %v1980
      %v3488 = vunpack.c.l.b16 %v1981
      %v3489 = vunpack.c.h.b16 %v1981
      %v3490 = vunpack.c.l.b16 %v1982
      %v3491 = vunpack.c.h.b16 %v1982
      %v3492 = vunpack.c.l.b16 %v1983
      %v3493 = vunpack.c.h.b16 %v1983
      %v3494 = vunpack.c.l.b16 %v1984
      %v3495 = vunpack.c.h.b16 %v1984
      %v3496 = vunpack.c.l.b16 %v1985
      %v3497 = vunpack.c.h.b16 %v1985
      %v3498 = vunpack.c.l.b16 %v1986
      %v3499 = vunpack.c.h.b16 %v1986
      %v3500 = vunpack.c.l.b16 %v1987
      %v3501 = vunpack.c.h.b16 %v1987
      %v3502 = vunpack.c.l.b16 %v1988
      %v3503 = vunpack.c.h.b16 %v1988
      %v3504 = vunpack.c.l.b16 %v1989
      %v3505 = vunpack.c.h.b16 %v1989
      %v3506 = vunpack.c.l.b16 %v1990
      %v3507 = vunpack.c.h.b16 %v1990
      %v3508 = vunpack.c.l.b16 %v1991
      %v3509 = vunpack.c.h.b16 %v1991
      %v3510 = vunpack.c.l.b16 %v1992
      %v3511 = vunpack.c.h.b16 %v1992
      %v3512 = vunpack.c.l.b16 %v1993
      %v3513 = vunpack.c.h.b16 %v1993
      %v3514 = vunpack.c.l.b16 %v1994
      %v3515 = vunpack.c.h.b16 %v1994
      %v3516 = vunpack.c.l.b16 %v1995
      %v3517 = vunpack.c.h.b16 %v1995
      %v3518 = vunpack.c.l.b16 %v1996
      %v3519 = vunpack.c.h.b16 %v1996
      %v3520 = vunpack.c.l.b16 %v1997
      %v3521 = vunpack.c.h.b16 %v1997
      %v3522 = vunpack.c.l.b16 %v1998
      %v3523 = vunpack.c.h.b16 %v1998
      %v3524 = vunpack.c.l.b16 %v1999
      %v3525 = vunpack.c.h.b16 %v1999
      %v3526 = vunpack.c.l.b16 %v2000
      %v3527 = vunpack.c.h.b16 %v2000
      %v3528 = vunpack.c.l.b16 %v2001
      %v3529 = vunpack.c.h.b16 %v2001
      %v3530 = vunpack.c.l.b16 %v2002
      %v3531 = vunpack.c.h.b16 %v2002
      %v3532 = vunpack.c.l.b16 %v2003
      %v3533 = vunpack.c.h.b16 %v2003
      %v3534 = vunpack.c.l.b16 %v2004
      %v3535 = vunpack.c.h.b16 %v2004
      %v3536 = vunpack.c.l.b16 %v2005
      %v3537 = vunpack.c.h.b16 %v2005
      %v3538 = vunpack.c.l.b16 %v2006
      %v3539 = vunpack.c.h.b16 %v2006
      %v3540 = vunpack.c.l.b16 %v2007
      %v3541 = vunpack.c.h.b16 %v2007
      %v3542 = vunpack.c.l.b16 %v2008
      %v3543 = vunpack.c.h.b16 %v2008
      %v3544 = vunpack.c.l.b16 %v2009
      %v3545 = vunpack.c.h.b16 %v2009
      %v3546 = vpack.c.b16 %v2554, %v2522
      %v3547 = vpack.c.b16 %v2555, %v2523
      %v3548 = vpack.c.b16 %v2556, %v2524
      %v3549 = vpack.c.b16 %v2557, %v2525
      %v3550 = vpack.c.b16 %v2558, %v2526
      %v3551 = vpack.c.b16 %v2559, %v2527
      %v3552 = vpack.c.b16 %v2560, %v2528
      %v3553 = vpack.c.b16 %v2561, %v2529
      %v3554 = vpack.c.b16 %v2562, %v2530
      %v3555 = vpack.c.b16 %v2563, %v2531
      %v3556 = vpack.c.b16 %v2564, %v2532
      %v3557 = vpack.c.b16 %v2565, %v2533
      %v3558 = vpack.c.b16 %v2566, %v2534
      %v3559 = vpack.c.b16 %v2567, %v2535
      %v3560 = vpack.c.b16 %v2568, %v2536
      %v3561 = vpack.c.b16 %v2569, %v2537
      %v3562 = vpack.c.b16 %v2570, %v2538
      %v3563 = vpack.c.b16 %v2571, %v2539
      %v3564 = vpack.c.b16 %v2572, %v2540
      %v3565 = vpack.c.b16 %v2573, %v2541
      %v3566 = vpack.c.b16 %v2574, %v2542
      %v3567 = vpack.c.b16 %v2575, %v2543
      %v3568 = vpack.c.b16 %v2576, %v2544
      %v3569 = vpack.c.b16 %v2577, %v2545
      %v3570 = vpack.c.b16 %v2578, %v2546
      %v3571 = vpack.c.b16 %v2579, %v2547
      %v3572 = vpack.c.b16 %v2580, %v2548
      %v3573 = vpack.c.b16 %v2581, %v2549
      %v3574 = vpack.c.b16 %v2582, %v2550
      %v3575 = vpack.c.b16 %v2583, %v2551
      %v3576 = vpack.c.b16 %v2584, %v2552
      %v3577 = vpack.c.b16 %v2585, %v2553
      %v3578 = vpack.c.b16 %v2618, %v2586
      %v3579 = vpack.c.b16 %v2619, %v2587
      %v3580 = vpack.c.b16 %v2620, %v2588
      %v3581 = vpack.c.b16 %v2621, %v2589
      %v3582 = vpack.c.b16 %v2622, %v2590
      %v3583 = vpack.c.b16 %v2623, %v2591
      %v3584 = vpack.c.b16 %v2624, %v2592
      %v3585 = vpack.c.b16 %v2625, %v2593
      %v3586 = vpack.c.b16 %v2626, %v2594
      %v3587 = vpack.c.b16 %v2627, %v2595
      %v3588 = vpack.c.b16 %v2628, %v2596
      %v3589 = vpack.c.b16 %v2629, %v2597
      %v3590 = vpack.c.b16 %v2630, %v2598
      %v3591 = vpack.c.b16 %v2631, %v2599
      %v3592 = vpack.c.b16 %v2632, %v2600
      %v3593 = vpack.c.b16 %v2633, %v2601
      %v3594 = vpack.c.b16 %v2634, %v2602
      %v3595 = vpack.c.b16 %v2635, %v2603
      %v3596 = vpack.c.b16 %v2636, %v2604
      %v3597 = vpack.c.b16 %v2637, %v2605
      %v3598 = vpack.c.b16 %v2638, %v2606
      %v3599 = vpack.c.b16 %v2639, %v2607
      %v3600 = vpack.c.b16 %v2640, %v2608
      %v3601 = vpack.c.b16 %v2641, %v2609
      %v3602 = vpack.c.b16 %v2642, %v2610
      %v3603 = vpack.c.b16 %v2643, %v2611
      %v3604 = vpack.c.b16 %v2644, %v2612
      %v3605 = vpack.c.b16 %v2645, %v2613
      %v3606 = vpack.c.b16 %v2646, %v2614
      %v3607 = vpack.c.b16 %v2647, %v2615
      %v3608 = vpack.c.b16 %v2648, %v2616
      %v3609 = vpack.c.b16 %v2649, %v2617
      %v3610 = vpack.c.b16 %v2682, %v2650
      %v3611 = vpack.c.b16 %v2683, %v2651
      %v3612 = vpack.c.b16 %v2684, %v2652
      %v3613 = vpack.c.b16 %v2685, %v2653
      %v3614 = vpack.c.b16 %v2686, %v2654
      %v3615 = vpack.c.b16 %v2687, %v2655
      %v3616 = vpack.c.b16 %v2688, %v2656
      %v3617 = vpack.c.b16 %v2689, %v2657
      %v3618 = vpack.c.b16 %v2690, %v2658
      %v3619 = vpack.c.b16 %v2691, %v2659
      %v3620 = vpack.c.b16 %v2692, %v2660
      %v3621 = vpack.c.b16 %v2693, %v2661
      %v3622 = vpack.c.b16 %v2694, %v2662
      %v3623 = vpack.c.b16 %v2695, %v2663
      %v3624 = vpack.c.b16 %v2696, %v2664
      %v3625 = vpack.c.b16 %v2697, %v2665
      %v3626 = vpack.c.b16 %v2698, %v2666
      %v3627 = vpack.c.b16 %v2699, %v2667
      %v3628 = vpack.c.b16 %v2700, %v2668
      %v3629 = vpack.c.b16 %v2701, %v2669
      %v3630 = vpack.c.b16 %v2702, %v2670
      %v3631 = vpack.c.b16 %v2703, %v2671
      %v3632 = vpack.c.b16 %v2704, %v2672
      %v3633 = vpack.c.b16 %v2705, %v2673
      %v3634 = vpack.c.b16 %v2706, %v2674
      %v3635 = vpack.c.b16 %v2707, %v2675
      %v3636 = vpack.c.b16 %v2708, %v2676
      %v3637 = vpack.c.b16 %v2709, %v2677
      %v3638 = vpack.c.b16 %v2710, %v2678
      %v3639 = vpack.c.b16 %v2711, %v2679
      %v3640 = vpack.c.b16 %v2712, %v2680
      %v3641 = vpack.c.b16 %v2713, %v2681
      %v3642 = vpack.c.b16 %v2746, %v2714
      %v3643 = vpack.c.b16 %v2747, %v2715
      %v3644 = vpack.c.b16 %v2748, %v2716
      %v3645 = vpack.c.b16 %v2749, %v2717
      %v3646 = vpack.c.b16 %v2750, %v2718
      %v3647 = vpack.c.b16 %v2751, %v2719
      %v3648 = vpack.c.b16 %v2752, %v2720
      %v3649 = vpack.c.b16 %v2753, %v2721
      %v3650 = vpack.c.b16 %v2754, %v2722
      %v3651 = vpack.c.b16 %v2755, %v2723
      %v3652 = vpack.c.b16 %v2756, %v2724
      %v3653 = vpack.c.b16 %v2757, %v2725
      %v3654 = vpack.c.b16 %v2758, %v2726
      %v3655 = vpack.c.b16 %v2759, %v2727
      %v3656 = vpack.c.b16 %v2760, %v2728
      %v3657 = vpack.c.b16 %v2761, %v2729
      %v3658 = vpack.c.b16 %v2762, %v2730
      %v3659 = vpack.c.b16 %v2763, %v2731
      %v3660 = vpack.c.b16 %v2764, %v2732
      %v3661 = vpack.c.b16 %v2765, %v2733
      %v3662 = vpack.c.b16 %v2766, %v2734
      %v3663 = vpack.c.b16 %v2767, %v2735
      %v3664 = vpack.c.b16 %v2768, %v2736
      %v3665 = vpack.c.b16 %v2769, %v2737
      %v3666 = vpack.c.b16 %v2770, %v2738
      %v3667 = vpack.c.b16 %v2771, %v2739
      %v3668 = vpack.c.b16 %v2772, %v2740
      %v3669 = vpack.c.b16 %v2773, %v2741
      %v3670 = vpack.c.b16 %v2774, %v2742
      %v3671 = vpack.c.b16 %v2775, %v2743
      %v3672 = vpack.c.b16 %v2776, %v2744
      %v3673 = vpack.c.b16 %v2777, %v2745
      %v3674 = vpack.c.b16 %v2810, %v2778
      %v3675 = vpack.c.b16 %v2811, %v2779
      %v3676 = vpack.c.b16 %v2812, %v2780
      %v3677 = vpack.c.b16 %v2813, %v2781
      %v3678 = vpack.c.b16 %v2814, %v2782
      %v3679 = vpack.c.b16 %v2815, %v2783
      %v3680 = vpack.c.b16 %v2816, %v2784
      %v3681 = vpack.c.b16 %v2817, %v2785
      %v3682 = vpack.c.b16 %v2818, %v2786
      %v3683 = vpack.c.b16 %v2819, %v2787
      %v3684 = vpack.c.b16 %v2820, %v2788
      %v3685 = vpack.c.b16 %v2821, %v2789
      %v3686 = vpack.c.b16 %v2822, %v2790
      %v3687 = vpack.c.b16 %v2823, %v2791
      %v3688 = vpack.c.b16 %v2824, %v2792
      %v3689 = vpack.c.b16 %v2825, %v2793
      %v3690 = vpack.c.b16 %v2826, %v2794
      %v3691 = vpack.c.b16 %v2827, %v2795
      %v3692 = vpack.c.b16 %v2828, %v2796
      %v3693 = vpack.c.b16 %v2829, %v2797
      %v3694 = vpack.c.b16 %v2830, %v2798
      %v3695 = vpack.c.b16 %v2831, %v2799
      %v3696 = vpack.c.b16 %v2832, %v2800
      %v3697 = vpack.c.b16 %v2833, %v2801
      %v3698 = vpack.c.b16 %v2834, %v2802
      %v3699 = vpack.c.b16 %v2835, %v2803
      %v3700 = vpack.c.b16 %v2836, %v2804
      %v3701 = vpack.c.b16 %v2837, %v2805
      %v3702 = vpack.c.b16 %v2838, %v2806
      %v3703 = vpack.c.b16 %v2839, %v2807
      %v3704 = vpack.c.b16 %v2840, %v2808
      %v3705 = vpack.c.b16 %v2841, %v2809
      %v3706 = vpack.c.b16 %v2874, %v2842
      %v3707 = vpack.c.b16 %v2875, %v2843
      %v3708 = vpack.c.b16 %v2876, %v2844
      %v3709 = vpack.c.b16 %v2877, %v2845
      %v3710 = vpack.c.b16 %v2878, %v2846
      %v3711 = vpack.c.b16 %v2879, %v2847
      %v3712 = vpack.c.b16 %v2880, %v2848
      %v3713 = vpack.c.b16 %v2881, %v2849
      %v3714 = vpack.c.b16 %v2882, %v2850
      %v3715 = vpack.c.b16 %v2883, %v2851
      %v3716 = vpack.c.b16 %v2884, %v2852
      %v3717 = vpack.c.b16 %v2885, %v2853
      %v3718 = vpack.c.b16 %v2886, %v2854
      %v3719 = vpack.c.b16 %v2887, %v2855
      %v3720 = vpack.c.b16 %v2888, %v2856
      %v3721 = vpack.c.b16 %v2889, %v2857
      %v3722 = vpack.c.b16 %v2890, %v2858
      %v3723 = vpack.c.b16 %v2891, %v2859
      %v3724 = vpack.c.b16 %v2892, %v2860
      %v3725 = vpack.c.b16 %v2893, %v2861
      %v3726 = vpack.c.b16 %v2894, %v2862
      %v3727 = vpack.c.b16 %v2895, %v2863
      %v3728 = vpack.c.b16 %v2896, %v2864
      %v3729 = vpack.c.b16 %v2897, %v2865
      %v3730 = vpack.c.b16 %v2898, %v2866
      %v3731 = vpack.c.b16 %v2899, %v2867
      %v3732 = vpack.c.b16 %v2900, %v2868
      %v3733 = vpack.c.b16 %v2901, %v2869
      %v3734 = vpack.c.b16 %v2902, %v2870
      %v3735 = vpack.c.b16 %v2903, %v2871
      %v3736 = vpack.c.b16 %v2904, %v2872
      %v3737 = vpack.c.b16 %v2905, %v2873
      %v3738 = vpack.c.b16 %v2938, %v2906
      %v3739 = vpack.c.b16 %v2939, %v2907
      %v3740 = vpack.c.b16 %v2940, %v2908
      %v3741 = vpack.c.b16 %v2941, %v2909
      %v3742 = vpack.c.b16 %v2942, %v2910
      %v3743 = vpack.c.b16 %v2943, %v2911
      %v3744 = vpack.c.b16 %v2944, %v2912
      %v3745 = vpack.c.b16 %v2945, %v2913
      %v3746 = vpack.c.b16 %v2946, %v2914
      %v3747 = vpack.c.b16 %v2947, %v2915
      %v3748 = vpack.c.b16 %v2948, %v2916
      %v3749 = vpack.c.b16 %v2949, %v2917
      %v3750 = vpack.c.b16 %v2950, %v2918
      %v3751 = vpack.c.b16 %v2951, %v2919
      %v3752 = vpack.c.b16 %v2952, %v2920
      %v3753 = vpack.c.b16 %v2953, %v2921
      %v3754 = vpack.c.b16 %v2954, %v2922
      %v3755 = vpack.c.b16 %v2955, %v2923
      %v3756 = vpack.c.b16 %v2956, %v2924
      %v3757 = vpack.c.b16 %v2957, %v2925
      %v3758 = vpack.c.b16 %v2958, %v2926
      %v3759 = vpack.c.b16 %v2959, %v2927
      %v3760 = vpack.c.b16 %v2960, %v2928
      %v3761 = vpack.c.b16 %v2961, %v2929
      %v3762 = vpack.c.b16 %v2962, %v2930
      %v3763 = vpack.c.b16 %v2963, %v2931
      %v3764 = vpack.c.b16 %v2964, %v2932
      %v3765 = vpack.c.b16 %v2965, %v2933
      %v3766 = vpack.c.b16 %v2966, %v2934
      %v3767 = vpack.c.b16 %v2967, %v2935
      %v3768 = vpack.c.b16 %v2968, %v2936
      %v3769 = vpack.c.b16 %v2969, %v2937
      %v3770 = vpack.c.b16 %v3002, %v2970
      %v3771 = vpack.c.b16 %v3003, %v2971
      %v3772 = vpack.c.b16 %v3004, %v2972
      %v3773 = vpack.c.b16 %v3005, %v2973
      %v3774 = vpack.c.b16 %v3006, %v2974
      %v3775 = vpack.c.b16 %v3007, %v2975
      %v3776 = vpack.c.b16 %v3008, %v2976
      %v3777 = vpack.c.b16 %v3009, %v2977
      %v3778 = vpack.c.b16 %v3010, %v2978
      %v3779 = vpack.c.b16 %v3011, %v2979
      %v3780 = vpack.c.b16 %v3012, %v2980
      %v3781 = vpack.c.b16 %v3013, %v2981
      %v3782 = vpack.c.b16 %v3014, %v2982
      %v3783 = vpack.c.b16 %v3015, %v2983
      %v3784 = vpack.c.b16 %v3016, %v2984
      %v3785 = vpack.c.b16 %v3017, %v2985
      %v3786 = vpack.c.b16 %v3018, %v2986
      %v3787 = vpack.c.b16 %v3019, %v2987
      %v3788 = vpack.c.b16 %v3020, %v2988
      %v3789 = vpack.c.b16 %v3021, %v2989
      %v3790 = vpack.c.b16 %v3022, %v2990
      %v3791 = vpack.c.b16 %v3023, %v2991
      %v3792 = vpack.c.b16 %v3024, %v2992
      %v3793 = vpack.c.b16 %v3025, %v2993
      %v3794 = vpack.c.b16 %v3026, %v2994
      %v3795 = vpack.c.b16 %v3027, %v2995
      %v3796 = vpack.c.b16 %v3028, %v2996
      %v3797 = vpack.c.b16 %v3029, %v2997
      %v3798 = vpack.c.b16 %v3030, %v2998
      %v3799 = vpack.c.b16 %v3031, %v2999
      %v3800 = vpack.c.b16 %v3032, %v3000
      %v3801 = vpack.c.b16 %v3033, %v3001
      %v3802 = vpack.c.b16 %v3066, %v3034
      %v3803 = vpack.c.b16 %v3067, %v3035
      %v3804 = vpack.c.b16 %v3068, %v3036
      %v3805 = vpack.c.b16 %v3069, %v3037
      %v3806 = vpack.c.b16 %v3070, %v3038
      %v3807 = vpack.c.b16 %v3071, %v3039
      %v3808 = vpack.c.b16 %v3072, %v3040
      %v3809 = vpack.c.b16 %v3073, %v3041
      %v3810 = vpack.c.b16 %v3074, %v3042
      %v3811 = vpack.c.b16 %v3075, %v3043
      %v3812 = vpack.c.b16 %v3076, %v3044
      %v3813 = vpack.c.b16 %v3077, %v3045
      %v3814 = vpack.c.b16 %v3078, %v3046
      %v3815 = vpack.c.b16 %v3079, %v3047
      %v3816 = vpack.c.b16 %v3080, %v3048
      %v3817 = vpack.c.b16 %v3081, %v3049
      %v3818 = vpack.c.b16 %v3082, %v3050
      %v3819 = vpack.c.b16 %v3083, %v3051
      %v3820 = vpack.c.b16 %v3084, %v3052
      %v3821 = vpack.c.b16 %v3085, %v3053
      %v3822 = vpack.c.b16 %v3086, %v3054
      %v3823 = vpack.c.b16 %v3087, %v3055
      %v3824 = vpack.c.b16 %v3088, %v3056
      %v3825 = vpack.c.b16 %v3089, %v3057
      %v3826 = vpack.c.b16 %v3090, %v3058
      %v3827 = vpack.c.b16 %v3091, %v3059
      %v3828 = vpack.c.b16 %v3092, %v3060
      %v3829 = vpack.c.b16 %v3093, %v3061
      %v3830 = vpack.c.b16 %v3094, %v3062
      %v3831 = vpack.c.b16 %v3095, %v3063
      %v3832 = vpack.c.b16 %v3096, %v3064
      %v3833 = vpack.c.b16 %v3097, %v3065
      %v3834 = vpack.c.b16 %v3130, %v3098
      %v3835 = vpack.c.b16 %v3131, %v3099
      %v3836 = vpack.c.b16 %v3132, %v3100
      %v3837 = vpack.c.b16 %v3133, %v3101
      %v3838 = vpack.c.b16 %v3134, %v3102
      %v3839 = vpack.c.b16 %v3135, %v3103
      %v3840 = vpack.c.b16 %v3136, %v3104
      %v3841 = vpack.c.b16 %v3137, %v3105
      %v3842 = vpack.c.b16 %v3138, %v3106
      %v3843 = vpack.c.b16 %v3139, %v3107
      %v3844 = vpack.c.b16 %v3140, %v3108
      %v3845 = vpack.c.b16 %v3141, %v3109
      %v3846 = vpack.c.b16 %v3142, %v3110
      %v3847 = vpack.c.b16 %v3143, %v3111
      %v3848 = vpack.c.b16 %v3144, %v3112
      %v3849 = vpack.c.b16 %v3145, %v3113
      %v3850 = vpack.c.b16 %v3146, %v3114
      %v3851 = vpack.c.b16 %v3147, %v3115
      %v3852 = vpack.c.b16 %v3148, %v3116
      %v3853 = vpack.c.b16 %v3149, %v3117
      %v3854 = vpack.c.b16 %v3150, %v3118
      %v3855 = vpack.c.b16 %v3151, %v3119
      %v3856 = vpack.c.b16 %v3152, %v3120
      %v3857 = vpack.c.b16 %v3153, %v3121
      %v3858 = vpack.c.b16 %v3154, %v3122
      %v3859 = vpack.c.b16 %v3155, %v3123
      %v3860 = vpack.c.b16 %v3156, %v3124
      %v3861 = vpack.c.b16 %v3157, %v3125
      %v3862 = vpack.c.b16 %v3158, %v3126
      %v3863 = vpack.c.b16 %v3159, %v3127
      %v3864 = vpack.c.b16 %v3160, %v3128
      %v3865 = vpack.c.b16 %v3161, %v3129
      %v3866 = vpack.c.b16 %v3194, %v3162
      %v3867 = vpack.c.b16 %v3195, %v3163
      %v3868 = vpack.c.b16 %v3196, %v3164
      %v3869 = vpack.c.b16 %v3197, %v3165
      %v3870 = vpack.c.b16 %v3198, %v3166
      %v3871 = vpack.c.b16 %v3199, %v3167
      %v3872 = vpack.c.b16 %v3200, %v3168
      %v3873 = vpack.c.b16 %v3201, %v3169
      %v3874 = vpack.c.b16 %v3202, %v3170
      %v3875 = vpack.c.b16 %v3203, %v3171
      %v3876 = vpack.c.b16 %v3204, %v3172
      %v3877 = vpack.c.b16 %v3205, %v3173
      %v3878 = vpack.c.b16 %v3206, %v3174
      %v3879 = vpack.c.b16 %v3207, %v3175
      %v3880 = vpack.c.b16 %v3208, %v3176
      %v3881 = vpack.c.b16 %v3209, %v3177
      %v3882 = vpack.c.b16 %v3210, %v3178
      %v3883 = vpack.c.b16 %v3211, %v3179
      %v3884 = vpack.c.b16 %v3212, %v3180
      %v3885 = vpack.c.b16 %v3213, %v3181
      %v3886 = vpack.c.b16 %v3214, %v3182
      %v3887 = vpack.c.b16 %v3215, %v3183
      %v3888 = vpack.c.b16 %v3216, %v3184
      %v3889 = vpack.c.b16 %v3217, %v3185
      %v3890 = vpack.c.b16 %v3218, %v3186
      %v3891 = vpack.c.b16 %v3219, %v3187
      %v3892 = vpack.c.b16 %v3220, %v3188
      %v3893 = vpack.c.b16 %v3221, %v3189
      %v3894 = vpack.c.b16 %v3222, %v3190
      %v3895 = vpack.c.b16 %v3223, %v3191
      %v3896 = vpack.c.b16 %v3224, %v3192
      %v3897 = vpack.c.b16 %v3225, %v3193
      %v3898 = vpack.c.b16 %v3258, %v3226
      %v3899 = vpack.c.b16 %v3259, %v3227
      %v3900 = vpack.c.b16 %v3260, %v3228
      %v3901 = vpack.c.b16 %v3261, %v3229
      %v3902 = vpack.c.b16 %v3262, %v3230
      %v3903 = vpack.c.b16 %v3263, %v3231
      %v3904 = vpack.c.b16 %v3264, %v3232
      %v3905 = vpack.c.b16 %v3265, %v3233
      %v3906 = vpack.c.b16 %v3266, %v3234
      %v3907 = vpack.c.b16 %v3267, %v3235
      %v3908 = vpack.c.b16 %v3268, %v3236
      %v3909 = vpack.c.b16 %v3269, %v3237
      %v3910 = vpack.c.b16 %v3270, %v3238
      %v3911 = vpack.c.b16 %v3271, %v3239
      %v3912 = vpack.c.b16 %v3272, %v3240
      %v3913 = vpack.c.b16 %v3273, %v3241
      %v3914 = vpack.c.b16 %v3274, %v3242
      %v3915 = vpack.c.b16 %v3275, %v3243
      %v3916 = vpack.c.b16 %v3276, %v3244
      %v3917 = vpack.c.b16 %v3277, %v3245
      %v3918 = vpack.c.b16 %v3278, %v3246
      %v3919 = vpack.c.b16 %v3279, %v3247
      %v3920 = vpack.c.b16 %v3280, %v3248
      %v3921 = vpack.c.b16 %v3281, %v3249
      %v3922 = vpack.c.b16 %v3282, %v3250
      %v3923 = vpack.c.b16 %v3283, %v3251
      %v3924 = vpack.c.b16 %v3284, %v3252
      %v3925 = vpack.c.b16 %v3285, %v3253
      %v3926 = vpack.c.b16 %v3286, %v3254
      %v3927 = vpack.c.b16 %v3287, %v3255
      %v3928 = vpack.c.b16 %v3288, %v3256
      %v3929 = vpack.c.b16 %v3289, %v3257
      %v3930 = vpack.c.b16 %v3322, %v3290
      %v3931 = vpack.c.b16 %v3323, %v3291
      %v3932 = vpack.c.b16 %v3324, %v3292
      %v3933 = vpack.c.b16 %v3325, %v3293
      %v3934 = vpack.c.b16 %v3326, %v3294
      %v3935 = vpack.c.b16 %v3327, %v3295
      %v3936 = vpack.c.b16 %v3328, %v3296
      %v3937 = vpack.c.b16 %v3329, %v3297
      %v3938 = vpack.c.b16 %v3330, %v3298
      %v3939 = vpack.c.b16 %v3331, %v3299
      %v3940 = vpack.c.b16 %v3332, %v3300
      %v3941 = vpack.c.b16 %v3333, %v3301
      %v3942 = vpack.c.b16 %v3334, %v3302
      %v3943 = vpack.c.b16 %v3335, %v3303
      %v3944 = vpack.c.b16 %v3336, %v3304
      %v3945 = vpack.c.b16 %v3337, %v3305
      %v3946 = vpack.c.b16 %v3338, %v3306
      %v3947 = vpack.c.b16 %v3339, %v3307
      %v3948 = vpack.c.b16 %v3340, %v3308
      %v3949 = vpack.c.b16 %v3341, %v3309
      %v3950 = vpack.c.b16 %v3342, %v3310
      %v3951 = vpack.c.b16 %v3343, %v3311
      %v3952 = vpack.c.b16 %v3344, %v3312
      %v3953 = vpack.c.b16 %v3345, %v3313
      %v3954 = vpack.c.b16 %v3346, %v3314
      %v3955 = vpack.c.b16 %v3347, %v3315
      %v3956 = vpack.c.b16 %v3348, %v3316
      %v3957 = vpack.c.b16 %v3349, %v3317
      %v3958 = vpack.c.b16 %v3350, %v3318
      %v3959 = vpack.c.b16 %v3351, %v3319
      %v3960 = vpack.c.b16 %v3352, %v3320
      %v3961 = vpack.c.b16 %v3353, %v3321
      %v3962 = vpack.c.b16 %v3386, %v3354
      %v3963 = vpack.c.b16 %v3387, %v3355
      %v3964 = vpack.c.b16 %v3388, %v3356
      %v3965 = vpack.c.b16 %v3389, %v3357
      %v3966 = vpack.c.b16 %v3390, %v3358
      %v3967 = vpack.c.b16 %v3391, %v3359
      %v3968 = vpack.c.b16 %v3392, %v3360
      %v3969 = vpack.c.b16 %v3393, %v3361
      %v3970 = vpack.c.b16 %v3394, %v3362
      %v3971 = vpack.c.b16 %v3395, %v3363
      %v3972 = vpack.c.b16 %v3396, %v3364
      %v3973 = vpack.c.b16 %v3397, %v3365
      %v3974 = vpack.c.b16 %v3398, %v3366
      %v3975 = vpack.c.b16 %v3399, %v3367
      %v3976 = vpack.c.b16 %v3400, %v3368
      %v3977 = vpack.c.b16 %v3401, %v3369
      %v3978 = vpack.c.b16 %v3402, %v3370
      %v3979 = vpack.c.b16 %v3403, %v3371
      %v3980 = vpack.c.b16 %v3404, %v3372
      %v3981 = vpack.c.b16 %v3405, %v3373
      %v3982 = vpack.c.b16 %v3406, %v3374
      %v3983 = vpack.c.b16 %v3407, %v3375
      %v3984 = vpack.c.b16 %v3408, %v3376
      %v3985 = vpack.c.b16 %v3409, %v3377
      %v3986 = vpack.c.b16 %v3410, %v3378
      %v3987 = vpack.c.b16 %v3411, %v3379
      %v3988 = vpack.c.b16 %v3412, %v3380
      %v3989 = vpack.c.b16 %v3413, %v3381
      %v3990 = vpack.c.b16 %v3414, %v3382
      %v3991 = vpack.c.b16 %v3415, %v3383
      %v3992 = vpack.c.b16 %v3416, %v3384
      %v3993 = vpack.c.b16 %v3417, %v3385
      %v3994 = vpack.c.b16 %v3450, %v3418
      %v3995 = vpack.c.b16 %v3451, %v3419
      %v3996 = vpack.c.b16 %v3452, %v3420
      %v3997 = vpack.c.b16 %v3453, %v3421
      %v3998 = vpack.c.b16 %v3454, %v3422
      %v3999 = vpack.c.b16 %v3455, %v3423
      %v4000 = vpack.c.b16 %v3456, %v3424
      %v4001 = vpack.c.b16 %v3457, %v3425
      %v4002 = vpack.c.b16 %v3458, %v3426
      %v4003 = vpack.c.b16 %v3459, %v3427
      %v4004 = vpack.c.b16 %v3460, %v3428
      %v4005 = vpack.c.b16 %v3461, %v3429
      %v4006 = vpack.c.b16 %v3462, %v3430
      %v4007 = vpack.c.b16 %v3463, %v3431
      %v4008 = vpack.c.b16 %v3464, %v3432
      %v4009 = vpack.c.b16 %v3465, %v3433
      %v4010 = vpack.c.b16 %v3466, %v3434
      %v4011 = vpack.c.b16 %v3467, %v3435
      %v4012 = vpack.c.b16 %v3468, %v3436
      %v4013 = vpack.c.b16 %v3469, %v3437
      %v4014 = vpack.c.b16 %v3470, %v3438
      %v4015 = vpack.c.b16 %v3471, %v3439
      %v4016 = vpack.c.b16 %v3472, %v3440
      %v4017 = vpack.c.b16 %v3473, %v3441
      %v4018 = vpack.c.b16 %v3474, %v3442
      %v4019 = vpack.c.b16 %v3475, %v3443
      %v4020 = vpack.c.b16 %v3476, %v3444
      %v4021 = vpack.c.b16 %v3477, %v3445
      %v4022 = vpack.c.b16 %v3478, %v3446
      %v4023 = vpack.c.b16 %v3479, %v3447
      %v4024 = vpack.c.b16 %v3480, %v3448
      %v4025 = vpack.c.b16 %v3481, %v3449
      %v4026 = vpack.c.b16 %v3514, %v3482
      %v4027 = vpack.c.b16 %v3515, %v3483
      %v4028 = vpack.c.b16 %v3516, %v3484
      %v4029 = vpack.c.b16 %v3517, %v3485
      %v4030 = vpack.c.b16 %v3518, %v3486
      %v4031 = vpack.c.b16 %v3519, %v3487
      %v4032 = vpack.c.b16 %v3520, %v3488
      %v4033 = vpack.c.b16 %v3521, %v3489
      %v4034 = vpack.c.b16 %v3522, %v3490
      %v4035 = vpack.c.b16 %v3523, %v3491
      %v4036 = vpack.c.b16 %v3524, %v3492
      %v4037 = vpack.c.b16 %v3525, %v3493
      %v4038 = vpack.c.b16 %v3526, %v3494
      %v4039 = vpack.c.b16 %v3527, %v3495
      %v4040 = vpack.c.b16 %v3528, %v3496
      %v4041 = vpack.c.b16 %v3529, %v3497
      %v4042 = vpack.c.b16 %v3530, %v3498
      %v4043 = vpack.c.b16 %v3531, %v3499
      %v4044 = vpack.c.b16 %v3532, %v3500
      %v4045 = vpack.c.b16 %v3533, %v3501
      %v4046 = vpack.c.b16 %v3534, %v3502
      %v4047 = vpack.c.b16 %v3535, %v3503
      %v4048 = vpack.c.b16 %v3536, %v3504
      %v4049 = vpack.c.b16 %v3537, %v3505
      %v4050 = vpack.c.b16 %v3538, %v3506
      %v4051 = vpack.c.b16 %v3539, %v3507
      %v4052 = vpack.c.b16 %v3540, %v3508
      %v4053 = vpack.c.b16 %v3541, %v3509
      %v4054 = vpack.c.b16 %v3542, %v3510
      %v4055 = vpack.c.b16 %v3543, %v3511
      %v4056 = vpack.c.b16 %v3544, %v3512
      %v4057 = vpack.c.b16 %v3545, %v3513
      %4570 = vmatprep.subr.bf16.mxu0 %v3547
      %4571 = vmatpush1.bf16.msra.mxu0 %v3546
      %4572 = vmatprep.subr.bf16.mxu0 %v3579
      %4573 = vmatpush1.bf16.msra.mxu0 %v3578
      %4574 = vmatprep.subr.bf16.mxu0 %v3611
      %4575 = vmatpush1.bf16.msra.mxu0 %v3610
      %4576 = vmatprep.subr.bf16.mxu0 %v3643
      %4577 = vmatpush1.bf16.msra.mxu0 %v3642
      %4578 = vmatprep.subr.bf16.mxu0 %v3675
      %4579 = vmatpush1.bf16.msra.mxu0 %v3674
      %4580 = vmatprep.subr.bf16.mxu0 %v3707
      %4581 = vmatpush1.bf16.msra.mxu0 %v3706
      %4582 = vmatprep.subr.bf16.mxu0 %v3739
      %4583 = vmatpush1.bf16.msra.mxu0 %v3738
      %4584 = vmatprep.subr.bf16.mxu0 %v3771
      %4585 = vmatpush1.bf16.msra.mxu0 %v3770
      %4586 = vmatprep.subr.bf16.mxu0 %v3803
      %4587 = vmatpush1.bf16.msra.mxu0 %v3802
      %4588 = vmatprep.subr.bf16.mxu0 %v3835
      %4589 = vmatpush1.bf16.msra.mxu0 %v3834
      %4590 = vmatprep.subr.bf16.mxu0 %v3867
      %4591 = vmatpush1.bf16.msra.mxu0 %v3866
      %4592 = vmatprep.subr.bf16.mxu0 %v3899
      %4593 = vmatpush1.bf16.msra.mxu0 %v3898
      %4594 = vmatprep.subr.bf16.mxu0 %v3931
      %4595 = vmatpush1.bf16.msra.mxu0 %v3930
      %4596 = vmatprep.subr.bf16.mxu0 %v3963
      %4597 = vmatpush1.bf16.msra.mxu0 %v3962
      %4598 = vmatprep.subr.bf16.mxu0 %v3995
      %4599 = vmatpush1.bf16.msra.mxu0 %v3994
      %4600 = vmatprep.subr.bf16.mxu0 %v4027
      %4601 = vmatpush1.bf16.msra.mxu0 %v4026
      %4602 = vmatprep.mubr.bf16.mxu0 %v1497
      %4603 = vmatmul.mubr.bf16.gmra.mrb[0].mxu0 %v1496
      %v4604 = vpop.f32.mrb[0].mxu0
      %v4605 = vadd.f32 0.0, %v4604
      %v4606 = vpop.f32.mrb[0].mxu0
      %v4607 = vadd.f32 0.0, %v4606
      %v4608 = vpop.f32.mrb[0].mxu0
      %v4609 = vpop.f32.mrb[0].mxu0
      %4610 = vdwg.mxu0
      %4611 = vmatprep.subr.bf16.mxu0 %v3549
      %4612 = vmatpush1.bf16.msra.mxu0 %v3548
      %4613 = vmatprep.subr.bf16.mxu0 %v3581
      %4614 = vmatpush1.bf16.msra.mxu0 %v3580
      %4615 = vmatprep.subr.bf16.mxu0 %v3613
      %4616 = vmatpush1.bf16.msra.mxu0 %v3612
      %4617 = vmatprep.subr.bf16.mxu0 %v3645
      %4618 = vmatpush1.bf16.msra.mxu0 %v3644
      %4619 = vmatprep.subr.bf16.mxu0 %v3677
      %4620 = vmatpush1.bf16.msra.mxu0 %v3676
      %4621 = vmatprep.subr.bf16.mxu0 %v3709
      %4622 = vmatpush1.bf16.msra.mxu0 %v3708
      %4623 = vmatprep.subr.bf16.mxu0 %v3741
      %4624 = vmatpush1.bf16.msra.mxu0 %v3740
      %4625 = vmatprep.subr.bf16.mxu0 %v3773
      %4626 = vmatpush1.bf16.msra.mxu0 %v3772
      %4627 = vmatprep.subr.bf16.mxu0 %v3805
      %4628 = vmatpush1.bf16.msra.mxu0 %v3804
      %4629 = vmatprep.subr.bf16.mxu0 %v3837
      %4630 = vmatpush1.bf16.msra.mxu0 %v3836
      %4631 = vmatprep.subr.bf16.mxu0 %v3869
      %4632 = vmatpush1.bf16.msra.mxu0 %v3868
      %4633 = vmatprep.subr.bf16.mxu0 %v3901
      %4634 = vmatpush1.bf16.msra.mxu0 %v3900
      %4635 = vmatprep.subr.bf16.mxu0 %v3933
      %4636 = vmatpush1.bf16.msra.mxu0 %v3932
      %4637 = vmatprep.subr.bf16.mxu0 %v3965
      %4638 = vmatpush1.bf16.msra.mxu0 %v3964
      %4639 = vmatprep.subr.bf16.mxu0 %v3997
      %4640 = vmatpush1.bf16.msra.mxu0 %v3996
      %4641 = vmatprep.subr.bf16.mxu0 %v4029
      %4642 = vmatpush1.bf16.msra.mxu0 %v4028
      %4643 = vmatprep.mubr.bf16.mxu0 %v1497
      %4644 = vmatmul.mubr.bf16.gmra.mrb[0].mxu0 %v1496
      %v4645 = vpop.f32.mrb[0].mxu0
      %v4646 = vadd.f32 0.0, %v4645
      %v4647 = vpop.f32.mrb[0].mxu0
      %v4648 = vadd.f32 0.0, %v4647
      %v4649 = vpop.f32.mrb[0].mxu0
      %v4650 = vpop.f32.mrb[0].mxu0
      %4651 = vdwg.mxu0
      %4652 = vmatprep.subr.bf16.mxu0 %v3551
      %4653 = vmatpush1.bf16.msra.mxu0 %v3550
      %4654 = vmatprep.subr.bf16.mxu0 %v3583
      %4655 = vmatpush1.bf16.msra.mxu0 %v3582
      %4656 = vmatprep.subr.bf16.mxu0 %v3615
      %4657 = vmatpush1.bf16.msra.mxu0 %v3614
      %4658 = vmatprep.subr.bf16.mxu0 %v3647
      %4659 = vmatpush1.bf16.msra.mxu0 %v3646
      %4660 = vmatprep.subr.bf16.mxu0 %v3679
      %4661 = vmatpush1.bf16.msra.mxu0 %v3678
      %4662 = vmatprep.subr.bf16.mxu0 %v3711
      %4663 = vmatpush1.bf16.msra.mxu0 %v3710
      %4664 = vmatprep.subr.bf16.mxu0 %v3743
      %4665 = vmatpush1.bf16.msra.mxu0 %v3742
      %4666 = vmatprep.subr.bf16.mxu0 %v3775
      %4667 = vmatpush1.bf16.msra.mxu0 %v3774
      %4668 = vmatprep.subr.bf16.mxu0 %v3807
      %4669 = vmatpush1.bf16.msra.mxu0 %v3806
      %4670 = vmatprep.subr.bf16.mxu0 %v3839
      %4671 = vmatpush1.bf16.msra.mxu0 %v3838
      %4672 = vmatprep.subr.bf16.mxu0 %v3871
      %4673 = vmatpush1.bf16.msra.mxu0 %v3870
      %4674 = vmatprep.subr.bf16.mxu0 %v3903
      %4675 = vmatpush1.bf16.msra.mxu0 %v3902
      %4676 = vmatprep.subr.bf16.mxu0 %v3935
      %4677 = vmatpush1.bf16.msra.mxu0 %v3934
      %4678 = vmatprep.subr.bf16.mxu0 %v3967
      %4679 = vmatpush1.bf16.msra.mxu0 %v3966
      %4680 = vmatprep.subr.bf16.mxu0 %v3999
      %4681 = vmatpush1.bf16.msra.mxu0 %v3998
      %4682 = vmatprep.subr.bf16.mxu0 %v4031
      %4683 = vmatpush1.bf16.msra.mxu0 %v4030
      %4684 = vmatprep.mubr.bf16.mxu0 %v1497
      %4685 = vmatmul.mubr.bf16.gmra.mrb[0].mxu0 %v1496
      %v4686 = vpop.f32.mrb[0].mxu0
      %v4687 = vadd.f32 0.0, %v4686
      %v4688 = vpop.f32.mrb[0].mxu0
      %v4689 = vadd.f32 0.0, %v4688
      %v4690 = vpop.f32.mrb[0].mxu0
      %v4691 = vpop.f32.mrb[0].mxu0
      %4692 = vdwg.mxu0
      %4693 = vmatprep.subr.bf16.mxu0 %v3553
      %4694 = vmatpush1.bf16.msra.mxu0 %v3552
      %4695 = vmatprep.subr.bf16.mxu0 %v3585
      %4696 = vmatpush1.bf16.msra.mxu0 %v3584
      %4697 = vmatprep.subr.bf16.mxu0 %v3617
      %4698 = vmatpush1.bf16.msra.mxu0 %v3616
      %4699 = vmatprep.subr.bf16.mxu0 %v3649
      %4700 = vmatpush1.bf16.msra.mxu0 %v3648
      %4701 = vmatprep.subr.bf16.mxu0 %v3681
      %4702 = vmatpush1.bf16.msra.mxu0 %v3680
      %4703 = vmatprep.subr.bf16.mxu0 %v3713
      %4704 = vmatpush1.bf16.msra.mxu0 %v3712
      %4705 = vmatprep.subr.bf16.mxu0 %v3745
      %4706 = vmatpush1.bf16.msra.mxu0 %v3744
      %4707 = vmatprep.subr.bf16.mxu0 %v3777
      %4708 = vmatpush1.bf16.msra.mxu0 %v3776
      %4709 = vmatprep.subr.bf16.mxu0 %v3809
      %4710 = vmatpush1.bf16.msra.mxu0 %v3808
      %4711 = vmatprep.subr.bf16.mxu0 %v3841
      %4712 = vmatpush1.bf16.msra.mxu0 %v3840
      %4713 = vmatprep.subr.bf16.mxu0 %v3873
      %4714 = vmatpush1.bf16.msra.mxu0 %v3872
      %4715 = vmatprep.subr.bf16.mxu0 %v3905
      %4716 = vmatpush1.bf16.msra.mxu0 %v3904
      %4717 = vmatprep.subr.bf16.mxu0 %v3937
      %4718 = vmatpush1.bf16.msra.mxu0 %v3936
      %4719 = vmatprep.subr.bf16.mxu0 %v3969
      %4720 = vmatpush1.bf16.msra.mxu0 %v3968
      %4721 = vmatprep.subr.bf16.mxu0 %v4001
      %4722 = vmatpush1.bf16.msra.mxu0 %v4000
      %4723 = vmatprep.subr.bf16.mxu0 %v4033
      %4724 = vmatpush1.bf16.msra.mxu0 %v4032
      %4725 = vmatprep.mubr.bf16.mxu0 %v1497
      %4726 = vmatmul.mubr.bf16.gmra.mrb[0].mxu0 %v1496
      %v4727 = vpop.f32.mrb[0].mxu0
      %v4728 = vadd.f32 0.0, %v4727
      %v4729 = vpop.f32.mrb[0].mxu0
      %v4730 = vadd.f32 0.0, %v4729
      %v4731 = vpop.f32.mrb[0].mxu0
      %v4732 = vpop.f32.mrb[0].mxu0
      %4733 = vdwg.mxu0
      %4734 = vmatprep.subr.bf16.mxu0 %v3555
      %4735 = vmatpush1.bf16.msra.mxu0 %v3554
      %4736 = vmatprep.subr.bf16.mxu0 %v3587
      %4737 = vmatpush1.bf16.msra.mxu0 %v3586
      %4738 = vmatprep.subr.bf16.mxu0 %v3619
      %4739 = vmatpush1.bf16.msra.mxu0 %v3618
      %4740 = vmatprep.subr.bf16.mxu0 %v3651
      %4741 = vmatpush1.bf16.msra.mxu0 %v3650
      %4742 = vmatprep.subr.bf16.mxu0 %v3683
      %4743 = vmatpush1.bf16.msra.mxu0 %v3682
      %4744 = vmatprep.subr.bf16.mxu0 %v3715
      %4745 = vmatpush1.bf16.msra.mxu0 %v3714
      %4746 = vmatprep.subr.bf16.mxu0 %v3747
      %4747 = vmatpush1.bf16.msra.mxu0 %v3746
      %4748 = vmatprep.subr.bf16.mxu0 %v3779
      %4749 = vmatpush1.bf16.msra.mxu0 %v3778
      %4750 = vmatprep.subr.bf16.mxu0 %v3811
      %4751 = vmatpush1.bf16.msra.mxu0 %v3810
      %4752 = vmatprep.subr.bf16.mxu0 %v3843
      %4753 = vmatpush1.bf16.msra.mxu0 %v3842
      %4754 = vmatprep.subr.bf16.mxu0 %v3875
      %4755 = vmatpush1.bf16.msra.mxu0 %v3874
      %4756 = vmatprep.subr.bf16.mxu0 %v3907
      %4757 = vmatpush1.bf16.msra.mxu0 %v3906
      %4758 = vmatprep.subr.bf16.mxu0 %v3939
      %4759 = vmatpush1.bf16.msra.mxu0 %v3938
      %4760 = vmatprep.subr.bf16.mxu0 %v3971
      %4761 = vmatpush1.bf16.msra.mxu0 %v3970
      %4762 = vmatprep.subr.bf16.mxu0 %v4003
      %4763 = vmatpush1.bf16.msra.mxu0 %v4002
      %4764 = vmatprep.subr.bf16.mxu0 %v4035
      %4765 = vmatpush1.bf16.msra.mxu0 %v4034
      %4766 = vmatprep.mubr.bf16.mxu0 %v1497
      %4767 = vmatmul.mubr.bf16.gmra.mrb[0].mxu0 %v1496
      %v4768 = vpop.f32.mrb[0].mxu0
      %v4769 = vadd.f32 0.0, %v4768
      %v4770 = vpop.f32.mrb[0].mxu0
      %v4771 = vadd.f32 0.0, %v4770
      %v4772 = vpop.f32.mrb[0].mxu0
      %v4773 = vpop.f32.mrb[0].mxu0
      %4774 = vdwg.mxu0
      %4775 = vmatprep.subr.bf16.mxu0 %v3557
      %4776 = vmatpush1.bf16.msra.mxu0 %v3556
      %4777 = vmatprep.subr.bf16.mxu0 %v3589
      %4778 = vmatpush1.bf16.msra.mxu0 %v3588
      %4779 = vmatprep.subr.bf16.mxu0 %v3621
      %4780 = vmatpush1.bf16.msra.mxu0 %v3620
      %4781 = vmatprep.subr.bf16.mxu0 %v3653
      %4782 = vmatpush1.bf16.msra.mxu0 %v3652
      %4783 = vmatprep.subr.bf16.mxu0 %v3685
      %4784 = vmatpush1.bf16.msra.mxu0 %v3684
      %4785 = vmatprep.subr.bf16.mxu0 %v3717
      %4786 = vmatpush1.bf16.msra.mxu0 %v3716
      %4787 = vmatprep.subr.bf16.mxu0 %v3749
      %4788 = vmatpush1.bf16.msra.mxu0 %v3748
      %4789 = vmatprep.subr.bf16.mxu0 %v3781
      %4790 = vmatpush1.bf16.msra.mxu0 %v3780
      %4791 = vmatprep.subr.bf16.mxu0 %v3813
      %4792 = vmatpush1.bf16.msra.mxu0 %v3812
      %4793 = vmatprep.subr.bf16.mxu0 %v3845
      %4794 = vmatpush1.bf16.msra.mxu0 %v3844
      %4795 = vmatprep.subr.bf16.mxu0 %v3877
      %4796 = vmatpush1.bf16.msra.mxu0 %v3876
      %4797 = vmatprep.subr.bf16.mxu0 %v3909
      %4798 = vmatpush1.bf16.msra.mxu0 %v3908
      %4799 = vmatprep.subr.bf16.mxu0 %v3941
      %4800 = vmatpush1.bf16.msra.mxu0 %v3940
      %4801 = vmatprep.subr.bf16.mxu0 %v3973
      %4802 = vmatpush1.bf16.msra.mxu0 %v3972
      %4803 = vmatprep.subr.bf16.mxu0 %v4005
      %4804 = vmatpush1.bf16.msra.mxu0 %v4004
      %4805 = vmatprep.subr.bf16.mxu0 %v4037
      %4806 = vmatpush1.bf16.msra.mxu0 %v4036
      %4807 = vmatprep.mubr.bf16.mxu0 %v1497
      %4808 = vmatmul.mubr.bf16.gmra.mrb[0].mxu0 %v1496
      %v4809 = vpop.f32.mrb[0].mxu0
      %v4810 = vadd.f32 0.0, %v4809
      %v4811 = vpop.f32.mrb[0].mxu0
      %v4812 = vadd.f32 0.0, %v4811
      %v4813 = vpop.f32.mrb[0].mxu0
      %v4814 = vpop.f32.mrb[0].mxu0
      %4815 = vdwg.mxu0
      %4816 = vmatprep.subr.bf16.mxu0 %v3559
      %4817 = vmatpush1.bf16.msra.mxu0 %v3558
      %4818 = vmatprep.subr.bf16.mxu0 %v3591
      %4819 = vmatpush1.bf16.msra.mxu0 %v3590
      %4820 = vmatprep.subr.bf16.mxu0 %v3623
      %4821 = vmatpush1.bf16.msra.mxu0 %v3622
      %4822 = vmatprep.subr.bf16.mxu0 %v3655
      %4823 = vmatpush1.bf16.msra.mxu0 %v3654
      %4824 = vmatprep.subr.bf16.mxu0 %v3687
      %4825 = vmatpush1.bf16.msra.mxu0 %v3686
      %4826 = vmatprep.subr.bf16.mxu0 %v3719
      %4827 = vmatpush1.bf16.msra.mxu0 %v3718
      %4828 = vmatprep.subr.bf16.mxu0 %v3751
      %4829 = vmatpush1.bf16.msra.mxu0 %v3750
      %4830 = vmatprep.subr.bf16.mxu0 %v3783
      %4831 = vmatpush1.bf16.msra.mxu0 %v3782
      %4832 = vmatprep.subr.bf16.mxu0 %v3815
      %4833 = vmatpush1.bf16.msra.mxu0 %v3814
      %4834 = vmatprep.subr.bf16.mxu0 %v3847
      %4835 = vmatpush1.bf16.msra.mxu0 %v3846
      %4836 = vmatprep.subr.bf16.mxu0 %v3879
      %4837 = vmatpush1.bf16.msra.mxu0 %v3878
      %4838 = vmatprep.subr.bf16.mxu0 %v3911
      %4839 = vmatpush1.bf16.msra.mxu0 %v3910
      %4840 = vmatprep.subr.bf16.mxu0 %v3943
      %4841 = vmatpush1.bf16.msra.mxu0 %v3942
      %4842 = vmatprep.subr.bf16.mxu0 %v3975
      %4843 = vmatpush1.bf16.msra.mxu0 %v3974
      %4844 = vmatprep.subr.bf16.mxu0 %v4007
      %4845 = vmatpush1.bf16.msra.mxu0 %v4006
      %4846 = vmatprep.subr.bf16.mxu0 %v4039
      %4847 = vmatpush1.bf16.msra.mxu0 %v4038
      %4848 = vmatprep.mubr.bf16.mxu0 %v1497
      %4849 = vmatmul.mubr.bf16.gmra.mrb[0].mxu0 %v1496
      %v4850 = vpop.f32.mrb[0].mxu0
      %v4851 = vadd.f32 0.0, %v4850
      %v4852 = vpop.f32.mrb[0].mxu0
      %v4853 = vadd.f32 0.0, %v4852
      %v4854 = vpop.f32.mrb[0].mxu0
      %v4855 = vpop.f32.mrb[0].mxu0
      %4856 = vdwg.mxu0
      %4857 = vmatprep.subr.bf16.mxu0 %v3561
      %4858 = vmatpush1.bf16.msra.mxu0 %v3560
      %4859 = vmatprep.subr.bf16.mxu0 %v3593
      %4860 = vmatpush1.bf16.msra.mxu0 %v3592
      %4861 = vmatprep.subr.bf16.mxu0 %v3625
      %4862 = vmatpush1.bf16.msra.mxu0 %v3624
      %4863 = vmatprep.subr.bf16.mxu0 %v3657
      %4864 = vmatpush1.bf16.msra.mxu0 %v3656
      %4865 = vmatprep.subr.bf16.mxu0 %v3689
      %4866 = vmatpush1.bf16.msra.mxu0 %v3688
      %4867 = vmatprep.subr.bf16.mxu0 %v3721
      %4868 = vmatpush1.bf16.msra.mxu0 %v3720
      %4869 = vmatprep.subr.bf16.mxu0 %v3753
      %4870 = vmatpush1.bf16.msra.mxu0 %v3752
      %4871 = vmatprep.subr.bf16.mxu0 %v3785
      %4872 = vmatpush1.bf16.msra.mxu0 %v3784
      %4873 = vmatprep.subr.bf16.mxu0 %v3817
      %4874 = vmatpush1.bf16.msra.mxu0 %v3816
      %4875 = vmatprep.subr.bf16.mxu0 %v3849
      %4876 = vmatpush1.bf16.msra.mxu0 %v3848
      %4877 = vmatprep.subr.bf16.mxu0 %v3881
      %4878 = vmatpush1.bf16.msra.mxu0 %v3880
      %4879 = vmatprep.subr.bf16.mxu0 %v3913
      %4880 = vmatpush1.bf16.msra.mxu0 %v3912
      %4881 = vmatprep.subr.bf16.mxu0 %v3945
      %4882 = vmatpush1.bf16.msra.mxu0 %v3944
      %4883 = vmatprep.subr.bf16.mxu0 %v3977
      %4884 = vmatpush1.bf16.msra.mxu0 %v3976
      %4885 = vmatprep.subr.bf16.mxu0 %v4009
      %4886 = vmatpush1.bf16.msra.mxu0 %v4008
      %4887 = vmatprep.subr.bf16.mxu0 %v4041
      %4888 = vmatpush1.bf16.msra.mxu0 %v4040
      %4889 = vmatprep.mubr.bf16.mxu0 %v1497
      %4890 = vmatmul.mubr.bf16.gmra.mrb[0].mxu0 %v1496
      %v4891 = vpop.f32.mrb[0].mxu0
      %v4892 = vadd.f32 0.0, %v4891
      %v4893 = vpop.f32.mrb[0].mxu0
      %v4894 = vadd.f32 0.0, %v4893
      %v4895 = vpop.f32.mrb[0].mxu0
      %v4896 = vpop.f32.mrb[0].mxu0
      %4897 = vdwg.mxu0
      %4898 = vmatprep.subr.bf16.mxu0 %v3563
      %4899 = vmatpush1.bf16.msra.mxu0 %v3562
      %4900 = vmatprep.subr.bf16.mxu0 %v3595
      %4901 = vmatpush1.bf16.msra.mxu0 %v3594
      %4902 = vmatprep.subr.bf16.mxu0 %v3627
      %4903 = vmatpush1.bf16.msra.mxu0 %v3626
      %4904 = vmatprep.subr.bf16.mxu0 %v3659
      %4905 = vmatpush1.bf16.msra.mxu0 %v3658
      %4906 = vmatprep.subr.bf16.mxu0 %v3691
      %4907 = vmatpush1.bf16.msra.mxu0 %v3690
      %4908 = vmatprep.subr.bf16.mxu0 %v3723
      %4909 = vmatpush1.bf16.msra.mxu0 %v3722
      %4910 = vmatprep.subr.bf16.mxu0 %v3755
      %4911 = vmatpush1.bf16.msra.mxu0 %v3754
      %4912 = vmatprep.subr.bf16.mxu0 %v3787
      %4913 = vmatpush1.bf16.msra.mxu0 %v3786
      %4914 = vmatprep.subr.bf16.mxu0 %v3819
      %4915 = vmatpush1.bf16.msra.mxu0 %v3818
      %4916 = vmatprep.subr.bf16.mxu0 %v3851
      %4917 = vmatpush1.bf16.msra.mxu0 %v3850
      %4918 = vmatprep.subr.bf16.mxu0 %v3883
      %4919 = vmatpush1.bf16.msra.mxu0 %v3882
      %4920 = vmatprep.subr.bf16.mxu0 %v3915
      %4921 = vmatpush1.bf16.msra.mxu0 %v3914
      %4922 = vmatprep.subr.bf16.mxu0 %v3947
      %4923 = vmatpush1.bf16.msra.mxu0 %v3946
      %4924 = vmatprep.subr.bf16.mxu0 %v3979
      %4925 = vmatpush1.bf16.msra.mxu0 %v3978
      %4926 = vmatprep.subr.bf16.mxu0 %v4011
      %4927 = vmatpush1.bf16.msra.mxu0 %v4010
      %4928 = vmatprep.subr.bf16.mxu0 %v4043
      %4929 = vmatpush1.bf16.msra.mxu0 %v4042
      %4930 = vmatprep.mubr.bf16.mxu0 %v1497
      %4931 = vmatmul.mubr.bf16.gmra.mrb[0].mxu0 %v1496
      %v4932 = vpop.f32.mrb[0].mxu0
      %v4933 = vadd.f32 0.0, %v4932
      %v4934 = vpop.f32.mrb[0].mxu0
      %v4935 = vadd.f32 0.0, %v4934
      %v4936 = vpop.f32.mrb[0].mxu0
      %v4937 = vpop.f32.mrb[0].mxu0
      %4938 = vdwg.mxu0
      %4939 = vmatprep.subr.bf16.mxu0 %v3565
      %4940 = vmatpush1.bf16.msra.mxu0 %v3564
      %4941 = vmatprep.subr.bf16.mxu0 %v3597
      %4942 = vmatpush1.bf16.msra.mxu0 %v3596
      %4943 = vmatprep.subr.bf16.mxu0 %v3629
      %4944 = vmatpush1.bf16.msra.mxu0 %v3628
      %4945 = vmatprep.subr.bf16.mxu0 %v3661
      %4946 = vmatpush1.bf16.msra.mxu0 %v3660
      %4947 = vmatprep.subr.bf16.mxu0 %v3693
      %4948 = vmatpush1.bf16.msra.mxu0 %v3692
      %4949 = vmatprep.subr.bf16.mxu0 %v3725
      %4950 = vmatpush1.bf16.msra.mxu0 %v3724
      %4951 = vmatprep.subr.bf16.mxu0 %v3757
      %4952 = vmatpush1.bf16.msra.mxu0 %v3756
      %4953 = vmatprep.subr.bf16.mxu0 %v3789
      %4954 = vmatpush1.bf16.msra.mxu0 %v3788
      %4955 = vmatprep.subr.bf16.mxu0 %v3821
      %4956 = vmatpush1.bf16.msra.mxu0 %v3820
      %4957 = vmatprep.subr.bf16.mxu0 %v3853
      %4958 = vmatpush1.bf16.msra.mxu0 %v3852
      %4959 = vmatprep.subr.bf16.mxu0 %v3885
      %4960 = vmatpush1.bf16.msra.mxu0 %v3884
      %4961 = vmatprep.subr.bf16.mxu0 %v3917
      %4962 = vmatpush1.bf16.msra.mxu0 %v3916
      %4963 = vmatprep.subr.bf16.mxu0 %v3949
      %4964 = vmatpush1.bf16.msra.mxu0 %v3948
      %4965 = vmatprep.subr.bf16.mxu0 %v3981
      %4966 = vmatpush1.bf16.msra.mxu0 %v3980
      %4967 = vmatprep.subr.bf16.mxu0 %v4013
      %4968 = vmatpush1.bf16.msra.mxu0 %v4012
      %4969 = vmatprep.subr.bf16.mxu0 %v4045
      %4970 = vmatpush1.bf16.msra.mxu0 %v4044
      %4971 = vmatprep.mubr.bf16.mxu0 %v1497
      %4972 = vmatmul.mubr.bf16.gmra.mrb[0].mxu0 %v1496
      %v4973 = vpop.f32.mrb[0].mxu0
      %v4974 = vadd.f32 0.0, %v4973
      %v4975 = vpop.f32.mrb[0].mxu0
      %v4976 = vadd.f32 0.0, %v4975
      %v4977 = vpop.f32.mrb[0].mxu0
      %v4978 = vpop.f32.mrb[0].mxu0
      %4979 = vdwg.mxu0
      %4980 = vmatprep.subr.bf16.mxu0 %v3567
      %4981 = vmatpush1.bf16.msra.mxu0 %v3566
      %4982 = vmatprep.subr.bf16.mxu0 %v3599
      %4983 = vmatpush1.bf16.msra.mxu0 %v3598
      %4984 = vmatprep.subr.bf16.mxu0 %v3631
      %4985 = vmatpush1.bf16.msra.mxu0 %v3630
      %4986 = vmatprep.subr.bf16.mxu0 %v3663
      %4987 = vmatpush1.bf16.msra.mxu0 %v3662
      %4988 = vmatprep.subr.bf16.mxu0 %v3695
      %4989 = vmatpush1.bf16.msra.mxu0 %v3694
      %4990 = vmatprep.subr.bf16.mxu0 %v3727
      %4991 = vmatpush1.bf16.msra.mxu0 %v3726
      %4992 = vmatprep.subr.bf16.mxu0 %v3759
      %4993 = vmatpush1.bf16.msra.mxu0 %v3758
      %4994 = vmatprep.subr.bf16.mxu0 %v3791
      %4995 = vmatpush1.bf16.msra.mxu0 %v3790
      %4996 = vmatprep.subr.bf16.mxu0 %v3823
      %4997 = vmatpush1.bf16.msra.mxu0 %v3822
      %4998 = vmatprep.subr.bf16.mxu0 %v3855
      %4999 = vmatpush1.bf16.msra.mxu0 %v3854
      %5000 = vmatprep.subr.bf16.mxu0 %v3887
      %5001 = vmatpush1.bf16.msra.mxu0 %v3886
      %5002 = vmatprep.subr.bf16.mxu0 %v3919
      %5003 = vmatpush1.bf16.msra.mxu0 %v3918
      %5004 = vmatprep.subr.bf16.mxu0 %v3951
      %5005 = vmatpush1.bf16.msra.mxu0 %v3950
      %5006 = vmatprep.subr.bf16.mxu0 %v3983
      %5007 = vmatpush1.bf16.msra.mxu0 %v3982
      %5008 = vmatprep.subr.bf16.mxu0 %v4015
      %5009 = vmatpush1.bf16.msra.mxu0 %v4014
      %5010 = vmatprep.subr.bf16.mxu0 %v4047
      %5011 = vmatpush1.bf16.msra.mxu0 %v4046
      %5012 = vmatprep.mubr.bf16.mxu0 %v1497
      %5013 = vmatmul.mubr.bf16.gmra.mrb[0].mxu0 %v1496
      %v5014 = vpop.f32.mrb[0].mxu0
      %v5015 = vadd.f32 0.0, %v5014
      %v5016 = vpop.f32.mrb[0].mxu0
      %v5017 = vadd.f32 0.0, %v5016
      %v5018 = vpop.f32.mrb[0].mxu0
      %v5019 = vpop.f32.mrb[0].mxu0
      %5020 = vdwg.mxu0
      %5021 = vmatprep.subr.bf16.mxu0 %v3569
      %5022 = vmatpush1.bf16.msra.mxu0 %v3568
      %5023 = vmatprep.subr.bf16.mxu0 %v3601
      %5024 = vmatpush1.bf16.msra.mxu0 %v3600
      %5025 = vmatprep.subr.bf16.mxu0 %v3633
      %5026 = vmatpush1.bf16.msra.mxu0 %v3632
      %5027 = vmatprep.subr.bf16.mxu0 %v3665
      %5028 = vmatpush1.bf16.msra.mxu0 %v3664
      %5029 = vmatprep.subr.bf16.mxu0 %v3697
      %5030 = vmatpush1.bf16.msra.mxu0 %v3696
      %5031 = vmatprep.subr.bf16.mxu0 %v3729
      %5032 = vmatpush1.bf16.msra.mxu0 %v3728
      %5033 = vmatprep.subr.bf16.mxu0 %v3761
      %5034 = vmatpush1.bf16.msra.mxu0 %v3760
      %5035 = vmatprep.subr.bf16.mxu0 %v3793
      %5036 = vmatpush1.bf16.msra.mxu0 %v3792
      %5037 = vmatprep.subr.bf16.mxu0 %v3825
      %5038 = vmatpush1.bf16.msra.mxu0 %v3824
      %5039 = vmatprep.subr.bf16.mxu0 %v3857
      %5040 = vmatpush1.bf16.msra.mxu0 %v3856
      %5041 = vmatprep.subr.bf16.mxu0 %v3889
      %5042 = vmatpush1.bf16.msra.mxu0 %v3888
      %5043 = vmatprep.subr.bf16.mxu0 %v3921
      %5044 = vmatpush1.bf16.msra.mxu0 %v3920
      %5045 = vmatprep.subr.bf16.mxu0 %v3953
      %5046 = vmatpush1.bf16.msra.mxu0 %v3952
      %5047 = vmatprep.subr.bf16.mxu0 %v3985
      %5048 = vmatpush1.bf16.msra.mxu0 %v3984
      %5049 = vmatprep.subr.bf16.mxu0 %v4017
      %5050 = vmatpush1.bf16.msra.mxu0 %v4016
      %5051 = vmatprep.subr.bf16.mxu0 %v4049
      %5052 = vmatpush1.bf16.msra.mxu0 %v4048
      %5053 = vmatprep.mubr.bf16.mxu0 %v1497
      %5054 = vmatmul.mubr.bf16.gmra.mrb[0].mxu0 %v1496
      %v5055 = vpop.f32.mrb[0].mxu0
      %v5056 = vadd.f32 0.0, %v5055
      %v5057 = vpop.f32.mrb[0].mxu0
      %v5058 = vadd.f32 0.0, %v5057
      %v5059 = vpop.f32.mrb[0].mxu0
      %v5060 = vpop.f32.mrb[0].mxu0
      %5061 = vdwg.mxu0
      %5062 = vmatprep.subr.bf16.mxu0 %v3571
      %5063 = vmatpush1.bf16.msra.mxu0 %v3570
      %5064 = vmatprep.subr.bf16.mxu0 %v3603
      %5065 = vmatpush1.bf16.msra.mxu0 %v3602
      %5066 = vmatprep.subr.bf16.mxu0 %v3635
      %5067 = vmatpush1.bf16.msra.mxu0 %v3634
      %5068 = vmatprep.subr.bf16.mxu0 %v3667
      %5069 = vmatpush1.bf16.msra.mxu0 %v3666
      %5070 = vmatprep.subr.bf16.mxu0 %v3699
      %5071 = vmatpush1.bf16.msra.mxu0 %v3698
      %5072 = vmatprep.subr.bf16.mxu0 %v3731
      %5073 = vmatpush1.bf16.msra.mxu0 %v3730
      %5074 = vmatprep.subr.bf16.mxu0 %v3763
      %5075 = vmatpush1.bf16.msra.mxu0 %v3762
      %5076 = vmatprep.subr.bf16.mxu0 %v3795
      %5077 = vmatpush1.bf16.msra.mxu0 %v3794
      %5078 = vmatprep.subr.bf16.mxu0 %v3827
      %5079 = vmatpush1.bf16.msra.mxu0 %v3826
      %5080 = vmatprep.subr.bf16.mxu0 %v3859
      %5081 = vmatpush1.bf16.msra.mxu0 %v3858
      %5082 = vmatprep.subr.bf16.mxu0 %v3891
      %5083 = vmatpush1.bf16.msra.mxu0 %v3890
      %5084 = vmatprep.subr.bf16.mxu0 %v3923
      %5085 = vmatpush1.bf16.msra.mxu0 %v3922
      %5086 = vmatprep.subr.bf16.mxu0 %v3955
      %5087 = vmatpush1.bf16.msra.mxu0 %v3954
      %5088 = vmatprep.subr.bf16.mxu0 %v3987
      %5089 = vmatpush1.bf16.msra.mxu0 %v3986
      %5090 = vmatprep.subr.bf16.mxu0 %v4019
      %5091 = vmatpush1.bf16.msra.mxu0 %v4018
      %5092 = vmatprep.subr.bf16.mxu0 %v4051
      %5093 = vmatpush1.bf16.msra.mxu0 %v4050
      %5094 = vmatprep.mubr.bf16.mxu0 %v1497
      %5095 = vmatmul.mubr.bf16.gmra.mrb[0].mxu0 %v1496
      %v5096 = vpop.f32.mrb[0].mxu0
      %v5097 = vadd.f32 0.0, %v5096
      %v5098 = vpop.f32.mrb[0].mxu0
      %v5099 = vadd.f32 0.0, %v5098
      %v5100 = vpop.f32.mrb[0].mxu0
      %v5101 = vpop.f32.mrb[0].mxu0
      %5102 = vdwg.mxu0
      %5103 = vmatprep.subr.bf16.mxu0 %v3573
      %5104 = vmatpush1.bf16.msra.mxu0 %v3572
      %5105 = vmatprep.subr.bf16.mxu0 %v3605
      %5106 = vmatpush1.bf16.msra.mxu0 %v3604
      %5107 = vmatprep.subr.bf16.mxu0 %v3637
      %5108 = vmatpush1.bf16.msra.mxu0 %v3636
      %5109 = vmatprep.subr.bf16.mxu0 %v3669
      %5110 = vmatpush1.bf16.msra.mxu0 %v3668
      %5111 = vmatprep.subr.bf16.mxu0 %v3701
      %5112 = vmatpush1.bf16.msra.mxu0 %v3700
      %5113 = vmatprep.subr.bf16.mxu0 %v3733
      %5114 = vmatpush1.bf16.msra.mxu0 %v3732
      %5115 = vmatprep.subr.bf16.mxu0 %v3765
      %5116 = vmatpush1.bf16.msra.mxu0 %v3764
      %5117 = vmatprep.subr.bf16.mxu0 %v3797
      %5118 = vmatpush1.bf16.msra.mxu0 %v3796
      %5119 = vmatprep.subr.bf16.mxu0 %v3829
      %5120 = vmatpush1.bf16.msra.mxu0 %v3828
      %5121 = vmatprep.subr.bf16.mxu0 %v3861
      %5122 = vmatpush1.bf16.msra.mxu0 %v3860
      %5123 = vmatprep.subr.bf16.mxu0 %v3893
      %5124 = vmatpush1.bf16.msra.mxu0 %v3892
      %5125 = vmatprep.subr.bf16.mxu0 %v3925
      %5126 = vmatpush1.bf16.msra.mxu0 %v3924
      %5127 = vmatprep.subr.bf16.mxu0 %v3957
      %5128 = vmatpush1.bf16.msra.mxu0 %v3956
      %5129 = vmatprep.subr.bf16.mxu0 %v3989
      %5130 = vmatpush1.bf16.msra.mxu0 %v3988
      %5131 = vmatprep.subr.bf16.mxu0 %v4021
      %5132 = vmatpush1.bf16.msra.mxu0 %v4020
      %5133 = vmatprep.subr.bf16.mxu0 %v4053
      %5134 = vmatpush1.bf16.msra.mxu0 %v4052
      %5135 = vmatprep.mubr.bf16.mxu0 %v1497
      %5136 = vmatmul.mubr.bf16.gmra.mrb[0].mxu0 %v1496
      %v5137 = vpop.f32.mrb[0].mxu0
      %v5138 = vadd.f32 0.0, %v5137
      %v5139 = vpop.f32.mrb[0].mxu0
      %v5140 = vadd.f32 0.0, %v5139
      %v5141 = vpop.f32.mrb[0].mxu0
      %v5142 = vpop.f32.mrb[0].mxu0
      %5143 = vdwg.mxu0
      %5144 = vmatprep.subr.bf16.mxu0 %v3575
      %5145 = vmatpush1.bf16.msra.mxu0 %v3574
      %5146 = vmatprep.subr.bf16.mxu0 %v3607
      %5147 = vmatpush1.bf16.msra.mxu0 %v3606
      %5148 = vmatprep.subr.bf16.mxu0 %v3639
      %5149 = vmatpush1.bf16.msra.mxu0 %v3638
      %5150 = vmatprep.subr.bf16.mxu0 %v3671
      %5151 = vmatpush1.bf16.msra.mxu0 %v3670
      %5152 = vmatprep.subr.bf16.mxu0 %v3703
      %5153 = vmatpush1.bf16.msra.mxu0 %v3702
      %5154 = vmatprep.subr.bf16.mxu0 %v3735
      %5155 = vmatpush1.bf16.msra.mxu0 %v3734
      %5156 = vmatprep.subr.bf16.mxu0 %v3767
      %5157 = vmatpush1.bf16.msra.mxu0 %v3766
      %5158 = vmatprep.subr.bf16.mxu0 %v3799
      %5159 = vmatpush1.bf16.msra.mxu0 %v3798
      %5160 = vmatprep.subr.bf16.mxu0 %v3831
      %5161 = vmatpush1.bf16.msra.mxu0 %v3830
      %5162 = vmatprep.subr.bf16.mxu0 %v3863
      %5163 = vmatpush1.bf16.msra.mxu0 %v3862
      %5164 = vmatprep.subr.bf16.mxu0 %v3895
      %5165 = vmatpush1.bf16.msra.mxu0 %v3894
      %5166 = vmatprep.subr.bf16.mxu0 %v3927
      %5167 = vmatpush1.bf16.msra.mxu0 %v3926
      %5168 = vmatprep.subr.bf16.mxu0 %v3959
      %5169 = vmatpush1.bf16.msra.mxu0 %v3958
      %5170 = vmatprep.subr.bf16.mxu0 %v3991
      %5171 = vmatpush1.bf16.msra.mxu0 %v3990
      %5172 = vmatprep.subr.bf16.mxu0 %v4023
      %5173 = vmatpush1.bf16.msra.mxu0 %v4022
      %5174 = vmatprep.subr.bf16.mxu0 %v4055
      %5175 = vmatpush1.bf16.msra.mxu0 %v4054
      %5176 = vmatprep.mubr.bf16.mxu0 %v1497
      %5177 = vmatmul.mubr.bf16.gmra.mrb[0].mxu0 %v1496
      %v5178 = vpop.f32.mrb[0].mxu0
      %v5179 = vadd.f32 0.0, %v5178
      %v5180 = vpop.f32.mrb[0].mxu0
      %v5181 = vadd.f32 0.0, %v5180
      %v5182 = vpop.f32.mrb[0].mxu0
      %v5183 = vpop.f32.mrb[0].mxu0
      %5184 = vdwg.mxu0
      %5185 = vmatprep.subr.bf16.mxu0 %v3577
      %5186 = vmatpush1.bf16.msra.mxu0 %v3576
      %5187 = vmatprep.subr.bf16.mxu0 %v3609
      %5188 = vmatpush1.bf16.msra.mxu0 %v3608
      %5189 = vmatprep.subr.bf16.mxu0 %v3641
      %5190 = vmatpush1.bf16.msra.mxu0 %v3640
      %5191 = vmatprep.subr.bf16.mxu0 %v3673
      %5192 = vmatpush1.bf16.msra.mxu0 %v3672
      %5193 = vmatprep.subr.bf16.mxu0 %v3705
      %5194 = vmatpush1.bf16.msra.mxu0 %v3704
      %5195 = vmatprep.subr.bf16.mxu0 %v3737
      %5196 = vmatpush1.bf16.msra.mxu0 %v3736
      %5197 = vmatprep.subr.bf16.mxu0 %v3769
      %5198 = vmatpush1.bf16.msra.mxu0 %v3768
      %5199 = vmatprep.subr.bf16.mxu0 %v3801
      %5200 = vmatpush1.bf16.msra.mxu0 %v3800
      %5201 = vmatprep.subr.bf16.mxu0 %v3833
      %5202 = vmatpush1.bf16.msra.mxu0 %v3832
      %5203 = vmatprep.subr.bf16.mxu0 %v3865
      %5204 = vmatpush1.bf16.msra.mxu0 %v3864
      %5205 = vmatprep.subr.bf16.mxu0 %v3897
      %5206 = vmatpush1.bf16.msra.mxu0 %v3896
      %5207 = vmatprep.subr.bf16.mxu0 %v3929
      %5208 = vmatpush1.bf16.msra.mxu0 %v3928
      %5209 = vmatprep.subr.bf16.mxu0 %v3961
      %5210 = vmatpush1.bf16.msra.mxu0 %v3960
      %5211 = vmatprep.subr.bf16.mxu0 %v3993
      %5212 = vmatpush1.bf16.msra.mxu0 %v3992
      %5213 = vmatprep.subr.bf16.mxu0 %v4025
      %5214 = vmatpush1.bf16.msra.mxu0 %v4024
      %5215 = vmatprep.subr.bf16.mxu0 %v4057
      %5216 = vmatpush1.bf16.msra.mxu0 %v4056
      %5217 = vmatprep.mubr.bf16.mxu0 %v1497
      %5218 = vmatmul.mubr.bf16.gmra.mrb[0].mxu0 %v1496
      %v5219 = vpop.f32.mrb[0].mxu0
      %v5220 = vadd.f32 0.0, %v5219
      %v5221 = vpop.f32.mrb[0].mxu0
      %v5222 = vadd.f32 0.0, %v5221
      %v5223 = vpop.f32.mrb[0].mxu0
      %v5224 = vpop.f32.mrb[0].mxu0
      %5225 = vdwg.mxu0
      %v5258 = vcombine.low %v4605, %v4607
      %v5259 = vcombine.low %v4646, %v4648
      %v5260 = vcombine.low %v4687, %v4689
      %v5261 = vcombine.low %v4728, %v4730
      %v5262 = vcombine.low %v4769, %v4771
      %v5263 = vcombine.low %v4810, %v4812
      %v5264 = vcombine.low %v4851, %v4853
      %v5265 = vcombine.low %v4892, %v4894
      %v5266 = vcombine.low %v4933, %v4935
      %v5267 = vcombine.low %v4974, %v4976
      %v5268 = vcombine.low %v5015, %v5017
      %v5269 = vcombine.low %v5056, %v5058
      %v5270 = vcombine.low %v5097, %v5099
      %v5271 = vcombine.low %v5138, %v5140
      %v5272 = vcombine.low %v5179, %v5181
      %v5273 = vcombine.low %v5220, %v5222
      %5290 = vst [vmem:[%s635] sm:$0x77] %v5258
      %5291 = vst [vmem:[%s635 + $0x8] sm:$0x77] %v5259
      %5292 = vst [vmem:[%s635 + $0x10] sm:$0x77] %v5260
      %5293 = vst [vmem:[%s635 + $0x18] sm:$0x77] %v5261
      %5294 = vst [vmem:[%s635 + $0x20] sm:$0x77] %v5262
      %5295 = vst [vmem:[%s635 + $0x28] sm:$0x77] %v5263
      %5296 = vst [vmem:[%s635 + $0x30] sm:$0x77] %v5264
      %5297 = vst [vmem:[%s635 + $0x38] sm:$0x77] %v5265
      %5298 = vst [vmem:[%s635 + $0x40] sm:$0x77] %v5266
      %5299 = vst [vmem:[%s635 + $0x48] sm:$0x77] %v5267
      %5300 = vst [vmem:[%s635 + $0x50] sm:$0x77] %v5268
      %5301 = vst [vmem:[%s635 + $0x58] sm:$0x77] %v5269
      %5302 = vst [vmem:[%s635 + $0x60] sm:$0x77] %v5270
      %5303 = vst [vmem:[%s635 + $0x68] sm:$0x77] %v5271
      %5304 = vst [vmem:[%s635 + $0x70] sm:$0x77] %v5272
      %5305 = vst [vmem:[%s635 + $0x78] sm:$0x77] %v5273
      %p5306 = scmp.lt.s32.totalorder %s29, 1
      %s5307 = scalar_select %p5306, %s29, 1
      %s5308 = smul.addr %s5307, 32
      %s5309 = smul.addr %s5308, 4
      %s5310 = scalar_lea.vmem %s18, %s5309
      // Predicated region
      $region93: #{roweeder_flat_forward.1} parent=91 // pred_check
        %p5311 = pneg %p445
      $region94: #{roweeder_flat_forward.1} parent=91 // pred_check_branch
        %5313 = sbr.rel (%p5311) target = $region96
      $region95: #{roweeder_flat_forward.1} parent=91 // pred_region
        _
      $region96: #{roweeder_flat_forward.1} parent=91 // pred_fallthru
        _
    $region92: #{roweeder_flat_forward.1} parent=5 // pred_fallthru
      _
    %p5314 = scmp.le.s32.totalorder 2, %s24
    // Predicated region
    $region97: #{roweeder_flat_forward.1} parent=5 // pred_check
      %p5315 = pneg %p5314
    $region98: #{roweeder_flat_forward.1} parent=5 // pred_check_branch
      %5317 = sbr.rel (%p5315) target = $region100
    $region99: #{roweeder_flat_forward.1} parent=5 // pred_region
      %s5318 = ssub.s32 %s24, 2
      // Predicated region
      $region101: #{roweeder_flat_forward.1} parent=99 // pred_check
        %p5319 = pneg %p451
      $region102: #{roweeder_flat_forward.1} parent=99 // pred_check_branch
        %5321 = sbr.rel (%p5319) target = $region104
      $region103: #{roweeder_flat_forward.1} parent=99 // pred_region
        %p5322 = scmp.lt.s32.totalorder %s30, 1
        %s5323 = scalar_select %p5322, %s30, 1
        %s5324 = smul.addr %s5323, 32
        %s5325 = smul.addr %s5324, 4
        %s5326 = scalar_lea.vmem %s18, %s5325
      $region104: #{roweeder_flat_forward.1} parent=99 // pred_fallthru
        _
    $region100: #{roweeder_flat_forward.1} parent=5 // pred_fallthru
      _
  $region6: #{roweeder_flat_forward.1} parent=0 // loop_footer
    %s28 = sadd.s32 1, %s24
  $region7: #{roweeder_flat_forward.1} parent=0 // loop_footer_branch
    %23 = sbr.rel target = $region3
  $region8: #{roweeder_flat_forward.1} parent=0 // loop_exit
    _

</llo_original>
